<compile_context>
chip_gen: v7x
topology: tpu7x:2x2x1
jax: 0.10.0
libtpu: 0.0.40
codegen_flags: <defaults>
</compile_context>

<pallas_src>
import jax
import jax.numpy as jnp
import numpy as np
from jax import lax
from jax.experimental import pallas as pl
from jax.experimental.pallas import tpu as pltpu


def _downsampler_kernel(x_ref, w_ref, scale_ref, bias_ref, out_ref, pad_ref):
    # x_ref    : (1, H, W, Cin)      un-padded NHWC input, one batch element
    # w_ref    : (Cconv, 9*Cin)      im2col conv weights, tap-major ((ky*3+kx)*Cin + ci)
    # scale_ref: (Cout, 1)           folded BN scale = gamma / sqrt(var + eps)
    # bias_ref : (Cout, 1)           folded BN shift (conv bias folded in for conv chans)
    # out_ref  : (1, Cout, Ho*Wo)    channel-major output (free reshape to NCHW outside)
    # pad_ref  : (H+2, W+2, Cin)     VMEM scratch holding the zero-padded input
    _, H, W, Cin = x_ref.shape
    Ho, Wo = H // 2, W // 2
    Cconv = w_ref.shape[0]

    # ---- zero-pad into VMEM scratch (no HBM pad pre-pass); only borders need zeroing ----
    zrow = jnp.zeros((1, W + 2, Cin), pad_ref.dtype)
    zcol = jnp.zeros((H + 2, 1, Cin), pad_ref.dtype)
    pad_ref[0:1, :, :] = zrow
    pad_ref[H + 1:H + 2, :, :] = zrow
    pad_ref[:, 0:1, :] = zcol
    pad_ref[:, W + 1:W + 2, :] = zcol
    pad_ref[1:H + 1, 1:W + 1, :] = x_ref[0]

    xpad = pad_ref[...]                                     # (H+2, W+2, Cin)

    # ---- stride-2 decimation, done once: the 4 even/odd planes of the padded image ----
    rows = xpad.reshape(Ho + 1, 2, W + 2, Cin)
    planes = []
    for a in (0, 1):
        r = rows[:, a]                                       # (Ho+1, W+2, Cin)
        c = r.reshape(Ho + 1, Wo + 1, 2, Cin)
        planes.append((c[:, :, 0], c[:, :, 1]))              # each (Ho+1, Wo+1, Cin)

    # ---- the 9 conv taps; the 2x2 max-pool is fused as the max of the 4 central taps ----
    taps = []
    pooled = None
    for ky in range(3):
        for kx in range(3):
            p = planes[ky % 2][kx % 2]
            patch = p[ky // 2:ky // 2 + Ho, kx // 2:kx // 2 + Wo, :]    # (Ho, Wo, Cin)
            taps.append(patch)
            if ky >= 1 and kx >= 1:                          # taps (1,1),(1,2),(2,1),(2,2)
                pooled = patch if pooled is None else jnp.maximum(pooled, patch)

    # ---- single im2col matmul with K = 9*Cin, channel-major result (Cconv, Ho*Wo) ----
    patches = jnp.concatenate(taps, axis=-1).reshape(Ho * Wo, 9 * Cin)
    conv = lax.dot_general(w_ref[...], patches,
                           dimension_numbers=(((1,), (1,)), ((), ())),
                           preferred_element_type=jnp.float32)          # (Cconv, Ho*Wo)

    # ---- pooled channels to channel-major via an exact identity matmul on the MXU ----
    pooled2 = pooled.reshape(Ho * Wo, Cin)
    ri = lax.broadcasted_iota(jnp.int32, (Cin, Cin), 0)
    ci = lax.broadcasted_iota(jnp.int32, (Cin, Cin), 1)
    eye = (ri == ci).astype(pooled2.dtype)
    pool = lax.dot_general(eye, pooled2,
                           dimension_numbers=(((1,), (1,)), ((), ())),
                           preferred_element_type=jnp.float32)          # (Cin, Ho*Wo)

    # ---- fused BN (eval) + ReLU, written to disjoint channel slices (no lane concat) ----
    sc = scale_ref[...]                                      # (Cout, 1)
    bi = bias_ref[...]
    out_ref[0, :Cconv, :] = jnp.maximum(conv * sc[:Cconv] + bi[:Cconv],
                                        0.0).astype(out_ref.dtype)
    out_ref[0, Cconv:, :] = jnp.maximum(pool * sc[Cconv:] + bi[Cconv:],
                                        0.0).astype(out_ref.dtype)


def downsampler_block(x_nchw, conv_w_oihw, conv_b, gamma, beta, run_mean, run_var,
                      eps=1e-3):
    N, Cin, H, W = x_nchw.shape
    Cconv = conv_w_oihw.shape[0]
    Cout = Cconv + Cin
    Ho, Wo = H // 2, W // 2

    # glue (plain JAX): NHWC input view, im2col weight layout, BN/bias folding.
    x = jnp.transpose(x_nchw, (0, 2, 3, 1))                  # NHWC (no jnp.pad pre-pass)
    w_im2col = jnp.transpose(conv_w_oihw, (0, 2, 3, 1)).reshape(Cconv, 9 * Cin)

    scale = gamma / jnp.sqrt(run_var + eps)                  # (Cout,)
    shift = beta - run_mean * scale
    bias = shift.at[:Cconv].add(conv_b * scale[:Cconv])      # fold conv bias
    scale2 = scale.reshape(Cout, 1).astype(jnp.float32)
    bias2 = bias.reshape(Cout, 1).astype(jnp.float32)

    out_flat = pl.pallas_call(
        _downsampler_kernel,
        out_shape=jax.ShapeDtypeStruct((N, Cout, Ho * Wo), x.dtype),
        grid_spec=pltpu.PrefetchScalarGridSpec(
            num_scalar_prefetch=0,
            grid=(N,),
            in_specs=[
                pl.BlockSpec((1, H, W, Cin), lambda n: (n, 0, 0, 0)),
                pl.BlockSpec((Cconv, 9 * Cin), lambda n: (0, 0)),
                pl.BlockSpec((Cout, 1), lambda n: (0, 0)),
                pl.BlockSpec((Cout, 1), lambda n: (0, 0)),
            ],
            out_specs=pl.BlockSpec((1, Cout, Ho * Wo), lambda n: (n, 0, 0)),
            scratch_shapes=[pltpu.VMEM((H + 2, W + 2, Cin), x.dtype)],
        ),
        compiler_params=pltpu.CompilerParams(dimension_semantics=("parallel",)),
    )(x, w_im2col, scale2, bias2)

    return out_flat.reshape(N, Cout, Ho, Wo)                 # NCHW; metadata-only reshape


def _reference(x, w, b, gamma, beta, mean, var, eps=1e-3):
    conv = lax.conv_general_dilated(
        x, w, window_strides=(2, 2), padding=[(1, 1), (1, 1)],
        dimension_numbers=("NCHW", "OIHW", "NCHW"),
        precision=lax.Precision.HIGHEST) + b.reshape(1, -1, 1, 1)
    pool = lax.reduce_window(x, -jnp.inf, lax.max, (1, 1, 2, 2), (1, 1, 2, 2), "VALID")
    y = jnp.concatenate([conv, pool], axis=1)
    c = lambda v: v.reshape(1, -1, 1, 1)
    y = (y - c(mean)) / jnp.sqrt(c(var) + eps) * c(gamma) + c(beta)
    return jnp.maximum(y, 0.0)


if __name__ == "__main__":
    ninput, noutput = 4, 16
    N, H, W = 2, 16, 16
    Cconv = noutput - ninput

    key = jax.random.PRNGKey(0)
    k_x, k_w, k_b, k_g, k_be, k_m, k_v = jax.random.split(key, 7)

    x = jax.random.normal(k_x, (N, ninput, H, W), jnp.float32)           # NCHW like PyTorch
    conv_w = 0.1 * jax.random.normal(k_w, (Cconv, ninput, 3, 3), jnp.float32)
    conv_b = 0.1 * jax.random.normal(k_b, (Cconv,), jnp.float32)
    gamma = 1.0 + 0.1 * jax.random.normal(k_g, (noutput,), jnp.float32)
    beta = 0.1 * jax.random.normal(k_be, (noutput,), jnp.float32)
    run_mean = 0.1 * jax.random.normal(k_m, (noutput,), jnp.float32)
    run_var = 0.5 + jnp.abs(jax.random.normal(k_v, (noutput,), jnp.float32))

    out = downsampler_block(x, conv_w, conv_b, gamma, beta, run_mean, run_var, eps=1e-3)
    out = jax.block_until_ready(out)

    ref = _reference(x, conv_w, conv_b, gamma, beta, run_mean, run_var, eps=1e-3)
    np.testing.assert_allclose(np.asarray(out), np.asarray(ref), rtol=2e-3, atol=2e-3)

    assert out.shape == (N, noutput, H // 2, W // 2)
    print("KERNEL_OK")
</pallas_src>

<mosaic_0001>
module attributes {stable_mosaic.version = 11 : i64} {
  func.func @_downsampler_kernel(%arg0: i32, %arg1: memref<1x16x16x4xf32, #tpu.memory_space<vmem>>, %arg2: memref<12x36xf32, #tpu.memory_space<vmem>>, %arg3: memref<16x1xf32, #tpu.memory_space<vmem>>, %arg4: memref<16x1xf32, #tpu.memory_space<vmem>>, %arg5: memref<1x16x64xf32, #tpu.memory_space<vmem>>, %arg6: memref<18x18x4xf32, #tpu.memory_space<vmem>>) attributes {dimension_semantics = [#tpu.dimension_semantics<parallel>], iteration_bounds = array<i64: 2>, scalar_prefetch = 0 : i64, scratch_operands = 1 : i64, tpu.core_type = #tpu.core_type<tc>, window_params = [{transform_indices = @transform_0, window_bounds = array<i64: 1, 16, 16, 4>}, {pipeline_mode = #tpu.pipeline_mode<synchronous>, transform_indices = @transform_1, window_bounds = array<i64: 12, 36>}, {pipeline_mode = #tpu.pipeline_mode<synchronous>, transform_indices = @transform_2, window_bounds = array<i64: 16, 1>}, {pipeline_mode = #tpu.pipeline_mode<synchronous>, transform_indices = @transform_3, window_bounds = array<i64: 16, 1>}, {transform_indices = @transform_4, window_bounds = array<i64: 1, 16, 64>}]} {
    %cst = arith.constant 0.000000e+00 : f32
    %0 = vector.broadcast %cst : f32 to vector<1x18x4xf32>
    %cst_0 = arith.constant 0.000000e+00 : f32
    %1 = vector.broadcast %cst_0 : f32 to vector<18x1x4xf32>
    %c0 = arith.constant 0 : index
    %c0_1 = arith.constant 0 : index
    %c0_2 = arith.constant 0 : index
    %2 = vector.load %arg6[%c0, %c0_1, %c0_2] : memref<18x18x4xf32, #tpu.memory_space<vmem>>, vector<1x18x4xf32>
    tpu.vector_store %arg6[%c0, %c0_1, %c0_2], %0 {strides = array<i32>} : memref<18x18x4xf32, #tpu.memory_space<vmem>>, vector<1x18x4xf32>,
    %c17 = arith.constant 17 : index
    %c0_3 = arith.constant 0 : index
    %c0_4 = arith.constant 0 : index
    %3 = vector.load %arg6[%c17, %c0_3, %c0_4] : memref<18x18x4xf32, #tpu.memory_space<vmem>>, vector<1x18x4xf32>
    tpu.vector_store %arg6[%c17, %c0_3, %c0_4], %0 {strides = array<i32>} : memref<18x18x4xf32, #tpu.memory_space<vmem>>, vector<1x18x4xf32>,
    %c0_5 = arith.constant 0 : index
    %c0_6 = arith.constant 0 : index
    %c0_7 = arith.constant 0 : index
    %4 = vector.load %arg6[%c0_5, %c0_6, %c0_7] : memref<18x18x4xf32, #tpu.memory_space<vmem>>, vector<18x1x4xf32>
    tpu.vector_store %arg6[%c0_5, %c0_6, %c0_7], %1 {strides = array<i32>} : memref<18x18x4xf32, #tpu.memory_space<vmem>>, vector<18x1x4xf32>,
    %c0_8 = arith.constant 0 : index
    %c17_9 = arith.constant 17 : index
    %c0_10 = arith.constant 0 : index
    %5 = vector.load %arg6[%c0_8, %c17_9, %c0_10] : memref<18x18x4xf32, #tpu.memory_space<vmem>>, vector<18x1x4xf32>
    tpu.vector_store %arg6[%c0_8, %c17_9, %c0_10], %1 {strides = array<i32>} : memref<18x18x4xf32, #tpu.memory_space<vmem>>, vector<18x1x4xf32>,
    %c0_11 = arith.constant 0 : index
    %c0_12 = arith.constant 0 : index
    %c0_13 = arith.constant 0 : index
    %c0_14 = arith.constant 0 : index
    %6 = vector.load %arg1[%c0_11, %c0_12, %c0_13, %c0_14] : memref<1x16x16x4xf32, #tpu.memory_space<vmem>>, vector<1x16x16x4xf32>
    %7 = vector.shape_cast %6 : vector<1x16x16x4xf32> to vector<16x16x4xf32>
    %c1 = arith.constant 1 : index
    %c1_15 = arith.constant 1 : index
    %c0_16 = arith.constant 0 : index
    %8 = vector.load %arg6[%c1, %c1_15, %c0_16] : memref<18x18x4xf32, #tpu.memory_space<vmem>>, vector<16x16x4xf32>
    tpu.vector_store %arg6[%c1, %c1_15, %c0_16], %7 {strides = array<i32>} : memref<18x18x4xf32, #tpu.memory_space<vmem>>, vector<16x16x4xf32>,
    %c0_17 = arith.constant 0 : index
    %c0_18 = arith.constant 0 : index
    %c0_19 = arith.constant 0 : index
    %9 = vector.load %arg6[%c0_17, %c0_18, %c0_19] : memref<18x18x4xf32, #tpu.memory_space<vmem>>, vector<18x18x4xf32>
    %10 = vector.shape_cast %9 : vector<18x18x4xf32> to vector<9x2x18x4xf32>
    %11 = vector.extract_strided_slice %10 {offsets = [0, 0, 0, 0], sizes = [9, 1, 18, 4], strides = [1, 1, 1, 1]} : vector<9x2x18x4xf32> to vector<9x1x18x4xf32>
    %12 = vector.shape_cast %11 : vector<9x1x18x4xf32> to vector<9x18x4xf32>
    %13 = vector.shape_cast %12 : vector<9x18x4xf32> to vector<9x9x2x4xf32>
    %14 = vector.extract_strided_slice %13 {offsets = [0, 0, 0, 0], sizes = [9, 9, 1, 4], strides = [1, 1, 1, 1]} : vector<9x9x2x4xf32> to vector<9x9x1x4xf32>
    %15 = vector.shape_cast %14 : vector<9x9x1x4xf32> to vector<9x9x4xf32>
    %16 = vector.extract_strided_slice %13 {offsets = [0, 0, 1, 0], sizes = [9, 9, 1, 4], strides = [1, 1, 1, 1]} : vector<9x9x2x4xf32> to vector<9x9x1x4xf32>
    %17 = vector.shape_cast %16 : vector<9x9x1x4xf32> to vector<9x9x4xf32>
    %18 = vector.extract_strided_slice %10 {offsets = [0, 1, 0, 0], sizes = [9, 1, 18, 4], strides = [1, 1, 1, 1]} : vector<9x2x18x4xf32> to vector<9x1x18x4xf32>
    %19 = vector.shape_cast %18 : vector<9x1x18x4xf32> to vector<9x18x4xf32>
    %20 = vector.shape_cast %19 : vector<9x18x4xf32> to vector<9x9x2x4xf32>
    %21 = vector.extract_strided_slice %20 {offsets = [0, 0, 0, 0], sizes = [9, 9, 1, 4], strides = [1, 1, 1, 1]} : vector<9x9x2x4xf32> to vector<9x9x1x4xf32>
    %22 = vector.shape_cast %21 : vector<9x9x1x4xf32> to vector<9x9x4xf32>
    %23 = vector.extract_strided_slice %20 {offsets = [0, 0, 1, 0], sizes = [9, 9, 1, 4], strides = [1, 1, 1, 1]} : vector<9x9x2x4xf32> to vector<9x9x1x4xf32>
    %24 = vector.shape_cast %23 : vector<9x9x1x4xf32> to vector<9x9x4xf32>
    %25 = vector.extract_strided_slice %15 {offsets = [0, 0, 0], sizes = [8, 8, 4], strides = [1, 1, 1]} : vector<9x9x4xf32> to vector<8x8x4xf32>
    %26 = vector.extract_strided_slice %17 {offsets = [0, 0, 0], sizes = [8, 8, 4], strides = [1, 1, 1]} : vector<9x9x4xf32> to vector<8x8x4xf32>
    %27 = vector.extract_strided_slice %15 {offsets = [0, 1, 0], sizes = [8, 8, 4], strides = [1, 1, 1]} : vector<9x9x4xf32> to vector<8x8x4xf32>
    %28 = vector.extract_strided_slice %22 {offsets = [0, 0, 0], sizes = [8, 8, 4], strides = [1, 1, 1]} : vector<9x9x4xf32> to vector<8x8x4xf32>
    %29 = vector.extract_strided_slice %24 {offsets = [0, 0, 0], sizes = [8, 8, 4], strides = [1, 1, 1]} : vector<9x9x4xf32> to vector<8x8x4xf32>
    %30 = vector.extract_strided_slice %22 {offsets = [0, 1, 0], sizes = [8, 8, 4], strides = [1, 1, 1]} : vector<9x9x4xf32> to vector<8x8x4xf32>
    %31 = arith.maximumf %29, %30 : vector<8x8x4xf32>
    %32 = vector.extract_strided_slice %15 {offsets = [1, 0, 0], sizes = [8, 8, 4], strides = [1, 1, 1]} : vector<9x9x4xf32> to vector<8x8x4xf32>
    %33 = vector.extract_strided_slice %17 {offsets = [1, 0, 0], sizes = [8, 8, 4], strides = [1, 1, 1]} : vector<9x9x4xf32> to vector<8x8x4xf32>
    %34 = arith.maximumf %31, %33 : vector<8x8x4xf32>
    %35 = vector.extract_strided_slice %15 {offsets = [1, 1, 0], sizes = [8, 8, 4], strides = [1, 1, 1]} : vector<9x9x4xf32> to vector<8x8x4xf32>
    %36 = arith.maximumf %34, %35 : vector<8x8x4xf32>
    %37 = tpu.concatenate %25, %26, %27, %28, %29, %30, %32, %33, %35 in 2 : vector<8x8x4xf32>, vector<8x8x4xf32>, vector<8x8x4xf32>, vector<8x8x4xf32>, vector<8x8x4xf32>, vector<8x8x4xf32>, vector<8x8x4xf32>, vector<8x8x4xf32>, vector<8x8x4xf32> -> vector<8x8x36xf32>
    %38 = vector.shape_cast %37 : vector<8x8x36xf32> to vector<64x36xf32>
    %c0_20 = arith.constant 0 : index
    %c0_21 = arith.constant 0 : index
    %39 = vector.load %arg2[%c0_20, %c0_21] : memref<12x36xf32, #tpu.memory_space<vmem>>, vector<12x36xf32>
    %cst_22 = arith.constant dense<0.000000e+00> : vector<12x64xf32>
    %40 = tpu.matmul %39, %38, %cst_22 {dimension_numbers = #tpu.dot_dimension_numbers<[1], [1], [0], [0], [0, 0, 1, 0], [], []>} : vector<12x36xf32>, vector<64x36xf32>, vector<12x64xf32> -> vector<12x64xf32>
    %41 = vector.shape_cast %36 : vector<8x8x4xf32> to vector<64x4xf32>
    %42 = tpu.iota {dimensions = array<i32: 0>} : vector<4x4xi32>
    %43 = tpu.iota {dimensions = array<i32: 1>} : vector<4x4xi32>
    %44 = arith.cmpi eq, %42, %43 : vector<4x4xi32>
    %45 = arith.extui %44 : vector<4x4xi1> to vector<4x4xi32>
    %46 = arith.sitofp %45 : vector<4x4xi32> to vector<4x4xf32>
    %cst_23 = arith.constant dense<0.000000e+00> : vector<4x64xf32>
    %47 = tpu.matmul %46, %41, %cst_23 {dimension_numbers = #tpu.dot_dimension_numbers<[1], [1], [0], [0], [0, 0, 1, 0], [], []>} : vector<4x4xf32>, vector<64x4xf32>, vector<4x64xf32> -> vector<4x64xf32>
    %c0_24 = arith.constant 0 : index
    %c0_25 = arith.constant 0 : index
    %48 = vector.load %arg3[%c0_24, %c0_25] : memref<16x1xf32, #tpu.memory_space<vmem>>, vector<16x1xf32>
    %c0_26 = arith.constant 0 : index
    %c0_27 = arith.constant 0 : index
    %49 = vector.load %arg4[%c0_26, %c0_27] : memref<16x1xf32, #tpu.memory_space<vmem>>, vector<16x1xf32>
    %50 = vector.extract_strided_slice %48 {offsets = [0, 0], sizes = [12, 1], strides = [1, 1]} : vector<16x1xf32> to vector<12x1xf32>
    %51 = vector.broadcast %50 : vector<12x1xf32> to vector<12x64xf32>
    %52 = arith.mulf %40, %51 : vector<12x64xf32>
    %53 = vector.extract_strided_slice %49 {offsets = [0, 0], sizes = [12, 1], strides = [1, 1]} : vector<16x1xf32> to vector<12x1xf32>
    %54 = vector.broadcast %53 : vector<12x1xf32> to vector<12x64xf32>
    %55 = arith.addf %52, %54 : vector<12x64xf32>
    %cst_28 = arith.constant 0.000000e+00 : f32
    %56 = vector.broadcast %cst_28 : f32 to vector<12x64xf32>
    %57 = arith.maximumf %55, %56 : vector<12x64xf32>
    %c0_29 = arith.constant 0 : index
    %c0_30 = arith.constant 0 : index
    %c0_31 = arith.constant 0 : index
    %58 = vector.load %arg5[%c0_29, %c0_30, %c0_31] : memref<1x16x64xf32, #tpu.memory_space<vmem>>, vector<1x12x64xf32>
    %59 = vector.shape_cast %58 : vector<1x12x64xf32> to vector<12x64xf32>
    %60 = vector.shape_cast %57 : vector<12x64xf32> to vector<1x12x64xf32>
    tpu.vector_store %arg5[%c0_29, %c0_30, %c0_31], %60 {strides = array<i32>} : memref<1x16x64xf32, #tpu.memory_space<vmem>>, vector<1x12x64xf32>,
    %61 = vector.extract_strided_slice %48 {offsets = [12, 0], sizes = [4, 1], strides = [1, 1]} : vector<16x1xf32> to vector<4x1xf32>
    %62 = vector.broadcast %61 : vector<4x1xf32> to vector<4x64xf32>
    %63 = arith.mulf %47, %62 : vector<4x64xf32>
    %64 = vector.extract_strided_slice %49 {offsets = [12, 0], sizes = [4, 1], strides = [1, 1]} : vector<16x1xf32> to vector<4x1xf32>
    %65 = vector.broadcast %64 : vector<4x1xf32> to vector<4x64xf32>
    %66 = arith.addf %63, %65 : vector<4x64xf32>
    %cst_32 = arith.constant 0.000000e+00 : f32
    %67 = vector.broadcast %cst_32 : f32 to vector<4x64xf32>
    %68 = arith.maximumf %66, %67 : vector<4x64xf32>
    %c0_33 = arith.constant 0 : index
    %c12 = arith.constant 12 : index
    %c0_34 = arith.constant 0 : index
    %69 = vector.load %arg5[%c0_33, %c12, %c0_34] : memref<1x16x64xf32, #tpu.memory_space<vmem>>, vector<1x4x64xf32>
    %70 = vector.shape_cast %69 : vector<1x4x64xf32> to vector<4x64xf32>
    %71 = vector.shape_cast %68 : vector<4x64xf32> to vector<1x4x64xf32>
    tpu.vector_store %arg5[%c0_33, %c12, %c0_34], %71 {strides = array<i32>} : memref<1x16x64xf32, #tpu.memory_space<vmem>>, vector<1x4x64xf32>,
    return
  }
  func.func @transform_0(%arg0: i32) -> (i32, i32, i32, i32) {
    %c0_i32 = arith.constant 0 : i32
    %c0_i32_0 = arith.constant 0 : i32
    %c0_i32_1 = arith.constant 0 : i32
    %c0_i32_2 = arith.constant 0 : i32
    return %arg0, %c0_i32, %c0_i32_0, %c0_i32_1 : i32, i32, i32, i32
  }
  func.func @transform_1(%arg0: i32) -> (i32, i32) {
    %c0_i32 = arith.constant 0 : i32
    %c0_i32_0 = arith.constant 0 : i32
    %c0_i32_1 = arith.constant 0 : i32
    return %c0_i32, %c0_i32_0 : i32, i32
  }
  func.func @transform_2(%arg0: i32) -> (i32, i32) {
    %c0_i32 = arith.constant 0 : i32
    %c0_i32_0 = arith.constant 0 : i32
    %c0_i32_1 = arith.constant 0 : i32
    return %c0_i32, %c0_i32_0 : i32, i32
  }
  func.func @transform_3(%arg0: i32) -> (i32, i32) {
    %c0_i32 = arith.constant 0 : i32
    %c0_i32_0 = arith.constant 0 : i32
    %c0_i32_1 = arith.constant 0 : i32
    return %c0_i32, %c0_i32_0 : i32, i32
  }
  func.func @transform_4(%arg0: i32) -> (i32, i32, i32) {
    %c0_i32 = arith.constant 0 : i32
    %c0_i32_0 = arith.constant 0 : i32
    %c0_i32_1 = arith.constant 0 : i32
    return %arg0, %c0_i32, %c0_i32_0 : i32, i32, i32
  }
}

</mosaic_0001>

<llo_original>
// kernel: tpu_custom_call.1
$region0: #{tpu_custom_call.1}
  #allocation0 [shape = 'u32[]', space=smem, size = 0x4, offset = 0x4, fixed_abs, tag = 'smem constant byte address 0x4 - core index']
  #allocation1 [shape = 'u32[144,128]{1,0:T(1,128)}', space=vmem, size = 0x12000, scoped, tag = 'internal scratch']
  #allocation2 [shape = 'f32[18,18,4]{2,1,0:T(8,128)}', space=vmem, size = 0x36000, scoped, tag = 'scratch operand']
  %s0 = inlined_call_operand.vmem [shape: f32[2,16,16,4], index: 0, kind: input, shape index: {}]
  %s1 = inlined_call_operand.vmem [shape: f32[12,36], index: 1, kind: input, shape index: {}]
  %s2 = inlined_call_operand.vmem [shape: f32[16,1], index: 2, kind: input, shape index: {}]
  %s3 = inlined_call_operand.vmem [shape: f32[16,1], index: 3, kind: input, shape index: {}]
  %s4 = inlined_call_operand.hbm [shape: f32[2,16,64], index: 4, kind: output, shape index: {}]
  %s5 = sld [smem:[#allocation0]]
  $region49: #{tpu_custom_call.1} parent=0
    _
  %s7 = ssub.s32 1, %s5
  %s8 = scalar_select 0, %s7, %s5
  $region1: #{tpu_custom_call.1} parent=0
    #allocation3 [shape = 'u8[16384]{0}', space=vmem, size = 0x4000, scoped, tag = 'output window, operand 0']
    #allocation4 [shape = 's32[2]{0}', space=sflag, size = 0x8, scoped, tag = 'scoped memory for tpu_custom_call.1']
    %9 = vsyncpa [#allocation4], 0
    %s10 = scalar_lea.sflag [#allocation4], 1
    %11 = vsyncpa %s10, 0
    loop: start=0, step=1, limit=4
    $region2: #{tpu_custom_call.1} parent=1 // loop_pre_header
      _
    $region3: #{tpu_custom_call.1} parent=1 // loop_header
      %s13 = sphi 0, %s17
      %p14 = scmp.ge.s32.totalorder %s13, 4
      %s23 = sphi 0, %s25
      %s26 = sphi 0, %s23
      %s27 = sphi 0, %s26
      %s43 = sphi 0, %s27
      %s47 = sphi 0, %s47
      %s49 = sphi 0, %s47
      %s50 = sphi 0, %s49
      %s64 = sphi 0, %s50
      %s68 = sphi 0, %s68
      %s70 = sphi 0, %s68
      %s71 = sphi 0, %s70
      %s85 = sphi 0, %s71
      %s89 = sphi 0, %s89
      %s91 = sphi 0, %s89
      %s92 = sphi 0, %s91
      %s106 = sphi 0, %s92
      %s112 = sphi 0, %s114
      %s115 = sphi 0, %s112
      %s116 = sphi 0, %s115
      %s132 = sphi 0, %s116
    $region4: #{tpu_custom_call.1} parent=1 // loop_header_branch
      %16 = sbr.rel (%p14) target = $region8
    $region5: #{tpu_custom_call.1} parent=1 // loop_body
      %s18 = ssub.s32 %s13, 1
      %s19 = ssub.s32 %s13, 2
      %s20 = sadd.s32 %s13, 1
      %s21 = ssub.s32 %s13, %s20
      %p22 = scmp.eq.s32.totalorder %s21, 0
      %s24 = sadd.s32 %s23, 1
      %s25 = scalar_select %p22, %s23, %s24
      %p28 = pneg %p22
      %p29 = scmp.eq.s32.totalorder %s13, 1
      %p30 = por %p28, %p29
      %p31 = scmp.ne.s32.totalorder %s23, %s26
      %p32 = scmp.eq.s32.totalorder %s13, 0
      %p33 = por %p31, %p32
      %p34 = scmp.ne.s32.totalorder %s23, %s26
      %p35 = scmp.eq.s32.totalorder %s18, 1
      %p36 = por %p34, %p35
      %p37 = scmp.ne.s32.totalorder %s26, %s27
      %p38 = scmp.eq.s32.totalorder %s18, 0
      %p39 = por %p37, %p38
      %p40 = scmp.ne.s32.totalorder %s26, %s27
      %p41 = scmp.eq.s32.totalorder %s19, 1
      %p42 = por %p40, %p41
      %p44 = scmp.ne.s32.totalorder %s27, %s43
      %p45 = scmp.eq.s32.totalorder %s19, 0
      %p46 = por %p44, %p45
      %s48 = sadd.s32 %s47, 1
      %p51 = scmp.eq.s32.totalorder %s13, 1
      %p52 = scmp.ne.s32.totalorder %s47, %s49
      %p53 = scmp.eq.s32.totalorder %s13, 0
      %p54 = por %p52, %p53
      %p55 = scmp.ne.s32.totalorder %s47, %s49
      %p56 = scmp.eq.s32.totalorder %s18, 1
      %p57 = por %p55, %p56
      %p58 = scmp.ne.s32.totalorder %s49, %s50
      %p59 = scmp.eq.s32.totalorder %s18, 0
      %p60 = por %p58, %p59
      %p61 = scmp.ne.s32.totalorder %s49, %s50
      %p62 = scmp.eq.s32.totalorder %s19, 1
      %p63 = por %p61, %p62
      %p65 = scmp.ne.s32.totalorder %s50, %s64
      %p66 = scmp.eq.s32.totalorder %s19, 0
      %p67 = por %p65, %p66
      %s69 = sadd.s32 %s68, 1
      %p72 = scmp.eq.s32.totalorder %s13, 1
      %p73 = scmp.ne.s32.totalorder %s68, %s70
      %p74 = scmp.eq.s32.totalorder %s13, 0
      %p75 = por %p73, %p74
      %p76 = scmp.ne.s32.totalorder %s68, %s70
      %p77 = scmp.eq.s32.totalorder %s18, 1
      %p78 = por %p76, %p77
      %p79 = scmp.ne.s32.totalorder %s70, %s71
      %p80 = scmp.eq.s32.totalorder %s18, 0
      %p81 = por %p79, %p80
      %p82 = scmp.ne.s32.totalorder %s70, %s71
      %p83 = scmp.eq.s32.totalorder %s19, 1
      %p84 = por %p82, %p83
      %p86 = scmp.ne.s32.totalorder %s71, %s85
      %p87 = scmp.eq.s32.totalorder %s19, 0
      %p88 = por %p86, %p87
      %s90 = sadd.s32 %s89, 1
      %p93 = scmp.eq.s32.totalorder %s13, 1
      %p94 = scmp.ne.s32.totalorder %s89, %s91
      %p95 = scmp.eq.s32.totalorder %s13, 0
      %p96 = por %p94, %p95
      %p97 = scmp.ne.s32.totalorder %s89, %s91
      %p98 = scmp.eq.s32.totalorder %s18, 1
      %p99 = por %p97, %p98
      %p100 = scmp.ne.s32.totalorder %s91, %s92
      %p101 = scmp.eq.s32.totalorder %s18, 0
      %p102 = por %p100, %p101
      %p103 = scmp.ne.s32.totalorder %s91, %s92
      %p104 = scmp.eq.s32.totalorder %s19, 1
      %p105 = por %p103, %p104
      %p107 = scmp.ne.s32.totalorder %s92, %s106
      %p108 = scmp.eq.s32.totalorder %s19, 0
      %p109 = por %p107, %p108
      %s110 = ssub.s32 %s13, %s20
      %p111 = scmp.eq.s32.totalorder %s110, 0
      %s113 = sadd.s32 %s112, 1
      %s114 = scalar_select %p111, %s112, %s113
      %p117 = pneg %p111
      %p118 = scmp.eq.s32.totalorder %s13, 1
      %p119 = por %p117, %p118
      %p120 = scmp.ne.s32.totalorder %s112, %s115
      %p121 = scmp.eq.s32.totalorder %s13, 0
      %p122 = por %p120, %p121
      %p123 = scmp.ne.s32.totalorder %s112, %s115
      %p124 = scmp.eq.s32.totalorder %s18, 1
      %p125 = por %p123, %p124
      %p126 = scmp.ne.s32.totalorder %s115, %s116
      %p127 = scmp.eq.s32.totalorder %s18, 0
      %p128 = por %p126, %p127
      %p129 = scmp.ne.s32.totalorder %s115, %s116
      %p130 = scmp.eq.s32.totalorder %s19, 1
      %p131 = por %p129, %p130
      %p133 = scmp.ne.s32.totalorder %s116, %s132
      %p134 = scmp.eq.s32.totalorder %s19, 0
      %p135 = por %p133, %p134
      %p136 = scmp.le.s32.totalorder 1, %s13
      %p137 = scmp.lt.s32.totalorder %s13, 3
      %p138 = pnand %p136, %p137
      %p139 = pneg %p138
      // Predicated region
      $region9: #{tpu_custom_call.1} parent=5 // pred_check
        _
      $region10: #{tpu_custom_call.1} parent=5 // pred_check_branch
        %141 = sbr.rel (%p138) target = $region12
      $region11: #{tpu_custom_call.1} parent=5 // pred_region
        %s142 = ssub.s32 %s13, 1
        // Predicated region
        $region13: #{tpu_custom_call.1} parent=11 // pred_check
          %p143 = pneg %p60
        $region14: #{tpu_custom_call.1} parent=11 // pred_check_branch
          %145 = sbr.rel (%p143) target = $region16
        $region15: #{tpu_custom_call.1} parent=11 // pred_region
          _
        $region16: #{tpu_custom_call.1} parent=11 // pred_fallthru
          _
        // Predicated region
        $region17: #{tpu_custom_call.1} parent=11 // pred_check
          %p146 = pneg %p81
        $region18: #{tpu_custom_call.1} parent=11 // pred_check_branch
          %148 = sbr.rel (%p146) target = $region20
        $region19: #{tpu_custom_call.1} parent=11 // pred_region
          _
        $region20: #{tpu_custom_call.1} parent=11 // pred_fallthru
          _
        // Predicated region
        $region21: #{tpu_custom_call.1} parent=11 // pred_check
          %p149 = pneg %p102
        $region22: #{tpu_custom_call.1} parent=11 // pred_check_branch
          %151 = sbr.rel (%p149) target = $region24
        $region23: #{tpu_custom_call.1} parent=11 // pred_region
          _
        $region24: #{tpu_custom_call.1} parent=11 // pred_fallthru
          _
      $region12: #{tpu_custom_call.1} parent=5 // pred_fallthru
        _
      %p152 = scmp.lt.s32.totalorder %s13, 2
      // Predicated region
      $region25: #{tpu_custom_call.1} parent=5 // pred_check
        %p153 = pneg %p152
      $region26: #{tpu_custom_call.1} parent=5 // pred_check_branch
        %155 = sbr.rel (%p153) target = $region28
      $region27: #{tpu_custom_call.1} parent=5 // pred_region
        // Predicated region
        $region29: #{tpu_custom_call.1} parent=27 // pred_check
          %p156 = pneg %p33
        $region30: #{tpu_custom_call.1} parent=27 // pred_check_branch
          %158 = sbr.rel (%p156) target = $region32
        $region31: #{tpu_custom_call.1} parent=27 // pred_region
          %p159 = scmp.lt.s32.totalorder %s13, 1
          %s160 = scalar_select %p159, %s13, 1
          %s161 = smul.addr %s160, 32
          %s162 = smul.addr %s161, 8
          %s163 = scalar_lea.vmem %s0, %s162
        $region32: #{tpu_custom_call.1} parent=27 // pred_fallthru
          _
      $region28: #{tpu_custom_call.1} parent=5 // pred_fallthru
        _
      %p164 = scmp.le.s32.totalorder 1, %s13
      %p165 = scmp.lt.s32.totalorder %s13, 3
      %p166 = pnand %p164, %p165
      %p167 = pneg %p166
      // Predicated region
      $region33: #{tpu_custom_call.1} parent=5 // pred_check
        _
      $region34: #{tpu_custom_call.1} parent=5 // pred_check_branch
        %169 = sbr.rel (%p166) target = $region36
      $region35: #{tpu_custom_call.1} parent=5 // pred_region
        %s170 = ssub.s32 %s13, 1
        %p171 = scmp.lt.s32.totalorder %s18, 1
        %s172 = scalar_select %p171, %s18, 1
        %s173 = smul.addr %s172, 32
        %s174 = smul.addr %s173, 8
        %s175 = scalar_lea.vmem %s0, %s174
        %p176 = pneg %p39
        %p177 = pneg %p36
        %p178 = pneg %p60
        %p179 = pneg %p57
        %p180 = pneg %p81
        %p181 = pneg %p78
        %p182 = pneg %p102
        %p183 = pneg %p99
        %p184 = pneg %p128
        %p185 = pneg %p125
        %s186 = sand.u32 %s115, 1
        %s187 = scalar_lea.sflag [#allocation4], %s186
        %s188 = sand.u32 %s115, 1
        %s189 = smul.addr %s188, 16
        %s190 = scalar_lea.vmem [#allocation3], %s189
        %p191 = scmp.lt.s32.totalorder %s18, 1
        %s192 = scalar_select %p191, %s18, 1
        %s193 = smul.addr %s192, 32
        %s194 = smul.addr %s193, 8
        %s195 = scalar_lea.vmem %s0, %s194
        %vm196 = vcmask 31744
        %197 = vst.msk [vmem:[#allocation2] sm:$0xff] %vm196, 0.0
        %198 = vst.msk [vmem:[#allocation2 + $0x8] sm:$0xff] %vm196, 0.0
        %vm199 = vcmask 25600
        %200 = vst.msk [vmem:[#allocation2 + $0x10] sm:$0x3] %vm199, 0.0
        %s201 = scalar_lea.vmem [#allocation2], 408
        %202 = vst.msk [vmem:[%s201] sm:$0xff] %vm196, 0.0
        %203 = vst.msk [vmem:[%s201 + $0x8] sm:$0xff] %vm196, 0.0
        %204 = vst.msk [vmem:[%s201 + $0x10] sm:$0x3] %vm199, 0.0
        %vm205 = vcmask 24576
        %206 = vst.msk [vmem:[#allocation2] sm:$0x1] %vm205, 0.0
        %207 = vst.msk [vmem:[#allocation2 + $0x18] sm:$0x1] %vm205, 0.0
        %208 = vst.msk [vmem:[#allocation2 + $0x30] sm:$0x1] %vm205, 0.0
        %209 = vst.msk [vmem:[#allocation2 + $0x48] sm:$0x1] %vm205, 0.0
        %210 = vst.msk [vmem:[#allocation2 + $0x60] sm:$0x1] %vm205, 0.0
        %211 = vst.msk [vmem:[#allocation2 + $0x78] sm:$0x1] %vm205, 0.0
        %212 = vst.msk [vmem:[#allocation2 + $0x90] sm:$0x1] %vm205, 0.0
        %213 = vst.msk [vmem:[#allocation2 + $0xa8] sm:$0x1] %vm205, 0.0
        %214 = vst.msk [vmem:[#allocation2 + $0xc0] sm:$0x1] %vm205, 0.0
        %215 = vst.msk [vmem:[#allocation2 + $0xd8] sm:$0x1] %vm205, 0.0
        %216 = vst.msk [vmem:[#allocation2 + $0xf0] sm:$0x1] %vm205, 0.0
        %217 = vst.msk [vmem:[#allocation2 + $0x108] sm:$0x1] %vm205, 0.0
        %218 = vst.msk [vmem:[#allocation2 + $0x120] sm:$0x1] %vm205, 0.0
        %219 = vst.msk [vmem:[#allocation2 + $0x138] sm:$0x1] %vm205, 0.0
        %220 = vst.msk [vmem:[#allocation2 + $0x150] sm:$0x1] %vm205, 0.0
        %221 = vst.msk [vmem:[#allocation2 + $0x168] sm:$0x1] %vm205, 0.0
        %222 = vst.msk [vmem:[#allocation2 + $0x180] sm:$0x1] %vm205, 0.0
        %223 = vst.msk [vmem:[#allocation2 + $0x198] sm:$0x1] %vm205, 0.0
        %224 = vst.msk [vmem:[#allocation2 + $0x11] sm:$0x1] %vm205, 0.0
        %225 = vst.msk [vmem:[#allocation2 + $0x29] sm:$0x1] %vm205, 0.0
        %226 = vst.msk [vmem:[#allocation2 + $0x41] sm:$0x1] %vm205, 0.0
        %227 = vst.msk [vmem:[#allocation2 + $0x59] sm:$0x1] %vm205, 0.0
        %228 = vst.msk [vmem:[#allocation2 + $0x71] sm:$0x1] %vm205, 0.0
        %229 = vst.msk [vmem:[#allocation2 + $0x89] sm:$0x1] %vm205, 0.0
        %230 = vst.msk [vmem:[#allocation2 + $0xa1] sm:$0x1] %vm205, 0.0
        %231 = vst.msk [vmem:[#allocation2 + $0xb9] sm:$0x1] %vm205, 0.0
        %232 = vst.msk [vmem:[#allocation2 + $0xd1] sm:$0x1] %vm205, 0.0
        %233 = vst.msk [vmem:[#allocation2 + $0xe9] sm:$0x1] %vm205, 0.0
        %234 = vst.msk [vmem:[#allocation2 + $0x101] sm:$0x1] %vm205, 0.0
        %235 = vst.msk [vmem:[#allocation2 + $0x119] sm:$0x1] %vm205, 0.0
        %236 = vst.msk [vmem:[#allocation2 + $0x131] sm:$0x1] %vm205, 0.0
        %237 = vst.msk [vmem:[#allocation2 + $0x149] sm:$0x1] %vm205, 0.0
        %238 = vst.msk [vmem:[#allocation2 + $0x161] sm:$0x1] %vm205, 0.0
        %239 = vst.msk [vmem:[#allocation2 + $0x179] sm:$0x1] %vm205, 0.0
        %240 = vst.msk [vmem:[#allocation2 + $0x191] sm:$0x1] %vm205, 0.0
        %241 = vst.msk [vmem:[#allocation2 + $0x1a9] sm:$0x1] %vm205, 0.0
        %v242 = vld [vmem:[%s195] sm:$0xff]
        %v243 = vld [vmem:[%s195 + $0x8] sm:$0xff]
        %v244 = vld [vmem:[%s195 + $0x10] sm:$0xff]
        %v245 = vld [vmem:[%s195 + $0x18] sm:$0xff]
        %v246 = vld [vmem:[%s195 + $0x20] sm:$0xff]
        %v247 = vld [vmem:[%s195 + $0x28] sm:$0xff]
        %v248 = vld [vmem:[%s195 + $0x30] sm:$0xff]
        %v249 = vld [vmem:[%s195 + $0x38] sm:$0xff]
        %v250 = vld [vmem:[%s195 + $0x40] sm:$0xff]
        %v251 = vld [vmem:[%s195 + $0x48] sm:$0xff]
        %v252 = vld [vmem:[%s195 + $0x50] sm:$0xff]
        %v253 = vld [vmem:[%s195 + $0x58] sm:$0xff]
        %v254 = vld [vmem:[%s195 + $0x60] sm:$0xff]
        %v255 = vld [vmem:[%s195 + $0x68] sm:$0xff]
        %v256 = vld [vmem:[%s195 + $0x70] sm:$0xff]
        %v257 = vld [vmem:[%s195 + $0x78] sm:$0xff]
        %v258 = vld [vmem:[%s195 + $0x80] sm:$0xff]
        %v259 = vld [vmem:[%s195 + $0x88] sm:$0xff]
        %v260 = vld [vmem:[%s195 + $0x90] sm:$0xff]
        %v261 = vld [vmem:[%s195 + $0x98] sm:$0xff]
        %v262 = vld [vmem:[%s195 + $0xa0] sm:$0xff]
        %v263 = vld [vmem:[%s195 + $0xa8] sm:$0xff]
        %v264 = vld [vmem:[%s195 + $0xb0] sm:$0xff]
        %v265 = vld [vmem:[%s195 + $0xb8] sm:$0xff]
        %v266 = vld [vmem:[%s195 + $0xc0] sm:$0xff]
        %v267 = vld [vmem:[%s195 + $0xc8] sm:$0xff]
        %v268 = vld [vmem:[%s195 + $0xd0] sm:$0xff]
        %v269 = vld [vmem:[%s195 + $0xd8] sm:$0xff]
        %v270 = vld [vmem:[%s195 + $0xe0] sm:$0xff]
        %v271 = vld [vmem:[%s195 + $0xe8] sm:$0xff]
        %v272 = vld [vmem:[%s195 + $0xf0] sm:$0xff]
        %v273 = vld [vmem:[%s195 + $0xf8] sm:$0xff]
        %s274 = scalar_lea.vmem [#allocation2], 24
        %275 = vst.msk [vmem:[%s274 + $0x1] sm:$0xff] %vm196, %v242
        %276 = vst.msk [vmem:[%s274 + $0x9] sm:$0xff] %vm196, %v243
        %277 = vst.msk [vmem:[%s274 + $0x19] sm:$0xff] %vm196, %v244
        %278 = vst.msk [vmem:[%s274 + $0x21] sm:$0xff] %vm196, %v245
        %279 = vst.msk [vmem:[%s274 + $0x31] sm:$0xff] %vm196, %v246
        %280 = vst.msk [vmem:[%s274 + $0x39] sm:$0xff] %vm196, %v247
        %281 = vst.msk [vmem:[%s274 + $0x49] sm:$0xff] %vm196, %v248
        %282 = vst.msk [vmem:[%s274 + $0x51] sm:$0xff] %vm196, %v249
        %283 = vst.msk [vmem:[%s274 + $0x61] sm:$0xff] %vm196, %v250
        %284 = vst.msk [vmem:[%s274 + $0x69] sm:$0xff] %vm196, %v251
        %285 = vst.msk [vmem:[%s274 + $0x79] sm:$0xff] %vm196, %v252
        %286 = vst.msk [vmem:[%s274 + $0x81] sm:$0xff] %vm196, %v253
        %287 = vst.msk [vmem:[%s274 + $0x91] sm:$0xff] %vm196, %v254
        %288 = vst.msk [vmem:[%s274 + $0x99] sm:$0xff] %vm196, %v255
        %289 = vst.msk [vmem:[%s274 + $0xa9] sm:$0xff] %vm196, %v256
        %290 = vst.msk [vmem:[%s274 + $0xb1] sm:$0xff] %vm196, %v257
        %291 = vst.msk [vmem:[%s274 + $0xc1] sm:$0xff] %vm196, %v258
        %292 = vst.msk [vmem:[%s274 + $0xc9] sm:$0xff] %vm196, %v259
        %293 = vst.msk [vmem:[%s274 + $0xd9] sm:$0xff] %vm196, %v260
        %294 = vst.msk [vmem:[%s274 + $0xe1] sm:$0xff] %vm196, %v261
        %295 = vst.msk [vmem:[%s274 + $0xf1] sm:$0xff] %vm196, %v262
        %296 = vst.msk [vmem:[%s274 + $0xf9] sm:$0xff] %vm196, %v263
        %297 = vst.msk [vmem:[%s274 + $0x109] sm:$0xff] %vm196, %v264
        %298 = vst.msk [vmem:[%s274 + $0x111] sm:$0xff] %vm196, %v265
        %299 = vst.msk [vmem:[%s274 + $0x121] sm:$0xff] %vm196, %v266
        %300 = vst.msk [vmem:[%s274 + $0x129] sm:$0xff] %vm196, %v267
        %301 = vst.msk [vmem:[%s274 + $0x139] sm:$0xff] %vm196, %v268
        %302 = vst.msk [vmem:[%s274 + $0x141] sm:$0xff] %vm196, %v269
        %303 = vst.msk [vmem:[%s274 + $0x151] sm:$0xff] %vm196, %v270
        %304 = vst.msk [vmem:[%s274 + $0x159] sm:$0xff] %vm196, %v271
        %305 = vst.msk [vmem:[%s274 + $0x169] sm:$0xff] %vm196, %v272
        %306 = vst.msk [vmem:[%s274 + $0x171] sm:$0xff] %vm196, %v273
        %v307 = vld [vmem:[#allocation2] sm:$0xff]
        %v308 = vld [vmem:[#allocation2 + $0x8] sm:$0xff]
        %v309 = vld [vmem:[#allocation2 + $0x10] sm:$0x3]
        %v310 = vld [vmem:[#allocation2 + $0x18] sm:$0xff]
        %v311 = vld [vmem:[#allocation2 + $0x20] sm:$0xff]
        %v312 = vld [vmem:[#allocation2 + $0x28] sm:$0x3]
        %v313 = vld [vmem:[#allocation2 + $0x30] sm:$0xff]
        %v314 = vld [vmem:[#allocation2 + $0x38] sm:$0xff]
        %v315 = vld [vmem:[#allocation2 + $0x40] sm:$0x3]
        %v316 = vld [vmem:[#allocation2 + $0x48] sm:$0xff]
        %v317 = vld [vmem:[#allocation2 + $0x50] sm:$0xff]
        %v318 = vld [vmem:[#allocation2 + $0x58] sm:$0x3]
        %v319 = vld [vmem:[#allocation2 + $0x60] sm:$0xff]
        %v320 = vld [vmem:[#allocation2 + $0x68] sm:$0xff]
        %v321 = vld [vmem:[#allocation2 + $0x70] sm:$0x3]
        %v322 = vld [vmem:[#allocation2 + $0x78] sm:$0xff]
        %v323 = vld [vmem:[#allocation2 + $0x80] sm:$0xff]
        %v324 = vld [vmem:[#allocation2 + $0x88] sm:$0x3]
        %v325 = vld [vmem:[#allocation2 + $0x90] sm:$0xff]
        %v326 = vld [vmem:[#allocation2 + $0x98] sm:$0xff]
        %v327 = vld [vmem:[#allocation2 + $0xa0] sm:$0x3]
        %v328 = vld [vmem:[#allocation2 + $0xa8] sm:$0xff]
        %v329 = vld [vmem:[#allocation2 + $0xb0] sm:$0xff]
        %v330 = vld [vmem:[#allocation2 + $0xb8] sm:$0x3]
        %v331 = vld [vmem:[#allocation2 + $0xc0] sm:$0xff]
        %v332 = vld [vmem:[#allocation2 + $0xc8] sm:$0xff]
        %v333 = vld [vmem:[#allocation2 + $0xd0] sm:$0x3]
        %v334 = vld [vmem:[#allocation2 + $0xd8] sm:$0xff]
        %v335 = vld [vmem:[#allocation2 + $0xe0] sm:$0xff]
        %v336 = vld [vmem:[#allocation2 + $0xe8] sm:$0x3]
        %v337 = vld [vmem:[#allocation2 + $0xf0] sm:$0xff]
        %v338 = vld [vmem:[#allocation2 + $0xf8] sm:$0xff]
        %v339 = vld [vmem:[#allocation2 + $0x100] sm:$0x3]
        %v340 = vld [vmem:[#allocation2 + $0x108] sm:$0xff]
        %v341 = vld [vmem:[#allocation2 + $0x110] sm:$0xff]
        %v342 = vld [vmem:[#allocation2 + $0x118] sm:$0x3]
        %v343 = vld [vmem:[#allocation2 + $0x120] sm:$0xff]
        %v344 = vld [vmem:[#allocation2 + $0x128] sm:$0xff]
        %v345 = vld [vmem:[#allocation2 + $0x130] sm:$0x3]
        %v346 = vld [vmem:[#allocation2 + $0x138] sm:$0xff]
        %v347 = vld [vmem:[#allocation2 + $0x140] sm:$0xff]
        %v348 = vld [vmem:[#allocation2 + $0x148] sm:$0x3]
        %v349 = vld [vmem:[#allocation2 + $0x150] sm:$0xff]
        %v350 = vld [vmem:[#allocation2 + $0x158] sm:$0xff]
        %v351 = vld [vmem:[#allocation2 + $0x160] sm:$0x3]
        %v352 = vld [vmem:[#allocation2 + $0x168] sm:$0xff]
        %v353 = vld [vmem:[#allocation2 + $0x170] sm:$0xff]
        %v354 = vld [vmem:[#allocation2 + $0x178] sm:$0x3]
        %v355 = vld [vmem:[#allocation2 + $0x180] sm:$0xff]
        %v356 = vld [vmem:[#allocation2 + $0x188] sm:$0xff]
        %v357 = vld [vmem:[#allocation2 + $0x190] sm:$0x3]
        %v385 = vcombine.high %v307, %v307
        %v387 = vunpack.c.l.s4 1983009808
        %v388 = vunpack.c.0.s8 %v387
        %v389 = vlaneseq
        %v390 = vshrl.u32 %v389, 7
        %v391 = vsub.s32 %v388, %v390
        %v392 = vrot.slane %v307, %v391
        %v394 = vunpack.c.l.s4 1983009808
        %v395 = vunpack.c.0.s8 %v394
        %v396 = vlaneseq
        %v397 = vshrl.u32 %v396, 7
        %v398 = vsub.s32 %v395, %v397
        %v399 = vrot.slane %v385, %v398
        %v400 = vcombine.high %v392, %v392
        %v401 = vcombine.high %v399, %v399
        %v402 = vcombine.high %v308, %v308
        %v404 = vunpack.c.l.s4 1983009808
        %v405 = vunpack.c.0.s8 %v404
        %v406 = vlaneseq
        %v407 = vshrl.u32 %v406, 7
        %v408 = vsub.s32 %v405, %v407
        %v409 = vrot.slane %v308, %v408
        %v411 = vunpack.c.l.s4 1983009808
        %v412 = vunpack.c.0.s8 %v411
        %v413 = vlaneseq
        %v414 = vshrl.u32 %v413, 7
        %v415 = vsub.s32 %v412, %v414
        %v416 = vrot.slane %v402, %v415
        %v417 = vcombine.high %v409, %v409
        %v418 = vcombine.high %v416, %v416
        %v420 = vunpack.c.l.s4 1983009808
        %v421 = vunpack.c.0.s8 %v420
        %v422 = vlaneseq
        %v423 = vshrl.u32 %v422, 7
        %v424 = vsub.s32 %v421, %v423
        %v425 = vrot.slane %v309, %v424
        %v426 = vcombine.high %v313, %v313
        %v428 = vunpack.c.l.s4 1983009808
        %v429 = vunpack.c.0.s8 %v428
        %v430 = vlaneseq
        %v431 = vshrl.u32 %v430, 7
        %v432 = vsub.s32 %v429, %v431
        %v433 = vrot.slane %v313, %v432
        %v435 = vunpack.c.l.s4 1983009808
        %v436 = vunpack.c.0.s8 %v435
        %v437 = vlaneseq
        %v438 = vshrl.u32 %v437, 7
        %v439 = vsub.s32 %v436, %v438
        %v440 = vrot.slane %v426, %v439
        %v441 = vcombine.high %v433, %v433
        %v442 = vcombine.high %v440, %v440
        %v443 = vcombine.high %v314, %v314
        %v445 = vunpack.c.l.s4 1983009808
        %v446 = vunpack.c.0.s8 %v445
        %v447 = vlaneseq
        %v448 = vshrl.u32 %v447, 7
        %v449 = vsub.s32 %v446, %v448
        %v450 = vrot.slane %v314, %v449
        %v452 = vunpack.c.l.s4 1983009808
        %v453 = vunpack.c.0.s8 %v452
        %v454 = vlaneseq
        %v455 = vshrl.u32 %v454, 7
        %v456 = vsub.s32 %v453, %v455
        %v457 = vrot.slane %v443, %v456
        %v458 = vcombine.high %v450, %v450
        %v459 = vcombine.high %v457, %v457
        %v461 = vunpack.c.l.s4 1983009808
        %v462 = vunpack.c.0.s8 %v461
        %v463 = vlaneseq
        %v464 = vshrl.u32 %v463, 7
        %v465 = vsub.s32 %v462, %v464
        %v466 = vrot.slane %v315, %v465
        %v467 = vcombine.high %v319, %v319
        %v469 = vunpack.c.l.s4 1983009808
        %v470 = vunpack.c.0.s8 %v469
        %v471 = vlaneseq
        %v472 = vshrl.u32 %v471, 7
        %v473 = vsub.s32 %v470, %v472
        %v474 = vrot.slane %v319, %v473
        %v476 = vunpack.c.l.s4 1983009808
        %v477 = vunpack.c.0.s8 %v476
        %v478 = vlaneseq
        %v479 = vshrl.u32 %v478, 7
        %v480 = vsub.s32 %v477, %v479
        %v481 = vrot.slane %v467, %v480
        %v482 = vcombine.high %v474, %v474
        %v483 = vcombine.high %v481, %v481
        %v484 = vcombine.high %v320, %v320
        %v486 = vunpack.c.l.s4 1983009808
        %v487 = vunpack.c.0.s8 %v486
        %v488 = vlaneseq
        %v489 = vshrl.u32 %v488, 7
        %v490 = vsub.s32 %v487, %v489
        %v491 = vrot.slane %v320, %v490
        %v493 = vunpack.c.l.s4 1983009808
        %v494 = vunpack.c.0.s8 %v493
        %v495 = vlaneseq
        %v496 = vshrl.u32 %v495, 7
        %v497 = vsub.s32 %v494, %v496
        %v498 = vrot.slane %v484, %v497
        %v499 = vcombine.high %v491, %v491
        %v500 = vcombine.high %v498, %v498
        %v502 = vunpack.c.l.s4 1983009808
        %v503 = vunpack.c.0.s8 %v502
        %v504 = vlaneseq
        %v505 = vshrl.u32 %v504, 7
        %v506 = vsub.s32 %v503, %v505
        %v507 = vrot.slane %v321, %v506
        %v508 = vcombine.high %v325, %v325
        %v510 = vunpack.c.l.s4 1983009808
        %v511 = vunpack.c.0.s8 %v510
        %v512 = vlaneseq
        %v513 = vshrl.u32 %v512, 7
        %v514 = vsub.s32 %v511, %v513
        %v515 = vrot.slane %v325, %v514
        %v517 = vunpack.c.l.s4 1983009808
        %v518 = vunpack.c.0.s8 %v517
        %v519 = vlaneseq
        %v520 = vshrl.u32 %v519, 7
        %v521 = vsub.s32 %v518, %v520
        %v522 = vrot.slane %v508, %v521
        %v523 = vcombine.high %v515, %v515
        %v524 = vcombine.high %v522, %v522
        %v525 = vcombine.high %v326, %v326
        %v527 = vunpack.c.l.s4 1983009808
        %v528 = vunpack.c.0.s8 %v527
        %v529 = vlaneseq
        %v530 = vshrl.u32 %v529, 7
        %v531 = vsub.s32 %v528, %v530
        %v532 = vrot.slane %v326, %v531
        %v534 = vunpack.c.l.s4 1983009808
        %v535 = vunpack.c.0.s8 %v534
        %v536 = vlaneseq
        %v537 = vshrl.u32 %v536, 7
        %v538 = vsub.s32 %v535, %v537
        %v539 = vrot.slane %v525, %v538
        %v540 = vcombine.high %v532, %v532
        %v541 = vcombine.high %v539, %v539
        %v543 = vunpack.c.l.s4 1983009808
        %v544 = vunpack.c.0.s8 %v543
        %v545 = vlaneseq
        %v546 = vshrl.u32 %v545, 7
        %v547 = vsub.s32 %v544, %v546
        %v548 = vrot.slane %v327, %v547
        %v549 = vcombine.high %v331, %v331
        %v551 = vunpack.c.l.s4 1983009808
        %v552 = vunpack.c.0.s8 %v551
        %v553 = vlaneseq
        %v554 = vshrl.u32 %v553, 7
        %v555 = vsub.s32 %v552, %v554
        %v556 = vrot.slane %v331, %v555
        %v558 = vunpack.c.l.s4 1983009808
        %v559 = vunpack.c.0.s8 %v558
        %v560 = vlaneseq
        %v561 = vshrl.u32 %v560, 7
        %v562 = vsub.s32 %v559, %v561
        %v563 = vrot.slane %v549, %v562
        %v564 = vcombine.high %v556, %v556
        %v565 = vcombine.high %v563, %v563
        %v566 = vcombine.high %v332, %v332
        %v568 = vunpack.c.l.s4 1983009808
        %v569 = vunpack.c.0.s8 %v568
        %v570 = vlaneseq
        %v571 = vshrl.u32 %v570, 7
        %v572 = vsub.s32 %v569, %v571
        %v573 = vrot.slane %v332, %v572
        %v575 = vunpack.c.l.s4 1983009808
        %v576 = vunpack.c.0.s8 %v575
        %v577 = vlaneseq
        %v578 = vshrl.u32 %v577, 7
        %v579 = vsub.s32 %v576, %v578
        %v580 = vrot.slane %v566, %v579
        %v581 = vcombine.high %v573, %v573
        %v582 = vcombine.high %v580, %v580
        %v584 = vunpack.c.l.s4 1983009808
        %v585 = vunpack.c.0.s8 %v584
        %v586 = vlaneseq
        %v587 = vshrl.u32 %v586, 7
        %v588 = vsub.s32 %v585, %v587
        %v589 = vrot.slane %v333, %v588
        %v590 = vcombine.high %v337, %v337
        %v592 = vunpack.c.l.s4 1983009808
        %v593 = vunpack.c.0.s8 %v592
        %v594 = vlaneseq
        %v595 = vshrl.u32 %v594, 7
        %v596 = vsub.s32 %v593, %v595
        %v597 = vrot.slane %v337, %v596
        %v599 = vunpack.c.l.s4 1983009808
        %v600 = vunpack.c.0.s8 %v599
        %v601 = vlaneseq
        %v602 = vshrl.u32 %v601, 7
        %v603 = vsub.s32 %v600, %v602
        %v604 = vrot.slane %v590, %v603
        %v605 = vcombine.high %v597, %v597
        %v606 = vcombine.high %v604, %v604
        %v607 = vcombine.high %v338, %v338
        %v609 = vunpack.c.l.s4 1983009808
        %v610 = vunpack.c.0.s8 %v609
        %v611 = vlaneseq
        %v612 = vshrl.u32 %v611, 7
        %v613 = vsub.s32 %v610, %v612
        %v614 = vrot.slane %v338, %v613
        %v616 = vunpack.c.l.s4 1983009808
        %v617 = vunpack.c.0.s8 %v616
        %v618 = vlaneseq
        %v619 = vshrl.u32 %v618, 7
        %v620 = vsub.s32 %v617, %v619
        %v621 = vrot.slane %v607, %v620
        %v622 = vcombine.high %v614, %v614
        %v623 = vcombine.high %v621, %v621
        %v625 = vunpack.c.l.s4 1983009808
        %v626 = vunpack.c.0.s8 %v625
        %v627 = vlaneseq
        %v628 = vshrl.u32 %v627, 7
        %v629 = vsub.s32 %v626, %v628
        %v630 = vrot.slane %v339, %v629
        %v631 = vcombine.high %v343, %v343
        %v633 = vunpack.c.l.s4 1983009808
        %v634 = vunpack.c.0.s8 %v633
        %v635 = vlaneseq
        %v636 = vshrl.u32 %v635, 7
        %v637 = vsub.s32 %v634, %v636
        %v638 = vrot.slane %v343, %v637
        %v640 = vunpack.c.l.s4 1983009808
        %v641 = vunpack.c.0.s8 %v640
        %v642 = vlaneseq
        %v643 = vshrl.u32 %v642, 7
        %v644 = vsub.s32 %v641, %v643
        %v645 = vrot.slane %v631, %v644
        %v646 = vcombine.high %v638, %v638
        %v647 = vcombine.high %v645, %v645
        %v648 = vcombine.high %v344, %v344
        %v650 = vunpack.c.l.s4 1983009808
        %v651 = vunpack.c.0.s8 %v650
        %v652 = vlaneseq
        %v653 = vshrl.u32 %v652, 7
        %v654 = vsub.s32 %v651, %v653
        %v655 = vrot.slane %v344, %v654
        %v657 = vunpack.c.l.s4 1983009808
        %v658 = vunpack.c.0.s8 %v657
        %v659 = vlaneseq
        %v660 = vshrl.u32 %v659, 7
        %v661 = vsub.s32 %v658, %v660
        %v662 = vrot.slane %v648, %v661
        %v663 = vcombine.high %v655, %v655
        %v664 = vcombine.high %v662, %v662
        %v666 = vunpack.c.l.s4 1983009808
        %v667 = vunpack.c.0.s8 %v666
        %v668 = vlaneseq
        %v669 = vshrl.u32 %v668, 7
        %v670 = vsub.s32 %v667, %v669
        %v671 = vrot.slane %v345, %v670
        %v672 = vcombine.high %v349, %v349
        %v674 = vunpack.c.l.s4 1983009808
        %v675 = vunpack.c.0.s8 %v674
        %v676 = vlaneseq
        %v677 = vshrl.u32 %v676, 7
        %v678 = vsub.s32 %v675, %v677
        %v679 = vrot.slane %v349, %v678
        %v681 = vunpack.c.l.s4 1983009808
        %v682 = vunpack.c.0.s8 %v681
        %v683 = vlaneseq
        %v684 = vshrl.u32 %v683, 7
        %v685 = vsub.s32 %v682, %v684
        %v686 = vrot.slane %v672, %v685
        %v687 = vcombine.high %v679, %v679
        %v688 = vcombine.high %v686, %v686
        %v689 = vcombine.high %v350, %v350
        %v691 = vunpack.c.l.s4 1983009808
        %v692 = vunpack.c.0.s8 %v691
        %v693 = vlaneseq
        %v694 = vshrl.u32 %v693, 7
        %v695 = vsub.s32 %v692, %v694
        %v696 = vrot.slane %v350, %v695
        %v698 = vunpack.c.l.s4 1983009808
        %v699 = vunpack.c.0.s8 %v698
        %v700 = vlaneseq
        %v701 = vshrl.u32 %v700, 7
        %v702 = vsub.s32 %v699, %v701
        %v703 = vrot.slane %v689, %v702
        %v704 = vcombine.high %v696, %v696
        %v705 = vcombine.high %v703, %v703
        %v707 = vunpack.c.l.s4 1983009808
        %v708 = vunpack.c.0.s8 %v707
        %v709 = vlaneseq
        %v710 = vshrl.u32 %v709, 7
        %v711 = vsub.s32 %v708, %v710
        %v712 = vrot.slane %v351, %v711
        %v713 = vcombine.high %v355, %v355
        %v715 = vunpack.c.l.s4 1983009808
        %v716 = vunpack.c.0.s8 %v715
        %v717 = vlaneseq
        %v718 = vshrl.u32 %v717, 7
        %v719 = vsub.s32 %v716, %v718
        %v720 = vrot.slane %v355, %v719
        %v722 = vunpack.c.l.s4 1983009808
        %v723 = vunpack.c.0.s8 %v722
        %v724 = vlaneseq
        %v725 = vshrl.u32 %v724, 7
        %v726 = vsub.s32 %v723, %v725
        %v727 = vrot.slane %v713, %v726
        %v728 = vcombine.high %v720, %v720
        %v729 = vcombine.high %v727, %v727
        %v730 = vcombine.high %v356, %v356
        %v732 = vunpack.c.l.s4 1983009808
        %v733 = vunpack.c.0.s8 %v732
        %v734 = vlaneseq
        %v735 = vshrl.u32 %v734, 7
        %v736 = vsub.s32 %v733, %v735
        %v737 = vrot.slane %v356, %v736
        %v739 = vunpack.c.l.s4 1983009808
        %v740 = vunpack.c.0.s8 %v739
        %v741 = vlaneseq
        %v742 = vshrl.u32 %v741, 7
        %v743 = vsub.s32 %v740, %v742
        %v744 = vrot.slane %v730, %v743
        %v745 = vcombine.high %v737, %v737
        %v746 = vcombine.high %v744, %v744
        %v748 = vunpack.c.l.s4 1983009808
        %v749 = vunpack.c.0.s8 %v748
        %v750 = vlaneseq
        %v751 = vshrl.u32 %v750, 7
        %v752 = vsub.s32 %v749, %v751
        %v753 = vrot.slane %v357, %v752
        %v842 = vcombine.high %v310, %v310
        %v844 = vunpack.c.l.s4 1983009808
        %v845 = vunpack.c.0.s8 %v844
        %v846 = vlaneseq
        %v847 = vshrl.u32 %v846, 7
        %v848 = vsub.s32 %v845, %v847
        %v849 = vrot.slane %v310, %v848
        %v851 = vunpack.c.l.s4 1983009808
        %v852 = vunpack.c.0.s8 %v851
        %v853 = vlaneseq
        %v854 = vshrl.u32 %v853, 7
        %v855 = vsub.s32 %v852, %v854
        %v856 = vrot.slane %v842, %v855
        %v857 = vcombine.high %v849, %v849
        %v858 = vcombine.high %v856, %v856
        %v859 = vcombine.high %v311, %v311
        %v861 = vunpack.c.l.s4 1983009808
        %v862 = vunpack.c.0.s8 %v861
        %v863 = vlaneseq
        %v864 = vshrl.u32 %v863, 7
        %v865 = vsub.s32 %v862, %v864
        %v866 = vrot.slane %v311, %v865
        %v868 = vunpack.c.l.s4 1983009808
        %v869 = vunpack.c.0.s8 %v868
        %v870 = vlaneseq
        %v871 = vshrl.u32 %v870, 7
        %v872 = vsub.s32 %v869, %v871
        %v873 = vrot.slane %v859, %v872
        %v874 = vcombine.high %v866, %v866
        %v875 = vcombine.high %v873, %v873
        %v877 = vunpack.c.l.s4 1983009808
        %v878 = vunpack.c.0.s8 %v877
        %v879 = vlaneseq
        %v880 = vshrl.u32 %v879, 7
        %v881 = vsub.s32 %v878, %v880
        %v882 = vrot.slane %v312, %v881
        %v883 = vcombine.high %v316, %v316
        %v885 = vunpack.c.l.s4 1983009808
        %v886 = vunpack.c.0.s8 %v885
        %v887 = vlaneseq
        %v888 = vshrl.u32 %v887, 7
        %v889 = vsub.s32 %v886, %v888
        %v890 = vrot.slane %v316, %v889
        %v892 = vunpack.c.l.s4 1983009808
        %v893 = vunpack.c.0.s8 %v892
        %v894 = vlaneseq
        %v895 = vshrl.u32 %v894, 7
        %v896 = vsub.s32 %v893, %v895
        %v897 = vrot.slane %v883, %v896
        %v898 = vcombine.high %v890, %v890
        %v899 = vcombine.high %v897, %v897
        %v900 = vcombine.high %v317, %v317
        %v902 = vunpack.c.l.s4 1983009808
        %v903 = vunpack.c.0.s8 %v902
        %v904 = vlaneseq
        %v905 = vshrl.u32 %v904, 7
        %v906 = vsub.s32 %v903, %v905
        %v907 = vrot.slane %v317, %v906
        %v909 = vunpack.c.l.s4 1983009808
        %v910 = vunpack.c.0.s8 %v909
        %v911 = vlaneseq
        %v912 = vshrl.u32 %v911, 7
        %v913 = vsub.s32 %v910, %v912
        %v914 = vrot.slane %v900, %v913
        %v915 = vcombine.high %v907, %v907
        %v916 = vcombine.high %v914, %v914
        %v918 = vunpack.c.l.s4 1983009808
        %v919 = vunpack.c.0.s8 %v918
        %v920 = vlaneseq
        %v921 = vshrl.u32 %v920, 7
        %v922 = vsub.s32 %v919, %v921
        %v923 = vrot.slane %v318, %v922
        %v924 = vcombine.high %v322, %v322
        %v926 = vunpack.c.l.s4 1983009808
        %v927 = vunpack.c.0.s8 %v926
        %v928 = vlaneseq
        %v929 = vshrl.u32 %v928, 7
        %v930 = vsub.s32 %v927, %v929
        %v931 = vrot.slane %v322, %v930
        %v933 = vunpack.c.l.s4 1983009808
        %v934 = vunpack.c.0.s8 %v933
        %v935 = vlaneseq
        %v936 = vshrl.u32 %v935, 7
        %v937 = vsub.s32 %v934, %v936
        %v938 = vrot.slane %v924, %v937
        %v939 = vcombine.high %v931, %v931
        %v940 = vcombine.high %v938, %v938
        %v941 = vcombine.high %v323, %v323
        %v943 = vunpack.c.l.s4 1983009808
        %v944 = vunpack.c.0.s8 %v943
        %v945 = vlaneseq
        %v946 = vshrl.u32 %v945, 7
        %v947 = vsub.s32 %v944, %v946
        %v948 = vrot.slane %v323, %v947
        %v950 = vunpack.c.l.s4 1983009808
        %v951 = vunpack.c.0.s8 %v950
        %v952 = vlaneseq
        %v953 = vshrl.u32 %v952, 7
        %v954 = vsub.s32 %v951, %v953
        %v955 = vrot.slane %v941, %v954
        %v956 = vcombine.high %v948, %v948
        %v957 = vcombine.high %v955, %v955
        %v959 = vunpack.c.l.s4 1983009808
        %v960 = vunpack.c.0.s8 %v959
        %v961 = vlaneseq
        %v962 = vshrl.u32 %v961, 7
        %v963 = vsub.s32 %v960, %v962
        %v964 = vrot.slane %v324, %v963
        %v965 = vcombine.high %v328, %v328
        %v967 = vunpack.c.l.s4 1983009808
        %v968 = vunpack.c.0.s8 %v967
        %v969 = vlaneseq
        %v970 = vshrl.u32 %v969, 7
        %v971 = vsub.s32 %v968, %v970
        %v972 = vrot.slane %v328, %v971
        %v974 = vunpack.c.l.s4 1983009808
        %v975 = vunpack.c.0.s8 %v974
        %v976 = vlaneseq
        %v977 = vshrl.u32 %v976, 7
        %v978 = vsub.s32 %v975, %v977
        %v979 = vrot.slane %v965, %v978
        %v980 = vcombine.high %v972, %v972
        %v981 = vcombine.high %v979, %v979
        %v982 = vcombine.high %v329, %v329
        %v984 = vunpack.c.l.s4 1983009808
        %v985 = vunpack.c.0.s8 %v984
        %v986 = vlaneseq
        %v987 = vshrl.u32 %v986, 7
        %v988 = vsub.s32 %v985, %v987
        %v989 = vrot.slane %v329, %v988
        %v991 = vunpack.c.l.s4 1983009808
        %v992 = vunpack.c.0.s8 %v991
        %v993 = vlaneseq
        %v994 = vshrl.u32 %v993, 7
        %v995 = vsub.s32 %v992, %v994
        %v996 = vrot.slane %v982, %v995
        %v997 = vcombine.high %v989, %v989
        %v998 = vcombine.high %v996, %v996
        %v1000 = vunpack.c.l.s4 1983009808
        %v1001 = vunpack.c.0.s8 %v1000
        %v1002 = vlaneseq
        %v1003 = vshrl.u32 %v1002, 7
        %v1004 = vsub.s32 %v1001, %v1003
        %v1005 = vrot.slane %v330, %v1004
        %v1006 = vcombine.high %v334, %v334
        %v1008 = vunpack.c.l.s4 1983009808
        %v1009 = vunpack.c.0.s8 %v1008
        %v1010 = vlaneseq
        %v1011 = vshrl.u32 %v1010, 7
        %v1012 = vsub.s32 %v1009, %v1011
        %v1013 = vrot.slane %v334, %v1012
        %v1015 = vunpack.c.l.s4 1983009808
        %v1016 = vunpack.c.0.s8 %v1015
        %v1017 = vlaneseq
        %v1018 = vshrl.u32 %v1017, 7
        %v1019 = vsub.s32 %v1016, %v1018
        %v1020 = vrot.slane %v1006, %v1019
        %v1021 = vcombine.high %v1013, %v1013
        %v1022 = vcombine.high %v1020, %v1020
        %v1023 = vcombine.high %v335, %v335
        %v1025 = vunpack.c.l.s4 1983009808
        %v1026 = vunpack.c.0.s8 %v1025
        %v1027 = vlaneseq
        %v1028 = vshrl.u32 %v1027, 7
        %v1029 = vsub.s32 %v1026, %v1028
        %v1030 = vrot.slane %v335, %v1029
        %v1032 = vunpack.c.l.s4 1983009808
        %v1033 = vunpack.c.0.s8 %v1032
        %v1034 = vlaneseq
        %v1035 = vshrl.u32 %v1034, 7
        %v1036 = vsub.s32 %v1033, %v1035
        %v1037 = vrot.slane %v1023, %v1036
        %v1038 = vcombine.high %v1030, %v1030
        %v1039 = vcombine.high %v1037, %v1037
        %v1041 = vunpack.c.l.s4 1983009808
        %v1042 = vunpack.c.0.s8 %v1041
        %v1043 = vlaneseq
        %v1044 = vshrl.u32 %v1043, 7
        %v1045 = vsub.s32 %v1042, %v1044
        %v1046 = vrot.slane %v336, %v1045
        %v1047 = vcombine.high %v340, %v340
        %v1049 = vunpack.c.l.s4 1983009808
        %v1050 = vunpack.c.0.s8 %v1049
        %v1051 = vlaneseq
        %v1052 = vshrl.u32 %v1051, 7
        %v1053 = vsub.s32 %v1050, %v1052
        %v1054 = vrot.slane %v340, %v1053
        %v1056 = vunpack.c.l.s4 1983009808
        %v1057 = vunpack.c.0.s8 %v1056
        %v1058 = vlaneseq
        %v1059 = vshrl.u32 %v1058, 7
        %v1060 = vsub.s32 %v1057, %v1059
        %v1061 = vrot.slane %v1047, %v1060
        %v1062 = vcombine.high %v1054, %v1054
        %v1063 = vcombine.high %v1061, %v1061
        %v1064 = vcombine.high %v341, %v341
        %v1066 = vunpack.c.l.s4 1983009808
        %v1067 = vunpack.c.0.s8 %v1066
        %v1068 = vlaneseq
        %v1069 = vshrl.u32 %v1068, 7
        %v1070 = vsub.s32 %v1067, %v1069
        %v1071 = vrot.slane %v341, %v1070
        %v1073 = vunpack.c.l.s4 1983009808
        %v1074 = vunpack.c.0.s8 %v1073
        %v1075 = vlaneseq
        %v1076 = vshrl.u32 %v1075, 7
        %v1077 = vsub.s32 %v1074, %v1076
        %v1078 = vrot.slane %v1064, %v1077
        %v1079 = vcombine.high %v1071, %v1071
        %v1080 = vcombine.high %v1078, %v1078
        %v1082 = vunpack.c.l.s4 1983009808
        %v1083 = vunpack.c.0.s8 %v1082
        %v1084 = vlaneseq
        %v1085 = vshrl.u32 %v1084, 7
        %v1086 = vsub.s32 %v1083, %v1085
        %v1087 = vrot.slane %v342, %v1086
        %v1088 = vcombine.high %v346, %v346
        %v1090 = vunpack.c.l.s4 1983009808
        %v1091 = vunpack.c.0.s8 %v1090
        %v1092 = vlaneseq
        %v1093 = vshrl.u32 %v1092, 7
        %v1094 = vsub.s32 %v1091, %v1093
        %v1095 = vrot.slane %v346, %v1094
        %v1097 = vunpack.c.l.s4 1983009808
        %v1098 = vunpack.c.0.s8 %v1097
        %v1099 = vlaneseq
        %v1100 = vshrl.u32 %v1099, 7
        %v1101 = vsub.s32 %v1098, %v1100
        %v1102 = vrot.slane %v1088, %v1101
        %v1103 = vcombine.high %v1095, %v1095
        %v1104 = vcombine.high %v1102, %v1102
        %v1105 = vcombine.high %v347, %v347
        %v1107 = vunpack.c.l.s4 1983009808
        %v1108 = vunpack.c.0.s8 %v1107
        %v1109 = vlaneseq
        %v1110 = vshrl.u32 %v1109, 7
        %v1111 = vsub.s32 %v1108, %v1110
        %v1112 = vrot.slane %v347, %v1111
        %v1114 = vunpack.c.l.s4 1983009808
        %v1115 = vunpack.c.0.s8 %v1114
        %v1116 = vlaneseq
        %v1117 = vshrl.u32 %v1116, 7
        %v1118 = vsub.s32 %v1115, %v1117
        %v1119 = vrot.slane %v1105, %v1118
        %v1120 = vcombine.high %v1112, %v1112
        %v1121 = vcombine.high %v1119, %v1119
        %v1123 = vunpack.c.l.s4 1983009808
        %v1124 = vunpack.c.0.s8 %v1123
        %v1125 = vlaneseq
        %v1126 = vshrl.u32 %v1125, 7
        %v1127 = vsub.s32 %v1124, %v1126
        %v1128 = vrot.slane %v348, %v1127
        %v1129 = vcombine.high %v352, %v352
        %v1131 = vunpack.c.l.s4 1983009808
        %v1132 = vunpack.c.0.s8 %v1131
        %v1133 = vlaneseq
        %v1134 = vshrl.u32 %v1133, 7
        %v1135 = vsub.s32 %v1132, %v1134
        %v1136 = vrot.slane %v352, %v1135
        %v1138 = vunpack.c.l.s4 1983009808
        %v1139 = vunpack.c.0.s8 %v1138
        %v1140 = vlaneseq
        %v1141 = vshrl.u32 %v1140, 7
        %v1142 = vsub.s32 %v1139, %v1141
        %v1143 = vrot.slane %v1129, %v1142
        %v1144 = vcombine.high %v1136, %v1136
        %v1145 = vcombine.high %v1143, %v1143
        %v1146 = vcombine.high %v353, %v353
        %v1148 = vunpack.c.l.s4 1983009808
        %v1149 = vunpack.c.0.s8 %v1148
        %v1150 = vlaneseq
        %v1151 = vshrl.u32 %v1150, 7
        %v1152 = vsub.s32 %v1149, %v1151
        %v1153 = vrot.slane %v353, %v1152
        %v1155 = vunpack.c.l.s4 1983009808
        %v1156 = vunpack.c.0.s8 %v1155
        %v1157 = vlaneseq
        %v1158 = vshrl.u32 %v1157, 7
        %v1159 = vsub.s32 %v1156, %v1158
        %v1160 = vrot.slane %v1146, %v1159
        %v1161 = vcombine.high %v1153, %v1153
        %v1162 = vcombine.high %v1160, %v1160
        %v1164 = vunpack.c.l.s4 1983009808
        %v1165 = vunpack.c.0.s8 %v1164
        %v1166 = vlaneseq
        %v1167 = vshrl.u32 %v1166, 7
        %v1168 = vsub.s32 %v1165, %v1167
        %v1169 = vrot.slane %v354, %v1168
        %v1234 = vrot.slane %v857, 7
        %v1235 = vrot.slane %v856, 7
        %v1236 = vrot.slane %v858, 7
        %v1237 = vrot.slane %v866, 7
        %v1238 = vrot.slane %v874, 7
        %v1239 = vrot.slane %v873, 7
        %v1240 = vrot.slane %v875, 7
        %v1241 = vrot.slane %v882, 7
        %v1242 = vrot.slane %v898, 7
        %v1243 = vrot.slane %v897, 7
        %v1244 = vrot.slane %v899, 7
        %v1245 = vrot.slane %v907, 7
        %v1246 = vrot.slane %v915, 7
        %v1247 = vrot.slane %v914, 7
        %v1248 = vrot.slane %v916, 7
        %v1249 = vrot.slane %v923, 7
        %v1250 = vrot.slane %v939, 7
        %v1251 = vrot.slane %v938, 7
        %v1252 = vrot.slane %v940, 7
        %v1253 = vrot.slane %v948, 7
        %v1254 = vrot.slane %v956, 7
        %v1255 = vrot.slane %v955, 7
        %v1256 = vrot.slane %v957, 7
        %v1257 = vrot.slane %v964, 7
        %v1258 = vrot.slane %v980, 7
        %v1259 = vrot.slane %v979, 7
        %v1260 = vrot.slane %v981, 7
        %v1261 = vrot.slane %v989, 7
        %v1262 = vrot.slane %v997, 7
        %v1263 = vrot.slane %v996, 7
        %v1264 = vrot.slane %v998, 7
        %v1265 = vrot.slane %v1005, 7
        %v1266 = vrot.slane %v1021, 7
        %v1267 = vrot.slane %v1020, 7
        %v1268 = vrot.slane %v1022, 7
        %v1269 = vrot.slane %v1030, 7
        %v1270 = vrot.slane %v1038, 7
        %v1271 = vrot.slane %v1037, 7
        %v1272 = vrot.slane %v1039, 7
        %v1273 = vrot.slane %v1046, 7
        %v1274 = vrot.slane %v1062, 7
        %v1275 = vrot.slane %v1061, 7
        %v1276 = vrot.slane %v1063, 7
        %v1277 = vrot.slane %v1071, 7
        %v1278 = vrot.slane %v1079, 7
        %v1279 = vrot.slane %v1078, 7
        %v1280 = vrot.slane %v1080, 7
        %v1281 = vrot.slane %v1087, 7
        %v1282 = vrot.slane %v1103, 7
        %v1283 = vrot.slane %v1102, 7
        %v1284 = vrot.slane %v1104, 7
        %v1285 = vrot.slane %v1112, 7
        %v1286 = vrot.slane %v1120, 7
        %v1287 = vrot.slane %v1119, 7
        %v1288 = vrot.slane %v1121, 7
        %v1289 = vrot.slane %v1128, 7
        %v1290 = vrot.slane %v1144, 7
        %v1291 = vrot.slane %v1143, 7
        %v1292 = vrot.slane %v1145, 7
        %v1293 = vrot.slane %v1153, 7
        %v1294 = vrot.slane %v1161, 7
        %v1295 = vrot.slane %v1160, 7
        %v1296 = vrot.slane %v1162, 7
        %v1297 = vrot.slane %v1169, 7
        %v1362 = vmax.f32 %v849, %v1234
        %v1363 = vmax.f32 %v857, %v1235
        %v1364 = vmax.f32 %v856, %v1236
        %v1365 = vmax.f32 %v858, %v1237
        %v1366 = vmax.f32 %v866, %v1238
        %v1367 = vmax.f32 %v874, %v1239
        %v1368 = vmax.f32 %v873, %v1240
        %v1369 = vmax.f32 %v875, %v1241
        %v1370 = vmax.f32 %v890, %v1242
        %v1371 = vmax.f32 %v898, %v1243
        %v1372 = vmax.f32 %v897, %v1244
        %v1373 = vmax.f32 %v899, %v1245
        %v1374 = vmax.f32 %v907, %v1246
        %v1375 = vmax.f32 %v915, %v1247
        %v1376 = vmax.f32 %v914, %v1248
        %v1377 = vmax.f32 %v916, %v1249
        %v1378 = vmax.f32 %v931, %v1250
        %v1379 = vmax.f32 %v939, %v1251
        %v1380 = vmax.f32 %v938, %v1252
        %v1381 = vmax.f32 %v940, %v1253
        %v1382 = vmax.f32 %v948, %v1254
        %v1383 = vmax.f32 %v956, %v1255
        %v1384 = vmax.f32 %v955, %v1256
        %v1385 = vmax.f32 %v957, %v1257
        %v1386 = vmax.f32 %v972, %v1258
        %v1387 = vmax.f32 %v980, %v1259
        %v1388 = vmax.f32 %v979, %v1260
        %v1389 = vmax.f32 %v981, %v1261
        %v1390 = vmax.f32 %v989, %v1262
        %v1391 = vmax.f32 %v997, %v1263
        %v1392 = vmax.f32 %v996, %v1264
        %v1393 = vmax.f32 %v998, %v1265
        %v1394 = vmax.f32 %v1013, %v1266
        %v1395 = vmax.f32 %v1021, %v1267
        %v1396 = vmax.f32 %v1020, %v1268
        %v1397 = vmax.f32 %v1022, %v1269
        %v1398 = vmax.f32 %v1030, %v1270
        %v1399 = vmax.f32 %v1038, %v1271
        %v1400 = vmax.f32 %v1037, %v1272
        %v1401 = vmax.f32 %v1039, %v1273
        %v1402 = vmax.f32 %v1054, %v1274
        %v1403 = vmax.f32 %v1062, %v1275
        %v1404 = vmax.f32 %v1061, %v1276
        %v1405 = vmax.f32 %v1063, %v1277
        %v1406 = vmax.f32 %v1071, %v1278
        %v1407 = vmax.f32 %v1079, %v1279
        %v1408 = vmax.f32 %v1078, %v1280
        %v1409 = vmax.f32 %v1080, %v1281
        %v1410 = vmax.f32 %v1095, %v1282
        %v1411 = vmax.f32 %v1103, %v1283
        %v1412 = vmax.f32 %v1102, %v1284
        %v1413 = vmax.f32 %v1104, %v1285
        %v1414 = vmax.f32 %v1112, %v1286
        %v1415 = vmax.f32 %v1120, %v1287
        %v1416 = vmax.f32 %v1119, %v1288
        %v1417 = vmax.f32 %v1121, %v1289
        %v1418 = vmax.f32 %v1136, %v1290
        %v1419 = vmax.f32 %v1144, %v1291
        %v1420 = vmax.f32 %v1143, %v1292
        %v1421 = vmax.f32 %v1145, %v1293
        %v1422 = vmax.f32 %v1153, %v1294
        %v1423 = vmax.f32 %v1161, %v1295
        %v1424 = vmax.f32 %v1160, %v1296
        %v1425 = vmax.f32 %v1162, %v1297
        %v1426 = vmax.f32 %v1362, %v433
        %v1427 = vmax.f32 %v1363, %v441
        %v1428 = vmax.f32 %v1364, %v440
        %v1429 = vmax.f32 %v1365, %v442
        %v1430 = vmax.f32 %v1366, %v450
        %v1431 = vmax.f32 %v1367, %v458
        %v1432 = vmax.f32 %v1368, %v457
        %v1433 = vmax.f32 %v1369, %v459
        %v1434 = vmax.f32 %v1370, %v474
        %v1435 = vmax.f32 %v1371, %v482
        %v1436 = vmax.f32 %v1372, %v481
        %v1437 = vmax.f32 %v1373, %v483
        %v1438 = vmax.f32 %v1374, %v491
        %v1439 = vmax.f32 %v1375, %v499
        %v1440 = vmax.f32 %v1376, %v498
        %v1441 = vmax.f32 %v1377, %v500
        %v1442 = vmax.f32 %v1378, %v515
        %v1443 = vmax.f32 %v1379, %v523
        %v1444 = vmax.f32 %v1380, %v522
        %v1445 = vmax.f32 %v1381, %v524
        %v1446 = vmax.f32 %v1382, %v532
        %v1447 = vmax.f32 %v1383, %v540
        %v1448 = vmax.f32 %v1384, %v539
        %v1449 = vmax.f32 %v1385, %v541
        %v1450 = vmax.f32 %v1386, %v556
        %v1451 = vmax.f32 %v1387, %v564
        %v1452 = vmax.f32 %v1388, %v563
        %v1453 = vmax.f32 %v1389, %v565
        %v1454 = vmax.f32 %v1390, %v573
        %v1455 = vmax.f32 %v1391, %v581
        %v1456 = vmax.f32 %v1392, %v580
        %v1457 = vmax.f32 %v1393, %v582
        %v1458 = vmax.f32 %v1394, %v597
        %v1459 = vmax.f32 %v1395, %v605
        %v1460 = vmax.f32 %v1396, %v604
        %v1461 = vmax.f32 %v1397, %v606
        %v1462 = vmax.f32 %v1398, %v614
        %v1463 = vmax.f32 %v1399, %v622
        %v1464 = vmax.f32 %v1400, %v621
        %v1465 = vmax.f32 %v1401, %v623
        %v1466 = vmax.f32 %v1402, %v638
        %v1467 = vmax.f32 %v1403, %v646
        %v1468 = vmax.f32 %v1404, %v645
        %v1469 = vmax.f32 %v1405, %v647
        %v1470 = vmax.f32 %v1406, %v655
        %v1471 = vmax.f32 %v1407, %v663
        %v1472 = vmax.f32 %v1408, %v662
        %v1473 = vmax.f32 %v1409, %v664
        %v1474 = vmax.f32 %v1410, %v679
        %v1475 = vmax.f32 %v1411, %v687
        %v1476 = vmax.f32 %v1412, %v686
        %v1477 = vmax.f32 %v1413, %v688
        %v1478 = vmax.f32 %v1414, %v696
        %v1479 = vmax.f32 %v1415, %v704
        %v1480 = vmax.f32 %v1416, %v703
        %v1481 = vmax.f32 %v1417, %v705
        %v1482 = vmax.f32 %v1418, %v720
        %v1483 = vmax.f32 %v1419, %v728
        %v1484 = vmax.f32 %v1420, %v727
        %v1485 = vmax.f32 %v1421, %v729
        %v1486 = vmax.f32 %v1422, %v737
        %v1487 = vmax.f32 %v1423, %v745
        %v1488 = vmax.f32 %v1424, %v744
        %v1489 = vmax.f32 %v1425, %v746
        %v1490 = vrot.slane %v441, 7
        %v1491 = vrot.slane %v440, 7
        %v1492 = vrot.slane %v442, 7
        %v1493 = vrot.slane %v450, 7
        %v1494 = vrot.slane %v458, 7
        %v1495 = vrot.slane %v457, 7
        %v1496 = vrot.slane %v459, 7
        %v1497 = vrot.slane %v466, 7
        %v1498 = vrot.slane %v482, 7
        %v1499 = vrot.slane %v481, 7
        %v1500 = vrot.slane %v483, 7
        %v1501 = vrot.slane %v491, 7
        %v1502 = vrot.slane %v499, 7
        %v1503 = vrot.slane %v498, 7
        %v1504 = vrot.slane %v500, 7
        %v1505 = vrot.slane %v507, 7
        %v1506 = vrot.slane %v523, 7
        %v1507 = vrot.slane %v522, 7
        %v1508 = vrot.slane %v524, 7
        %v1509 = vrot.slane %v532, 7
        %v1510 = vrot.slane %v540, 7
        %v1511 = vrot.slane %v539, 7
        %v1512 = vrot.slane %v541, 7
        %v1513 = vrot.slane %v548, 7
        %v1514 = vrot.slane %v564, 7
        %v1515 = vrot.slane %v563, 7
        %v1516 = vrot.slane %v565, 7
        %v1517 = vrot.slane %v573, 7
        %v1518 = vrot.slane %v581, 7
        %v1519 = vrot.slane %v580, 7
        %v1520 = vrot.slane %v582, 7
        %v1521 = vrot.slane %v589, 7
        %v1522 = vrot.slane %v605, 7
        %v1523 = vrot.slane %v604, 7
        %v1524 = vrot.slane %v606, 7
        %v1525 = vrot.slane %v614, 7
        %v1526 = vrot.slane %v622, 7
        %v1527 = vrot.slane %v621, 7
        %v1528 = vrot.slane %v623, 7
        %v1529 = vrot.slane %v630, 7
        %v1530 = vrot.slane %v646, 7
        %v1531 = vrot.slane %v645, 7
        %v1532 = vrot.slane %v647, 7
        %v1533 = vrot.slane %v655, 7
        %v1534 = vrot.slane %v663, 7
        %v1535 = vrot.slane %v662, 7
        %v1536 = vrot.slane %v664, 7
        %v1537 = vrot.slane %v671, 7
        %v1538 = vrot.slane %v687, 7
        %v1539 = vrot.slane %v686, 7
        %v1540 = vrot.slane %v688, 7
        %v1541 = vrot.slane %v696, 7
        %v1542 = vrot.slane %v704, 7
        %v1543 = vrot.slane %v703, 7
        %v1544 = vrot.slane %v705, 7
        %v1545 = vrot.slane %v712, 7
        %v1546 = vrot.slane %v728, 7
        %v1547 = vrot.slane %v727, 7
        %v1548 = vrot.slane %v729, 7
        %v1549 = vrot.slane %v737, 7
        %v1550 = vrot.slane %v745, 7
        %v1551 = vrot.slane %v744, 7
        %v1552 = vrot.slane %v746, 7
        %v1553 = vrot.slane %v753, 7
        %v1618 = vmax.f32 %v1426, %v1490
        %v1619 = vmax.f32 %v1427, %v1491
        %v1620 = vmax.f32 %v1428, %v1492
        %v1621 = vmax.f32 %v1429, %v1493
        %v1622 = vmax.f32 %v1430, %v1494
        %v1623 = vmax.f32 %v1431, %v1495
        %v1624 = vmax.f32 %v1432, %v1496
        %v1625 = vmax.f32 %v1433, %v1497
        %v1626 = vmax.f32 %v1434, %v1498
        %v1627 = vmax.f32 %v1435, %v1499
        %v1628 = vmax.f32 %v1436, %v1500
        %v1629 = vmax.f32 %v1437, %v1501
        %v1630 = vmax.f32 %v1438, %v1502
        %v1631 = vmax.f32 %v1439, %v1503
        %v1632 = vmax.f32 %v1440, %v1504
        %v1633 = vmax.f32 %v1441, %v1505
        %v1634 = vmax.f32 %v1442, %v1506
        %v1635 = vmax.f32 %v1443, %v1507
        %v1636 = vmax.f32 %v1444, %v1508
        %v1637 = vmax.f32 %v1445, %v1509
        %v1638 = vmax.f32 %v1446, %v1510
        %v1639 = vmax.f32 %v1447, %v1511
        %v1640 = vmax.f32 %v1448, %v1512
        %v1641 = vmax.f32 %v1449, %v1513
        %v1642 = vmax.f32 %v1450, %v1514
        %v1643 = vmax.f32 %v1451, %v1515
        %v1644 = vmax.f32 %v1452, %v1516
        %v1645 = vmax.f32 %v1453, %v1517
        %v1646 = vmax.f32 %v1454, %v1518
        %v1647 = vmax.f32 %v1455, %v1519
        %v1648 = vmax.f32 %v1456, %v1520
        %v1649 = vmax.f32 %v1457, %v1521
        %v1650 = vmax.f32 %v1458, %v1522
        %v1651 = vmax.f32 %v1459, %v1523
        %v1652 = vmax.f32 %v1460, %v1524
        %v1653 = vmax.f32 %v1461, %v1525
        %v1654 = vmax.f32 %v1462, %v1526
        %v1655 = vmax.f32 %v1463, %v1527
        %v1656 = vmax.f32 %v1464, %v1528
        %v1657 = vmax.f32 %v1465, %v1529
        %v1658 = vmax.f32 %v1466, %v1530
        %v1659 = vmax.f32 %v1467, %v1531
        %v1660 = vmax.f32 %v1468, %v1532
        %v1661 = vmax.f32 %v1469, %v1533
        %v1662 = vmax.f32 %v1470, %v1534
        %v1663 = vmax.f32 %v1471, %v1535
        %v1664 = vmax.f32 %v1472, %v1536
        %v1665 = vmax.f32 %v1473, %v1537
        %v1666 = vmax.f32 %v1474, %v1538
        %v1667 = vmax.f32 %v1475, %v1539
        %v1668 = vmax.f32 %v1476, %v1540
        %v1669 = vmax.f32 %v1477, %v1541
        %v1670 = vmax.f32 %v1478, %v1542
        %v1671 = vmax.f32 %v1479, %v1543
        %v1672 = vmax.f32 %v1480, %v1544
        %v1673 = vmax.f32 %v1481, %v1545
        %v1674 = vmax.f32 %v1482, %v1546
        %v1675 = vmax.f32 %v1483, %v1547
        %v1676 = vmax.f32 %v1484, %v1548
        %v1677 = vmax.f32 %v1485, %v1549
        %v1678 = vmax.f32 %v1486, %v1550
        %v1679 = vmax.f32 %v1487, %v1551
        %v1680 = vmax.f32 %v1488, %v1552
        %v1681 = vmax.f32 %v1489, %v1553
        %v1682 = vlaneseq
        %v1683 = vshrl.u32 %v1682, 7
        %v1684 = vsub.s32 0, %v1683
        %v1685 = vrot.slane %v392, %v1684
        %v1686 = vlaneseq
        %v1687 = vshrl.u32 %v1686, 7
        %v1688 = vsub.s32 0, %v1687
        %v1689 = vrot.slane %v400, %v1688
        %v1690 = vlaneseq
        %v1691 = vshrl.u32 %v1690, 7
        %v1692 = vsub.s32 0, %v1691
        %v1693 = vrot.slane %v399, %v1692
        %v1694 = vlaneseq
        %v1695 = vshrl.u32 %v1694, 7
        %v1696 = vsub.s32 0, %v1695
        %v1697 = vrot.slane %v401, %v1696
        %v1698 = vlaneseq
        %v1699 = vshrl.u32 %v1698, 7
        %v1700 = vsub.s32 0, %v1699
        %v1701 = vrot.slane %v409, %v1700
        %v1702 = vlaneseq
        %v1703 = vshrl.u32 %v1702, 7
        %v1704 = vsub.s32 0, %v1703
        %v1705 = vrot.slane %v417, %v1704
        %v1706 = vlaneseq
        %v1707 = vshrl.u32 %v1706, 7
        %v1708 = vsub.s32 0, %v1707
        %v1709 = vrot.slane %v416, %v1708
        %v1710 = vlaneseq
        %v1711 = vshrl.u32 %v1710, 7
        %v1712 = vsub.s32 0, %v1711
        %v1713 = vrot.slane %v418, %v1712
        %v1714 = vlaneseq
        %v1715 = vshrl.u32 %v1714, 7
        %v1716 = vsub.s32 0, %v1715
        %v1717 = vrot.slane %v433, %v1716
        %v1718 = vlaneseq
        %v1719 = vshrl.u32 %v1718, 7
        %v1720 = vsub.s32 0, %v1719
        %v1721 = vrot.slane %v441, %v1720
        %v1722 = vlaneseq
        %v1723 = vshrl.u32 %v1722, 7
        %v1724 = vsub.s32 0, %v1723
        %v1725 = vrot.slane %v440, %v1724
        %v1726 = vlaneseq
        %v1727 = vshrl.u32 %v1726, 7
        %v1728 = vsub.s32 0, %v1727
        %v1729 = vrot.slane %v442, %v1728
        %v1730 = vlaneseq
        %v1731 = vshrl.u32 %v1730, 7
        %v1732 = vsub.s32 0, %v1731
        %v1733 = vrot.slane %v450, %v1732
        %v1734 = vlaneseq
        %v1735 = vshrl.u32 %v1734, 7
        %v1736 = vsub.s32 0, %v1735
        %v1737 = vrot.slane %v458, %v1736
        %v1738 = vlaneseq
        %v1739 = vshrl.u32 %v1738, 7
        %v1740 = vsub.s32 0, %v1739
        %v1741 = vrot.slane %v457, %v1740
        %v1742 = vlaneseq
        %v1743 = vshrl.u32 %v1742, 7
        %v1744 = vsub.s32 0, %v1743
        %v1745 = vrot.slane %v459, %v1744
        %v1746 = vlaneseq
        %v1747 = vshrl.u32 %v1746, 7
        %v1748 = vsub.s32 0, %v1747
        %v1749 = vrot.slane %v474, %v1748
        %v1750 = vlaneseq
        %v1751 = vshrl.u32 %v1750, 7
        %v1752 = vsub.s32 0, %v1751
        %v1753 = vrot.slane %v482, %v1752
        %v1754 = vlaneseq
        %v1755 = vshrl.u32 %v1754, 7
        %v1756 = vsub.s32 0, %v1755
        %v1757 = vrot.slane %v481, %v1756
        %v1758 = vlaneseq
        %v1759 = vshrl.u32 %v1758, 7
        %v1760 = vsub.s32 0, %v1759
        %v1761 = vrot.slane %v483, %v1760
        %v1762 = vlaneseq
        %v1763 = vshrl.u32 %v1762, 7
        %v1764 = vsub.s32 0, %v1763
        %v1765 = vrot.slane %v491, %v1764
        %v1766 = vlaneseq
        %v1767 = vshrl.u32 %v1766, 7
        %v1768 = vsub.s32 0, %v1767
        %v1769 = vrot.slane %v499, %v1768
        %v1770 = vlaneseq
        %v1771 = vshrl.u32 %v1770, 7
        %v1772 = vsub.s32 0, %v1771
        %v1773 = vrot.slane %v498, %v1772
        %v1774 = vlaneseq
        %v1775 = vshrl.u32 %v1774, 7
        %v1776 = vsub.s32 0, %v1775
        %v1777 = vrot.slane %v500, %v1776
        %v1778 = vlaneseq
        %v1779 = vshrl.u32 %v1778, 7
        %v1780 = vsub.s32 0, %v1779
        %v1781 = vrot.slane %v515, %v1780
        %v1782 = vlaneseq
        %v1783 = vshrl.u32 %v1782, 7
        %v1784 = vsub.s32 0, %v1783
        %v1785 = vrot.slane %v523, %v1784
        %v1786 = vlaneseq
        %v1787 = vshrl.u32 %v1786, 7
        %v1788 = vsub.s32 0, %v1787
        %v1789 = vrot.slane %v522, %v1788
        %v1790 = vlaneseq
        %v1791 = vshrl.u32 %v1790, 7
        %v1792 = vsub.s32 0, %v1791
        %v1793 = vrot.slane %v524, %v1792
        %v1794 = vlaneseq
        %v1795 = vshrl.u32 %v1794, 7
        %v1796 = vsub.s32 0, %v1795
        %v1797 = vrot.slane %v532, %v1796
        %v1798 = vlaneseq
        %v1799 = vshrl.u32 %v1798, 7
        %v1800 = vsub.s32 0, %v1799
        %v1801 = vrot.slane %v540, %v1800
        %v1802 = vlaneseq
        %v1803 = vshrl.u32 %v1802, 7
        %v1804 = vsub.s32 0, %v1803
        %v1805 = vrot.slane %v539, %v1804
        %v1806 = vlaneseq
        %v1807 = vshrl.u32 %v1806, 7
        %v1808 = vsub.s32 0, %v1807
        %v1809 = vrot.slane %v541, %v1808
        %v1810 = vlaneseq
        %v1811 = vshrl.u32 %v1810, 7
        %v1812 = vsub.s32 0, %v1811
        %v1813 = vrot.slane %v556, %v1812
        %v1814 = vlaneseq
        %v1815 = vshrl.u32 %v1814, 7
        %v1816 = vsub.s32 0, %v1815
        %v1817 = vrot.slane %v564, %v1816
        %v1818 = vlaneseq
        %v1819 = vshrl.u32 %v1818, 7
        %v1820 = vsub.s32 0, %v1819
        %v1821 = vrot.slane %v563, %v1820
        %v1822 = vlaneseq
        %v1823 = vshrl.u32 %v1822, 7
        %v1824 = vsub.s32 0, %v1823
        %v1825 = vrot.slane %v565, %v1824
        %v1826 = vlaneseq
        %v1827 = vshrl.u32 %v1826, 7
        %v1828 = vsub.s32 0, %v1827
        %v1829 = vrot.slane %v573, %v1828
        %v1830 = vlaneseq
        %v1831 = vshrl.u32 %v1830, 7
        %v1832 = vsub.s32 0, %v1831
        %v1833 = vrot.slane %v581, %v1832
        %v1834 = vlaneseq
        %v1835 = vshrl.u32 %v1834, 7
        %v1836 = vsub.s32 0, %v1835
        %v1837 = vrot.slane %v580, %v1836
        %v1838 = vlaneseq
        %v1839 = vshrl.u32 %v1838, 7
        %v1840 = vsub.s32 0, %v1839
        %v1841 = vrot.slane %v582, %v1840
        %v1842 = vlaneseq
        %v1843 = vshrl.u32 %v1842, 7
        %v1844 = vsub.s32 0, %v1843
        %v1845 = vrot.slane %v597, %v1844
        %v1846 = vlaneseq
        %v1847 = vshrl.u32 %v1846, 7
        %v1848 = vsub.s32 0, %v1847
        %v1849 = vrot.slane %v605, %v1848
        %v1850 = vlaneseq
        %v1851 = vshrl.u32 %v1850, 7
        %v1852 = vsub.s32 0, %v1851
        %v1853 = vrot.slane %v604, %v1852
        %v1854 = vlaneseq
        %v1855 = vshrl.u32 %v1854, 7
        %v1856 = vsub.s32 0, %v1855
        %v1857 = vrot.slane %v606, %v1856
        %v1858 = vlaneseq
        %v1859 = vshrl.u32 %v1858, 7
        %v1860 = vsub.s32 0, %v1859
        %v1861 = vrot.slane %v614, %v1860
        %v1862 = vlaneseq
        %v1863 = vshrl.u32 %v1862, 7
        %v1864 = vsub.s32 0, %v1863
        %v1865 = vrot.slane %v622, %v1864
        %v1866 = vlaneseq
        %v1867 = vshrl.u32 %v1866, 7
        %v1868 = vsub.s32 0, %v1867
        %v1869 = vrot.slane %v621, %v1868
        %v1870 = vlaneseq
        %v1871 = vshrl.u32 %v1870, 7
        %v1872 = vsub.s32 0, %v1871
        %v1873 = vrot.slane %v623, %v1872
        %v1874 = vlaneseq
        %v1875 = vshrl.u32 %v1874, 7
        %v1876 = vsub.s32 0, %v1875
        %v1877 = vrot.slane %v638, %v1876
        %v1878 = vlaneseq
        %v1879 = vshrl.u32 %v1878, 7
        %v1880 = vsub.s32 0, %v1879
        %v1881 = vrot.slane %v646, %v1880
        %v1882 = vlaneseq
        %v1883 = vshrl.u32 %v1882, 7
        %v1884 = vsub.s32 0, %v1883
        %v1885 = vrot.slane %v645, %v1884
        %v1886 = vlaneseq
        %v1887 = vshrl.u32 %v1886, 7
        %v1888 = vsub.s32 0, %v1887
        %v1889 = vrot.slane %v647, %v1888
        %v1890 = vlaneseq
        %v1891 = vshrl.u32 %v1890, 7
        %v1892 = vsub.s32 0, %v1891
        %v1893 = vrot.slane %v655, %v1892
        %v1894 = vlaneseq
        %v1895 = vshrl.u32 %v1894, 7
        %v1896 = vsub.s32 0, %v1895
        %v1897 = vrot.slane %v663, %v1896
        %v1898 = vlaneseq
        %v1899 = vshrl.u32 %v1898, 7
        %v1900 = vsub.s32 0, %v1899
        %v1901 = vrot.slane %v662, %v1900
        %v1902 = vlaneseq
        %v1903 = vshrl.u32 %v1902, 7
        %v1904 = vsub.s32 0, %v1903
        %v1905 = vrot.slane %v664, %v1904
        %v1906 = vlaneseq
        %v1907 = vshrl.u32 %v1906, 7
        %v1908 = vsub.s32 0, %v1907
        %v1909 = vrot.slane %v679, %v1908
        %v1910 = vlaneseq
        %v1911 = vshrl.u32 %v1910, 7
        %v1912 = vsub.s32 0, %v1911
        %v1913 = vrot.slane %v687, %v1912
        %v1914 = vlaneseq
        %v1915 = vshrl.u32 %v1914, 7
        %v1916 = vsub.s32 0, %v1915
        %v1917 = vrot.slane %v686, %v1916
        %v1918 = vlaneseq
        %v1919 = vshrl.u32 %v1918, 7
        %v1920 = vsub.s32 0, %v1919
        %v1921 = vrot.slane %v688, %v1920
        %v1922 = vlaneseq
        %v1923 = vshrl.u32 %v1922, 7
        %v1924 = vsub.s32 0, %v1923
        %v1925 = vrot.slane %v696, %v1924
        %v1926 = vlaneseq
        %v1927 = vshrl.u32 %v1926, 7
        %v1928 = vsub.s32 0, %v1927
        %v1929 = vrot.slane %v704, %v1928
        %v1930 = vlaneseq
        %v1931 = vshrl.u32 %v1930, 7
        %v1932 = vsub.s32 0, %v1931
        %v1933 = vrot.slane %v703, %v1932
        %v1934 = vlaneseq
        %v1935 = vshrl.u32 %v1934, 7
        %v1936 = vsub.s32 0, %v1935
        %v1937 = vrot.slane %v705, %v1936
        %vm1938 = vcmask 1041409
        %v1939 = vsel %vm1938, %v1689, %v1685
        %vm1940 = vcmask 1042434
        %v1941 = vsel %vm1940, %v1693, %v1939
        %vm1942 = vcmask 1043459
        %v1943 = vsel %vm1942, %v1697, %v1941
        %vm1944 = vcmask 1044484
        %v1945 = vsel %vm1944, %v1701, %v1943
        %vm1946 = vcmask 1045509
        %v1947 = vsel %vm1946, %v1705, %v1945
        %vm1948 = vcmask 1046534
        %v1949 = vsel %vm1948, %v1709, %v1947
        %vm1950 = vcmask 1047559
        %v1951 = vsel %vm1950, %v1713, %v1949
        %v1952 = vsel %vm1938, %v1721, %v1717
        %v1953 = vsel %vm1940, %v1725, %v1952
        %v1954 = vsel %vm1942, %v1729, %v1953
        %v1955 = vsel %vm1944, %v1733, %v1954
        %v1956 = vsel %vm1946, %v1737, %v1955
        %v1957 = vsel %vm1948, %v1741, %v1956
        %v1958 = vsel %vm1950, %v1745, %v1957
        %v1959 = vsel %vm1938, %v1753, %v1749
        %v1960 = vsel %vm1940, %v1757, %v1959
        %v1961 = vsel %vm1942, %v1761, %v1960
        %v1962 = vsel %vm1944, %v1765, %v1961
        %v1963 = vsel %vm1946, %v1769, %v1962
        %v1964 = vsel %vm1948, %v1773, %v1963
        %v1965 = vsel %vm1950, %v1777, %v1964
        %v1966 = vsel %vm1938, %v1785, %v1781
        %v1967 = vsel %vm1940, %v1789, %v1966
        %v1968 = vsel %vm1942, %v1793, %v1967
        %v1969 = vsel %vm1944, %v1797, %v1968
        %v1970 = vsel %vm1946, %v1801, %v1969
        %v1971 = vsel %vm1948, %v1805, %v1970
        %v1972 = vsel %vm1950, %v1809, %v1971
        %v1973 = vsel %vm1938, %v1817, %v1813
        %v1974 = vsel %vm1940, %v1821, %v1973
        %v1975 = vsel %vm1942, %v1825, %v1974
        %v1976 = vsel %vm1944, %v1829, %v1975
        %v1977 = vsel %vm1946, %v1833, %v1976
        %v1978 = vsel %vm1948, %v1837, %v1977
        %v1979 = vsel %vm1950, %v1841, %v1978
        %v1980 = vsel %vm1938, %v1849, %v1845
        %v1981 = vsel %vm1940, %v1853, %v1980
        %v1982 = vsel %vm1942, %v1857, %v1981
        %v1983 = vsel %vm1944, %v1861, %v1982
        %v1984 = vsel %vm1946, %v1865, %v1983
        %v1985 = vsel %vm1948, %v1869, %v1984
        %v1986 = vsel %vm1950, %v1873, %v1985
        %v1987 = vsel %vm1938, %v1881, %v1877
        %v1988 = vsel %vm1940, %v1885, %v1987
        %v1989 = vsel %vm1942, %v1889, %v1988
        %v1990 = vsel %vm1944, %v1893, %v1989
        %v1991 = vsel %vm1946, %v1897, %v1990
        %v1992 = vsel %vm1948, %v1901, %v1991
        %v1993 = vsel %vm1950, %v1905, %v1992
        %v1994 = vsel %vm1938, %v1913, %v1909
        %v1995 = vsel %vm1940, %v1917, %v1994
        %v1996 = vsel %vm1942, %v1921, %v1995
        %v1997 = vsel %vm1944, %v1925, %v1996
        %v1998 = vsel %vm1946, %v1929, %v1997
        %v1999 = vsel %vm1948, %v1933, %v1998
        %v2000 = vsel %vm1950, %v1937, %v1999
        %v2009 = vlaneseq
        %v2010 = vshrl.u32 %v2009, 7
        %v2011 = vsub.s32 1, %v2010
        %v2012 = vrot.slane %v392, %v2011
        %v2013 = vlaneseq
        %v2014 = vshrl.u32 %v2013, 7
        %v2015 = vsub.s32 1, %v2014
        %v2016 = vrot.slane %v400, %v2015
        %v2017 = vlaneseq
        %v2018 = vshrl.u32 %v2017, 7
        %v2019 = vsub.s32 1, %v2018
        %v2020 = vrot.slane %v399, %v2019
        %v2021 = vlaneseq
        %v2022 = vshrl.u32 %v2021, 7
        %v2023 = vsub.s32 1, %v2022
        %v2024 = vrot.slane %v401, %v2023
        %v2025 = vlaneseq
        %v2026 = vshrl.u32 %v2025, 7
        %v2027 = vsub.s32 1, %v2026
        %v2028 = vrot.slane %v409, %v2027
        %v2029 = vlaneseq
        %v2030 = vshrl.u32 %v2029, 7
        %v2031 = vsub.s32 1, %v2030
        %v2032 = vrot.slane %v417, %v2031
        %v2033 = vlaneseq
        %v2034 = vshrl.u32 %v2033, 7
        %v2035 = vsub.s32 1, %v2034
        %v2036 = vrot.slane %v416, %v2035
        %v2037 = vlaneseq
        %v2038 = vshrl.u32 %v2037, 7
        %v2039 = vsub.s32 1, %v2038
        %v2040 = vrot.slane %v418, %v2039
        %v2041 = vlaneseq
        %v2042 = vshrl.u32 %v2041, 7
        %v2043 = vsub.s32 1, %v2042
        %v2044 = vrot.slane %v433, %v2043
        %v2045 = vlaneseq
        %v2046 = vshrl.u32 %v2045, 7
        %v2047 = vsub.s32 1, %v2046
        %v2048 = vrot.slane %v441, %v2047
        %v2049 = vlaneseq
        %v2050 = vshrl.u32 %v2049, 7
        %v2051 = vsub.s32 1, %v2050
        %v2052 = vrot.slane %v440, %v2051
        %v2053 = vlaneseq
        %v2054 = vshrl.u32 %v2053, 7
        %v2055 = vsub.s32 1, %v2054
        %v2056 = vrot.slane %v442, %v2055
        %v2057 = vlaneseq
        %v2058 = vshrl.u32 %v2057, 7
        %v2059 = vsub.s32 1, %v2058
        %v2060 = vrot.slane %v450, %v2059
        %v2061 = vlaneseq
        %v2062 = vshrl.u32 %v2061, 7
        %v2063 = vsub.s32 1, %v2062
        %v2064 = vrot.slane %v458, %v2063
        %v2065 = vlaneseq
        %v2066 = vshrl.u32 %v2065, 7
        %v2067 = vsub.s32 1, %v2066
        %v2068 = vrot.slane %v457, %v2067
        %v2069 = vlaneseq
        %v2070 = vshrl.u32 %v2069, 7
        %v2071 = vsub.s32 1, %v2070
        %v2072 = vrot.slane %v459, %v2071
        %v2073 = vlaneseq
        %v2074 = vshrl.u32 %v2073, 7
        %v2075 = vsub.s32 1, %v2074
        %v2076 = vrot.slane %v474, %v2075
        %v2077 = vlaneseq
        %v2078 = vshrl.u32 %v2077, 7
        %v2079 = vsub.s32 1, %v2078
        %v2080 = vrot.slane %v482, %v2079
        %v2081 = vlaneseq
        %v2082 = vshrl.u32 %v2081, 7
        %v2083 = vsub.s32 1, %v2082
        %v2084 = vrot.slane %v481, %v2083
        %v2085 = vlaneseq
        %v2086 = vshrl.u32 %v2085, 7
        %v2087 = vsub.s32 1, %v2086
        %v2088 = vrot.slane %v483, %v2087
        %v2089 = vlaneseq
        %v2090 = vshrl.u32 %v2089, 7
        %v2091 = vsub.s32 1, %v2090
        %v2092 = vrot.slane %v491, %v2091
        %v2093 = vlaneseq
        %v2094 = vshrl.u32 %v2093, 7
        %v2095 = vsub.s32 1, %v2094
        %v2096 = vrot.slane %v499, %v2095
        %v2097 = vlaneseq
        %v2098 = vshrl.u32 %v2097, 7
        %v2099 = vsub.s32 1, %v2098
        %v2100 = vrot.slane %v498, %v2099
        %v2101 = vlaneseq
        %v2102 = vshrl.u32 %v2101, 7
        %v2103 = vsub.s32 1, %v2102
        %v2104 = vrot.slane %v500, %v2103
        %v2105 = vlaneseq
        %v2106 = vshrl.u32 %v2105, 7
        %v2107 = vsub.s32 1, %v2106
        %v2108 = vrot.slane %v515, %v2107
        %v2109 = vlaneseq
        %v2110 = vshrl.u32 %v2109, 7
        %v2111 = vsub.s32 1, %v2110
        %v2112 = vrot.slane %v523, %v2111
        %v2113 = vlaneseq
        %v2114 = vshrl.u32 %v2113, 7
        %v2115 = vsub.s32 1, %v2114
        %v2116 = vrot.slane %v522, %v2115
        %v2117 = vlaneseq
        %v2118 = vshrl.u32 %v2117, 7
        %v2119 = vsub.s32 1, %v2118
        %v2120 = vrot.slane %v524, %v2119
        %v2121 = vlaneseq
        %v2122 = vshrl.u32 %v2121, 7
        %v2123 = vsub.s32 1, %v2122
        %v2124 = vrot.slane %v532, %v2123
        %v2125 = vlaneseq
        %v2126 = vshrl.u32 %v2125, 7
        %v2127 = vsub.s32 1, %v2126
        %v2128 = vrot.slane %v540, %v2127
        %v2129 = vlaneseq
        %v2130 = vshrl.u32 %v2129, 7
        %v2131 = vsub.s32 1, %v2130
        %v2132 = vrot.slane %v539, %v2131
        %v2133 = vlaneseq
        %v2134 = vshrl.u32 %v2133, 7
        %v2135 = vsub.s32 1, %v2134
        %v2136 = vrot.slane %v541, %v2135
        %v2137 = vlaneseq
        %v2138 = vshrl.u32 %v2137, 7
        %v2139 = vsub.s32 1, %v2138
        %v2140 = vrot.slane %v556, %v2139
        %v2141 = vlaneseq
        %v2142 = vshrl.u32 %v2141, 7
        %v2143 = vsub.s32 1, %v2142
        %v2144 = vrot.slane %v564, %v2143
        %v2145 = vlaneseq
        %v2146 = vshrl.u32 %v2145, 7
        %v2147 = vsub.s32 1, %v2146
        %v2148 = vrot.slane %v563, %v2147
        %v2149 = vlaneseq
        %v2150 = vshrl.u32 %v2149, 7
        %v2151 = vsub.s32 1, %v2150
        %v2152 = vrot.slane %v565, %v2151
        %v2153 = vlaneseq
        %v2154 = vshrl.u32 %v2153, 7
        %v2155 = vsub.s32 1, %v2154
        %v2156 = vrot.slane %v573, %v2155
        %v2157 = vlaneseq
        %v2158 = vshrl.u32 %v2157, 7
        %v2159 = vsub.s32 1, %v2158
        %v2160 = vrot.slane %v581, %v2159
        %v2161 = vlaneseq
        %v2162 = vshrl.u32 %v2161, 7
        %v2163 = vsub.s32 1, %v2162
        %v2164 = vrot.slane %v580, %v2163
        %v2165 = vlaneseq
        %v2166 = vshrl.u32 %v2165, 7
        %v2167 = vsub.s32 1, %v2166
        %v2168 = vrot.slane %v582, %v2167
        %v2169 = vlaneseq
        %v2170 = vshrl.u32 %v2169, 7
        %v2171 = vsub.s32 1, %v2170
        %v2172 = vrot.slane %v597, %v2171
        %v2173 = vlaneseq
        %v2174 = vshrl.u32 %v2173, 7
        %v2175 = vsub.s32 1, %v2174
        %v2176 = vrot.slane %v605, %v2175
        %v2177 = vlaneseq
        %v2178 = vshrl.u32 %v2177, 7
        %v2179 = vsub.s32 1, %v2178
        %v2180 = vrot.slane %v604, %v2179
        %v2181 = vlaneseq
        %v2182 = vshrl.u32 %v2181, 7
        %v2183 = vsub.s32 1, %v2182
        %v2184 = vrot.slane %v606, %v2183
        %v2185 = vlaneseq
        %v2186 = vshrl.u32 %v2185, 7
        %v2187 = vsub.s32 1, %v2186
        %v2188 = vrot.slane %v614, %v2187
        %v2189 = vlaneseq
        %v2190 = vshrl.u32 %v2189, 7
        %v2191 = vsub.s32 1, %v2190
        %v2192 = vrot.slane %v622, %v2191
        %v2193 = vlaneseq
        %v2194 = vshrl.u32 %v2193, 7
        %v2195 = vsub.s32 1, %v2194
        %v2196 = vrot.slane %v621, %v2195
        %v2197 = vlaneseq
        %v2198 = vshrl.u32 %v2197, 7
        %v2199 = vsub.s32 1, %v2198
        %v2200 = vrot.slane %v623, %v2199
        %v2201 = vlaneseq
        %v2202 = vshrl.u32 %v2201, 7
        %v2203 = vsub.s32 1, %v2202
        %v2204 = vrot.slane %v638, %v2203
        %v2205 = vlaneseq
        %v2206 = vshrl.u32 %v2205, 7
        %v2207 = vsub.s32 1, %v2206
        %v2208 = vrot.slane %v646, %v2207
        %v2209 = vlaneseq
        %v2210 = vshrl.u32 %v2209, 7
        %v2211 = vsub.s32 1, %v2210
        %v2212 = vrot.slane %v645, %v2211
        %v2213 = vlaneseq
        %v2214 = vshrl.u32 %v2213, 7
        %v2215 = vsub.s32 1, %v2214
        %v2216 = vrot.slane %v647, %v2215
        %v2217 = vlaneseq
        %v2218 = vshrl.u32 %v2217, 7
        %v2219 = vsub.s32 1, %v2218
        %v2220 = vrot.slane %v655, %v2219
        %v2221 = vlaneseq
        %v2222 = vshrl.u32 %v2221, 7
        %v2223 = vsub.s32 1, %v2222
        %v2224 = vrot.slane %v663, %v2223
        %v2225 = vlaneseq
        %v2226 = vshrl.u32 %v2225, 7
        %v2227 = vsub.s32 1, %v2226
        %v2228 = vrot.slane %v662, %v2227
        %v2229 = vlaneseq
        %v2230 = vshrl.u32 %v2229, 7
        %v2231 = vsub.s32 1, %v2230
        %v2232 = vrot.slane %v664, %v2231
        %v2233 = vlaneseq
        %v2234 = vshrl.u32 %v2233, 7
        %v2235 = vsub.s32 1, %v2234
        %v2236 = vrot.slane %v679, %v2235
        %v2237 = vlaneseq
        %v2238 = vshrl.u32 %v2237, 7
        %v2239 = vsub.s32 1, %v2238
        %v2240 = vrot.slane %v687, %v2239
        %v2241 = vlaneseq
        %v2242 = vshrl.u32 %v2241, 7
        %v2243 = vsub.s32 1, %v2242
        %v2244 = vrot.slane %v686, %v2243
        %v2245 = vlaneseq
        %v2246 = vshrl.u32 %v2245, 7
        %v2247 = vsub.s32 1, %v2246
        %v2248 = vrot.slane %v688, %v2247
        %v2249 = vlaneseq
        %v2250 = vshrl.u32 %v2249, 7
        %v2251 = vsub.s32 1, %v2250
        %v2252 = vrot.slane %v696, %v2251
        %v2253 = vlaneseq
        %v2254 = vshrl.u32 %v2253, 7
        %v2255 = vsub.s32 1, %v2254
        %v2256 = vrot.slane %v704, %v2255
        %v2257 = vlaneseq
        %v2258 = vshrl.u32 %v2257, 7
        %v2259 = vsub.s32 1, %v2258
        %v2260 = vrot.slane %v703, %v2259
        %v2261 = vlaneseq
        %v2262 = vshrl.u32 %v2261, 7
        %v2263 = vsub.s32 1, %v2262
        %v2264 = vrot.slane %v705, %v2263
        %v2265 = vsel %vm1938, %v2016, %v2012
        %v2266 = vsel %vm1940, %v2020, %v2265
        %v2267 = vsel %vm1942, %v2024, %v2266
        %v2268 = vsel %vm1944, %v2028, %v2267
        %v2269 = vsel %vm1946, %v2032, %v2268
        %v2270 = vsel %vm1948, %v2036, %v2269
        %v2271 = vsel %vm1950, %v2040, %v2270
        %v2272 = vsel %vm1938, %v2048, %v2044
        %v2273 = vsel %vm1940, %v2052, %v2272
        %v2274 = vsel %vm1942, %v2056, %v2273
        %v2275 = vsel %vm1944, %v2060, %v2274
        %v2276 = vsel %vm1946, %v2064, %v2275
        %v2277 = vsel %vm1948, %v2068, %v2276
        %v2278 = vsel %vm1950, %v2072, %v2277
        %v2279 = vsel %vm1938, %v2080, %v2076
        %v2280 = vsel %vm1940, %v2084, %v2279
        %v2281 = vsel %vm1942, %v2088, %v2280
        %v2282 = vsel %vm1944, %v2092, %v2281
        %v2283 = vsel %vm1946, %v2096, %v2282
        %v2284 = vsel %vm1948, %v2100, %v2283
        %v2285 = vsel %vm1950, %v2104, %v2284
        %v2286 = vsel %vm1938, %v2112, %v2108
        %v2287 = vsel %vm1940, %v2116, %v2286
        %v2288 = vsel %vm1942, %v2120, %v2287
        %v2289 = vsel %vm1944, %v2124, %v2288
        %v2290 = vsel %vm1946, %v2128, %v2289
        %v2291 = vsel %vm1948, %v2132, %v2290
        %v2292 = vsel %vm1950, %v2136, %v2291
        %v2293 = vsel %vm1938, %v2144, %v2140
        %v2294 = vsel %vm1940, %v2148, %v2293
        %v2295 = vsel %vm1942, %v2152, %v2294
        %v2296 = vsel %vm1944, %v2156, %v2295
        %v2297 = vsel %vm1946, %v2160, %v2296
        %v2298 = vsel %vm1948, %v2164, %v2297
        %v2299 = vsel %vm1950, %v2168, %v2298
        %v2300 = vsel %vm1938, %v2176, %v2172
        %v2301 = vsel %vm1940, %v2180, %v2300
        %v2302 = vsel %vm1942, %v2184, %v2301
        %v2303 = vsel %vm1944, %v2188, %v2302
        %v2304 = vsel %vm1946, %v2192, %v2303
        %v2305 = vsel %vm1948, %v2196, %v2304
        %v2306 = vsel %vm1950, %v2200, %v2305
        %v2307 = vsel %vm1938, %v2208, %v2204
        %v2308 = vsel %vm1940, %v2212, %v2307
        %v2309 = vsel %vm1942, %v2216, %v2308
        %v2310 = vsel %vm1944, %v2220, %v2309
        %v2311 = vsel %vm1946, %v2224, %v2310
        %v2312 = vsel %vm1948, %v2228, %v2311
        %v2313 = vsel %vm1950, %v2232, %v2312
        %v2314 = vsel %vm1938, %v2240, %v2236
        %v2315 = vsel %vm1940, %v2244, %v2314
        %v2316 = vsel %vm1942, %v2248, %v2315
        %v2317 = vsel %vm1944, %v2252, %v2316
        %v2318 = vsel %vm1946, %v2256, %v2317
        %v2319 = vsel %vm1948, %v2260, %v2318
        %v2320 = vsel %vm1950, %v2264, %v2319
        %2321 = vrot.lane.b32.xlu0 %v2271, 4
        %v2322 = vpop.permute.xlu0 %2321
        %2323 = vrot.lane.b32.xlu0 %v2278, 4
        %v2324 = vpop.permute.xlu0 %2323
        %2325 = vrot.lane.b32.xlu0 %v2285, 4
        %v2326 = vpop.permute.xlu0 %2325
        %2327 = vrot.lane.b32.xlu0 %v2292, 4
        %v2328 = vpop.permute.xlu0 %2327
        %2329 = vrot.lane.b32.xlu0 %v2299, 4
        %v2330 = vpop.permute.xlu0 %2329
        %2331 = vrot.lane.b32.xlu0 %v2306, 4
        %v2332 = vpop.permute.xlu0 %2331
        %2333 = vrot.lane.b32.xlu0 %v2313, 4
        %v2334 = vpop.permute.xlu0 %2333
        %2335 = vrot.lane.b32.xlu0 %v2320, 4
        %v2336 = vpop.permute.xlu0 %2335
        %v2345 = vlaneseq
        %v2346 = vshrl.u32 %v2345, 7
        %v2347 = vsub.s32 0, %v2346
        %v2348 = vrot.slane %v425, %v2347
        %v2349 = vlaneseq
        %v2350 = vshrl.u32 %v2349, 7
        %v2351 = vsub.s32 0, %v2350
        %v2352 = vrot.slane %v466, %v2351
        %v2353 = vlaneseq
        %v2354 = vshrl.u32 %v2353, 7
        %v2355 = vsub.s32 0, %v2354
        %v2356 = vrot.slane %v507, %v2355
        %v2357 = vlaneseq
        %v2358 = vshrl.u32 %v2357, 7
        %v2359 = vsub.s32 0, %v2358
        %v2360 = vrot.slane %v548, %v2359
        %v2361 = vlaneseq
        %v2362 = vshrl.u32 %v2361, 7
        %v2363 = vsub.s32 0, %v2362
        %v2364 = vrot.slane %v589, %v2363
        %v2365 = vlaneseq
        %v2366 = vshrl.u32 %v2365, 7
        %v2367 = vsub.s32 0, %v2366
        %v2368 = vrot.slane %v630, %v2367
        %v2369 = vlaneseq
        %v2370 = vshrl.u32 %v2369, 7
        %v2371 = vsub.s32 0, %v2370
        %v2372 = vrot.slane %v671, %v2371
        %v2373 = vlaneseq
        %v2374 = vshrl.u32 %v2373, 7
        %v2375 = vsub.s32 0, %v2374
        %v2376 = vrot.slane %v712, %v2375
        %v2377 = vsel %vm1938, %v1693, %v1689
        %v2378 = vsel %vm1940, %v1697, %v2377
        %v2379 = vsel %vm1942, %v1701, %v2378
        %v2380 = vsel %vm1944, %v1705, %v2379
        %v2381 = vsel %vm1946, %v1709, %v2380
        %v2382 = vsel %vm1948, %v1713, %v2381
        %v2383 = vsel %vm1950, %v2348, %v2382
        %v2384 = vsel %vm1938, %v1725, %v1721
        %v2385 = vsel %vm1940, %v1729, %v2384
        %v2386 = vsel %vm1942, %v1733, %v2385
        %v2387 = vsel %vm1944, %v1737, %v2386
        %v2388 = vsel %vm1946, %v1741, %v2387
        %v2389 = vsel %vm1948, %v1745, %v2388
        %v2390 = vsel %vm1950, %v2352, %v2389
        %v2391 = vsel %vm1938, %v1757, %v1753
        %v2392 = vsel %vm1940, %v1761, %v2391
        %v2393 = vsel %vm1942, %v1765, %v2392
        %v2394 = vsel %vm1944, %v1769, %v2393
        %v2395 = vsel %vm1946, %v1773, %v2394
        %v2396 = vsel %vm1948, %v1777, %v2395
        %v2397 = vsel %vm1950, %v2356, %v2396
        %v2398 = vsel %vm1938, %v1789, %v1785
        %v2399 = vsel %vm1940, %v1793, %v2398
        %v2400 = vsel %vm1942, %v1797, %v2399
        %v2401 = vsel %vm1944, %v1801, %v2400
        %v2402 = vsel %vm1946, %v1805, %v2401
        %v2403 = vsel %vm1948, %v1809, %v2402
        %v2404 = vsel %vm1950, %v2360, %v2403
        %v2405 = vsel %vm1938, %v1821, %v1817
        %v2406 = vsel %vm1940, %v1825, %v2405
        %v2407 = vsel %vm1942, %v1829, %v2406
        %v2408 = vsel %vm1944, %v1833, %v2407
        %v2409 = vsel %vm1946, %v1837, %v2408
        %v2410 = vsel %vm1948, %v1841, %v2409
        %v2411 = vsel %vm1950, %v2364, %v2410
        %v2412 = vsel %vm1938, %v1853, %v1849
        %v2413 = vsel %vm1940, %v1857, %v2412
        %v2414 = vsel %vm1942, %v1861, %v2413
        %v2415 = vsel %vm1944, %v1865, %v2414
        %v2416 = vsel %vm1946, %v1869, %v2415
        %v2417 = vsel %vm1948, %v1873, %v2416
        %v2418 = vsel %vm1950, %v2368, %v2417
        %v2419 = vsel %vm1938, %v1885, %v1881
        %v2420 = vsel %vm1940, %v1889, %v2419
        %v2421 = vsel %vm1942, %v1893, %v2420
        %v2422 = vsel %vm1944, %v1897, %v2421
        %v2423 = vsel %vm1946, %v1901, %v2422
        %v2424 = vsel %vm1948, %v1905, %v2423
        %v2425 = vsel %vm1950, %v2372, %v2424
        %v2426 = vsel %vm1938, %v1917, %v1913
        %v2427 = vsel %vm1940, %v1921, %v2426
        %v2428 = vsel %vm1942, %v1925, %v2427
        %v2429 = vsel %vm1944, %v1929, %v2428
        %v2430 = vsel %vm1946, %v1933, %v2429
        %v2431 = vsel %vm1948, %v1937, %v2430
        %v2432 = vsel %vm1950, %v2376, %v2431
        %2433 = vrot.lane.b32.xlu0 %v2383, 8
        %v2434 = vpop.permute.xlu0 %2433
        %2435 = vrot.lane.b32.xlu0 %v2390, 8
        %v2436 = vpop.permute.xlu0 %2435
        %2437 = vrot.lane.b32.xlu0 %v2397, 8
        %v2438 = vpop.permute.xlu0 %2437
        %2439 = vrot.lane.b32.xlu0 %v2404, 8
        %v2440 = vpop.permute.xlu0 %2439
        %2441 = vrot.lane.b32.xlu0 %v2411, 8
        %v2442 = vpop.permute.xlu0 %2441
        %2443 = vrot.lane.b32.xlu0 %v2418, 8
        %v2444 = vpop.permute.xlu0 %2443
        %2445 = vrot.lane.b32.xlu0 %v2425, 8
        %v2446 = vpop.permute.xlu0 %2445
        %2447 = vrot.lane.b32.xlu0 %v2432, 8
        %v2448 = vpop.permute.xlu0 %2447
        %v2457 = vlaneseq
        %v2458 = vshrl.u32 %v2457, 7
        %v2459 = vsub.s32 0, %v2458
        %v2460 = vrot.slane %v849, %v2459
        %v2461 = vlaneseq
        %v2462 = vshrl.u32 %v2461, 7
        %v2463 = vsub.s32 0, %v2462
        %v2464 = vrot.slane %v857, %v2463
        %v2465 = vlaneseq
        %v2466 = vshrl.u32 %v2465, 7
        %v2467 = vsub.s32 0, %v2466
        %v2468 = vrot.slane %v856, %v2467
        %v2469 = vlaneseq
        %v2470 = vshrl.u32 %v2469, 7
        %v2471 = vsub.s32 0, %v2470
        %v2472 = vrot.slane %v858, %v2471
        %v2473 = vlaneseq
        %v2474 = vshrl.u32 %v2473, 7
        %v2475 = vsub.s32 0, %v2474
        %v2476 = vrot.slane %v866, %v2475
        %v2477 = vlaneseq
        %v2478 = vshrl.u32 %v2477, 7
        %v2479 = vsub.s32 0, %v2478
        %v2480 = vrot.slane %v874, %v2479
        %v2481 = vlaneseq
        %v2482 = vshrl.u32 %v2481, 7
        %v2483 = vsub.s32 0, %v2482
        %v2484 = vrot.slane %v873, %v2483
        %v2485 = vlaneseq
        %v2486 = vshrl.u32 %v2485, 7
        %v2487 = vsub.s32 0, %v2486
        %v2488 = vrot.slane %v875, %v2487
        %v2489 = vlaneseq
        %v2490 = vshrl.u32 %v2489, 7
        %v2491 = vsub.s32 0, %v2490
        %v2492 = vrot.slane %v890, %v2491
        %v2493 = vlaneseq
        %v2494 = vshrl.u32 %v2493, 7
        %v2495 = vsub.s32 0, %v2494
        %v2496 = vrot.slane %v898, %v2495
        %v2497 = vlaneseq
        %v2498 = vshrl.u32 %v2497, 7
        %v2499 = vsub.s32 0, %v2498
        %v2500 = vrot.slane %v897, %v2499
        %v2501 = vlaneseq
        %v2502 = vshrl.u32 %v2501, 7
        %v2503 = vsub.s32 0, %v2502
        %v2504 = vrot.slane %v899, %v2503
        %v2505 = vlaneseq
        %v2506 = vshrl.u32 %v2505, 7
        %v2507 = vsub.s32 0, %v2506
        %v2508 = vrot.slane %v907, %v2507
        %v2509 = vlaneseq
        %v2510 = vshrl.u32 %v2509, 7
        %v2511 = vsub.s32 0, %v2510
        %v2512 = vrot.slane %v915, %v2511
        %v2513 = vlaneseq
        %v2514 = vshrl.u32 %v2513, 7
        %v2515 = vsub.s32 0, %v2514
        %v2516 = vrot.slane %v914, %v2515
        %v2517 = vlaneseq
        %v2518 = vshrl.u32 %v2517, 7
        %v2519 = vsub.s32 0, %v2518
        %v2520 = vrot.slane %v916, %v2519
        %v2521 = vlaneseq
        %v2522 = vshrl.u32 %v2521, 7
        %v2523 = vsub.s32 0, %v2522
        %v2524 = vrot.slane %v931, %v2523
        %v2525 = vlaneseq
        %v2526 = vshrl.u32 %v2525, 7
        %v2527 = vsub.s32 0, %v2526
        %v2528 = vrot.slane %v939, %v2527
        %v2529 = vlaneseq
        %v2530 = vshrl.u32 %v2529, 7
        %v2531 = vsub.s32 0, %v2530
        %v2532 = vrot.slane %v938, %v2531
        %v2533 = vlaneseq
        %v2534 = vshrl.u32 %v2533, 7
        %v2535 = vsub.s32 0, %v2534
        %v2536 = vrot.slane %v940, %v2535
        %v2537 = vlaneseq
        %v2538 = vshrl.u32 %v2537, 7
        %v2539 = vsub.s32 0, %v2538
        %v2540 = vrot.slane %v948, %v2539
        %v2541 = vlaneseq
        %v2542 = vshrl.u32 %v2541, 7
        %v2543 = vsub.s32 0, %v2542
        %v2544 = vrot.slane %v956, %v2543
        %v2545 = vlaneseq
        %v2546 = vshrl.u32 %v2545, 7
        %v2547 = vsub.s32 0, %v2546
        %v2548 = vrot.slane %v955, %v2547
        %v2549 = vlaneseq
        %v2550 = vshrl.u32 %v2549, 7
        %v2551 = vsub.s32 0, %v2550
        %v2552 = vrot.slane %v957, %v2551
        %v2553 = vlaneseq
        %v2554 = vshrl.u32 %v2553, 7
        %v2555 = vsub.s32 0, %v2554
        %v2556 = vrot.slane %v972, %v2555
        %v2557 = vlaneseq
        %v2558 = vshrl.u32 %v2557, 7
        %v2559 = vsub.s32 0, %v2558
        %v2560 = vrot.slane %v980, %v2559
        %v2561 = vlaneseq
        %v2562 = vshrl.u32 %v2561, 7
        %v2563 = vsub.s32 0, %v2562
        %v2564 = vrot.slane %v979, %v2563
        %v2565 = vlaneseq
        %v2566 = vshrl.u32 %v2565, 7
        %v2567 = vsub.s32 0, %v2566
        %v2568 = vrot.slane %v981, %v2567
        %v2569 = vlaneseq
        %v2570 = vshrl.u32 %v2569, 7
        %v2571 = vsub.s32 0, %v2570
        %v2572 = vrot.slane %v989, %v2571
        %v2573 = vlaneseq
        %v2574 = vshrl.u32 %v2573, 7
        %v2575 = vsub.s32 0, %v2574
        %v2576 = vrot.slane %v997, %v2575
        %v2577 = vlaneseq
        %v2578 = vshrl.u32 %v2577, 7
        %v2579 = vsub.s32 0, %v2578
        %v2580 = vrot.slane %v996, %v2579
        %v2581 = vlaneseq
        %v2582 = vshrl.u32 %v2581, 7
        %v2583 = vsub.s32 0, %v2582
        %v2584 = vrot.slane %v998, %v2583
        %v2585 = vlaneseq
        %v2586 = vshrl.u32 %v2585, 7
        %v2587 = vsub.s32 0, %v2586
        %v2588 = vrot.slane %v1013, %v2587
        %v2589 = vlaneseq
        %v2590 = vshrl.u32 %v2589, 7
        %v2591 = vsub.s32 0, %v2590
        %v2592 = vrot.slane %v1021, %v2591
        %v2593 = vlaneseq
        %v2594 = vshrl.u32 %v2593, 7
        %v2595 = vsub.s32 0, %v2594
        %v2596 = vrot.slane %v1020, %v2595
        %v2597 = vlaneseq
        %v2598 = vshrl.u32 %v2597, 7
        %v2599 = vsub.s32 0, %v2598
        %v2600 = vrot.slane %v1022, %v2599
        %v2601 = vlaneseq
        %v2602 = vshrl.u32 %v2601, 7
        %v2603 = vsub.s32 0, %v2602
        %v2604 = vrot.slane %v1030, %v2603
        %v2605 = vlaneseq
        %v2606 = vshrl.u32 %v2605, 7
        %v2607 = vsub.s32 0, %v2606
        %v2608 = vrot.slane %v1038, %v2607
        %v2609 = vlaneseq
        %v2610 = vshrl.u32 %v2609, 7
        %v2611 = vsub.s32 0, %v2610
        %v2612 = vrot.slane %v1037, %v2611
        %v2613 = vlaneseq
        %v2614 = vshrl.u32 %v2613, 7
        %v2615 = vsub.s32 0, %v2614
        %v2616 = vrot.slane %v1039, %v2615
        %v2617 = vlaneseq
        %v2618 = vshrl.u32 %v2617, 7
        %v2619 = vsub.s32 0, %v2618
        %v2620 = vrot.slane %v1054, %v2619
        %v2621 = vlaneseq
        %v2622 = vshrl.u32 %v2621, 7
        %v2623 = vsub.s32 0, %v2622
        %v2624 = vrot.slane %v1062, %v2623
        %v2625 = vlaneseq
        %v2626 = vshrl.u32 %v2625, 7
        %v2627 = vsub.s32 0, %v2626
        %v2628 = vrot.slane %v1061, %v2627
        %v2629 = vlaneseq
        %v2630 = vshrl.u32 %v2629, 7
        %v2631 = vsub.s32 0, %v2630
        %v2632 = vrot.slane %v1063, %v2631
        %v2633 = vlaneseq
        %v2634 = vshrl.u32 %v2633, 7
        %v2635 = vsub.s32 0, %v2634
        %v2636 = vrot.slane %v1071, %v2635
        %v2637 = vlaneseq
        %v2638 = vshrl.u32 %v2637, 7
        %v2639 = vsub.s32 0, %v2638
        %v2640 = vrot.slane %v1079, %v2639
        %v2641 = vlaneseq
        %v2642 = vshrl.u32 %v2641, 7
        %v2643 = vsub.s32 0, %v2642
        %v2644 = vrot.slane %v1078, %v2643
        %v2645 = vlaneseq
        %v2646 = vshrl.u32 %v2645, 7
        %v2647 = vsub.s32 0, %v2646
        %v2648 = vrot.slane %v1080, %v2647
        %v2649 = vlaneseq
        %v2650 = vshrl.u32 %v2649, 7
        %v2651 = vsub.s32 0, %v2650
        %v2652 = vrot.slane %v1095, %v2651
        %v2653 = vlaneseq
        %v2654 = vshrl.u32 %v2653, 7
        %v2655 = vsub.s32 0, %v2654
        %v2656 = vrot.slane %v1103, %v2655
        %v2657 = vlaneseq
        %v2658 = vshrl.u32 %v2657, 7
        %v2659 = vsub.s32 0, %v2658
        %v2660 = vrot.slane %v1102, %v2659
        %v2661 = vlaneseq
        %v2662 = vshrl.u32 %v2661, 7
        %v2663 = vsub.s32 0, %v2662
        %v2664 = vrot.slane %v1104, %v2663
        %v2665 = vlaneseq
        %v2666 = vshrl.u32 %v2665, 7
        %v2667 = vsub.s32 0, %v2666
        %v2668 = vrot.slane %v1112, %v2667
        %v2669 = vlaneseq
        %v2670 = vshrl.u32 %v2669, 7
        %v2671 = vsub.s32 0, %v2670
        %v2672 = vrot.slane %v1120, %v2671
        %v2673 = vlaneseq
        %v2674 = vshrl.u32 %v2673, 7
        %v2675 = vsub.s32 0, %v2674
        %v2676 = vrot.slane %v1119, %v2675
        %v2677 = vlaneseq
        %v2678 = vshrl.u32 %v2677, 7
        %v2679 = vsub.s32 0, %v2678
        %v2680 = vrot.slane %v1121, %v2679
        %v2681 = vlaneseq
        %v2682 = vshrl.u32 %v2681, 7
        %v2683 = vsub.s32 0, %v2682
        %v2684 = vrot.slane %v1136, %v2683
        %v2685 = vlaneseq
        %v2686 = vshrl.u32 %v2685, 7
        %v2687 = vsub.s32 0, %v2686
        %v2688 = vrot.slane %v1144, %v2687
        %v2689 = vlaneseq
        %v2690 = vshrl.u32 %v2689, 7
        %v2691 = vsub.s32 0, %v2690
        %v2692 = vrot.slane %v1143, %v2691
        %v2693 = vlaneseq
        %v2694 = vshrl.u32 %v2693, 7
        %v2695 = vsub.s32 0, %v2694
        %v2696 = vrot.slane %v1145, %v2695
        %v2697 = vlaneseq
        %v2698 = vshrl.u32 %v2697, 7
        %v2699 = vsub.s32 0, %v2698
        %v2700 = vrot.slane %v1153, %v2699
        %v2701 = vlaneseq
        %v2702 = vshrl.u32 %v2701, 7
        %v2703 = vsub.s32 0, %v2702
        %v2704 = vrot.slane %v1161, %v2703
        %v2705 = vlaneseq
        %v2706 = vshrl.u32 %v2705, 7
        %v2707 = vsub.s32 0, %v2706
        %v2708 = vrot.slane %v1160, %v2707
        %v2709 = vlaneseq
        %v2710 = vshrl.u32 %v2709, 7
        %v2711 = vsub.s32 0, %v2710
        %v2712 = vrot.slane %v1162, %v2711
        %v2713 = vsel %vm1938, %v2464, %v2460
        %v2714 = vsel %vm1940, %v2468, %v2713
        %v2715 = vsel %vm1942, %v2472, %v2714
        %v2716 = vsel %vm1944, %v2476, %v2715
        %v2717 = vsel %vm1946, %v2480, %v2716
        %v2718 = vsel %vm1948, %v2484, %v2717
        %v2719 = vsel %vm1950, %v2488, %v2718
        %v2720 = vsel %vm1938, %v2496, %v2492
        %v2721 = vsel %vm1940, %v2500, %v2720
        %v2722 = vsel %vm1942, %v2504, %v2721
        %v2723 = vsel %vm1944, %v2508, %v2722
        %v2724 = vsel %vm1946, %v2512, %v2723
        %v2725 = vsel %vm1948, %v2516, %v2724
        %v2726 = vsel %vm1950, %v2520, %v2725
        %v2727 = vsel %vm1938, %v2528, %v2524
        %v2728 = vsel %vm1940, %v2532, %v2727
        %v2729 = vsel %vm1942, %v2536, %v2728
        %v2730 = vsel %vm1944, %v2540, %v2729
        %v2731 = vsel %vm1946, %v2544, %v2730
        %v2732 = vsel %vm1948, %v2548, %v2731
        %v2733 = vsel %vm1950, %v2552, %v2732
        %v2734 = vsel %vm1938, %v2560, %v2556
        %v2735 = vsel %vm1940, %v2564, %v2734
        %v2736 = vsel %vm1942, %v2568, %v2735
        %v2737 = vsel %vm1944, %v2572, %v2736
        %v2738 = vsel %vm1946, %v2576, %v2737
        %v2739 = vsel %vm1948, %v2580, %v2738
        %v2740 = vsel %vm1950, %v2584, %v2739
        %v2741 = vsel %vm1938, %v2592, %v2588
        %v2742 = vsel %vm1940, %v2596, %v2741
        %v2743 = vsel %vm1942, %v2600, %v2742
        %v2744 = vsel %vm1944, %v2604, %v2743
        %v2745 = vsel %vm1946, %v2608, %v2744
        %v2746 = vsel %vm1948, %v2612, %v2745
        %v2747 = vsel %vm1950, %v2616, %v2746
        %v2748 = vsel %vm1938, %v2624, %v2620
        %v2749 = vsel %vm1940, %v2628, %v2748
        %v2750 = vsel %vm1942, %v2632, %v2749
        %v2751 = vsel %vm1944, %v2636, %v2750
        %v2752 = vsel %vm1946, %v2640, %v2751
        %v2753 = vsel %vm1948, %v2644, %v2752
        %v2754 = vsel %vm1950, %v2648, %v2753
        %v2755 = vsel %vm1938, %v2656, %v2652
        %v2756 = vsel %vm1940, %v2660, %v2755
        %v2757 = vsel %vm1942, %v2664, %v2756
        %v2758 = vsel %vm1944, %v2668, %v2757
        %v2759 = vsel %vm1946, %v2672, %v2758
        %v2760 = vsel %vm1948, %v2676, %v2759
        %v2761 = vsel %vm1950, %v2680, %v2760
        %v2762 = vsel %vm1938, %v2688, %v2684
        %v2763 = vsel %vm1940, %v2692, %v2762
        %v2764 = vsel %vm1942, %v2696, %v2763
        %v2765 = vsel %vm1944, %v2700, %v2764
        %v2766 = vsel %vm1946, %v2704, %v2765
        %v2767 = vsel %vm1948, %v2708, %v2766
        %v2768 = vsel %vm1950, %v2712, %v2767
        %2769 = vrot.lane.b32.xlu0 %v2719, 12
        %v2770 = vpop.permute.xlu0 %2769
        %2771 = vrot.lane.b32.xlu0 %v2726, 12
        %v2772 = vpop.permute.xlu0 %2771
        %2773 = vrot.lane.b32.xlu0 %v2733, 12
        %v2774 = vpop.permute.xlu0 %2773
        %2775 = vrot.lane.b32.xlu0 %v2740, 12
        %v2776 = vpop.permute.xlu0 %2775
        %2777 = vrot.lane.b32.xlu0 %v2747, 12
        %v2778 = vpop.permute.xlu0 %2777
        %2779 = vrot.lane.b32.xlu0 %v2754, 12
        %v2780 = vpop.permute.xlu0 %2779
        %2781 = vrot.lane.b32.xlu0 %v2761, 12
        %v2782 = vpop.permute.xlu0 %2781
        %2783 = vrot.lane.b32.xlu0 %v2768, 12
        %v2784 = vpop.permute.xlu0 %2783
        %v2793 = vlaneseq
        %v2794 = vshrl.u32 %v2793, 7
        %v2795 = vsub.s32 1, %v2794
        %v2796 = vrot.slane %v849, %v2795
        %v2797 = vlaneseq
        %v2798 = vshrl.u32 %v2797, 7
        %v2799 = vsub.s32 1, %v2798
        %v2800 = vrot.slane %v857, %v2799
        %v2801 = vlaneseq
        %v2802 = vshrl.u32 %v2801, 7
        %v2803 = vsub.s32 1, %v2802
        %v2804 = vrot.slane %v856, %v2803
        %v2805 = vlaneseq
        %v2806 = vshrl.u32 %v2805, 7
        %v2807 = vsub.s32 1, %v2806
        %v2808 = vrot.slane %v858, %v2807
        %v2809 = vlaneseq
        %v2810 = vshrl.u32 %v2809, 7
        %v2811 = vsub.s32 1, %v2810
        %v2812 = vrot.slane %v866, %v2811
        %v2813 = vlaneseq
        %v2814 = vshrl.u32 %v2813, 7
        %v2815 = vsub.s32 1, %v2814
        %v2816 = vrot.slane %v874, %v2815
        %v2817 = vlaneseq
        %v2818 = vshrl.u32 %v2817, 7
        %v2819 = vsub.s32 1, %v2818
        %v2820 = vrot.slane %v873, %v2819
        %v2821 = vlaneseq
        %v2822 = vshrl.u32 %v2821, 7
        %v2823 = vsub.s32 1, %v2822
        %v2824 = vrot.slane %v875, %v2823
        %v2825 = vlaneseq
        %v2826 = vshrl.u32 %v2825, 7
        %v2827 = vsub.s32 1, %v2826
        %v2828 = vrot.slane %v890, %v2827
        %v2829 = vlaneseq
        %v2830 = vshrl.u32 %v2829, 7
        %v2831 = vsub.s32 1, %v2830
        %v2832 = vrot.slane %v898, %v2831
        %v2833 = vlaneseq
        %v2834 = vshrl.u32 %v2833, 7
        %v2835 = vsub.s32 1, %v2834
        %v2836 = vrot.slane %v897, %v2835
        %v2837 = vlaneseq
        %v2838 = vshrl.u32 %v2837, 7
        %v2839 = vsub.s32 1, %v2838
        %v2840 = vrot.slane %v899, %v2839
        %v2841 = vlaneseq
        %v2842 = vshrl.u32 %v2841, 7
        %v2843 = vsub.s32 1, %v2842
        %v2844 = vrot.slane %v907, %v2843
        %v2845 = vlaneseq
        %v2846 = vshrl.u32 %v2845, 7
        %v2847 = vsub.s32 1, %v2846
        %v2848 = vrot.slane %v915, %v2847
        %v2849 = vlaneseq
        %v2850 = vshrl.u32 %v2849, 7
        %v2851 = vsub.s32 1, %v2850
        %v2852 = vrot.slane %v914, %v2851
        %v2853 = vlaneseq
        %v2854 = vshrl.u32 %v2853, 7
        %v2855 = vsub.s32 1, %v2854
        %v2856 = vrot.slane %v916, %v2855
        %v2857 = vlaneseq
        %v2858 = vshrl.u32 %v2857, 7
        %v2859 = vsub.s32 1, %v2858
        %v2860 = vrot.slane %v931, %v2859
        %v2861 = vlaneseq
        %v2862 = vshrl.u32 %v2861, 7
        %v2863 = vsub.s32 1, %v2862
        %v2864 = vrot.slane %v939, %v2863
        %v2865 = vlaneseq
        %v2866 = vshrl.u32 %v2865, 7
        %v2867 = vsub.s32 1, %v2866
        %v2868 = vrot.slane %v938, %v2867
        %v2869 = vlaneseq
        %v2870 = vshrl.u32 %v2869, 7
        %v2871 = vsub.s32 1, %v2870
        %v2872 = vrot.slane %v940, %v2871
        %v2873 = vlaneseq
        %v2874 = vshrl.u32 %v2873, 7
        %v2875 = vsub.s32 1, %v2874
        %v2876 = vrot.slane %v948, %v2875
        %v2877 = vlaneseq
        %v2878 = vshrl.u32 %v2877, 7
        %v2879 = vsub.s32 1, %v2878
        %v2880 = vrot.slane %v956, %v2879
        %v2881 = vlaneseq
        %v2882 = vshrl.u32 %v2881, 7
        %v2883 = vsub.s32 1, %v2882
        %v2884 = vrot.slane %v955, %v2883
        %v2885 = vlaneseq
        %v2886 = vshrl.u32 %v2885, 7
        %v2887 = vsub.s32 1, %v2886
        %v2888 = vrot.slane %v957, %v2887
        %v2889 = vlaneseq
        %v2890 = vshrl.u32 %v2889, 7
        %v2891 = vsub.s32 1, %v2890
        %v2892 = vrot.slane %v972, %v2891
        %v2893 = vlaneseq
        %v2894 = vshrl.u32 %v2893, 7
        %v2895 = vsub.s32 1, %v2894
        %v2896 = vrot.slane %v980, %v2895
        %v2897 = vlaneseq
        %v2898 = vshrl.u32 %v2897, 7
        %v2899 = vsub.s32 1, %v2898
        %v2900 = vrot.slane %v979, %v2899
        %v2901 = vlaneseq
        %v2902 = vshrl.u32 %v2901, 7
        %v2903 = vsub.s32 1, %v2902
        %v2904 = vrot.slane %v981, %v2903
        %v2905 = vlaneseq
        %v2906 = vshrl.u32 %v2905, 7
        %v2907 = vsub.s32 1, %v2906
        %v2908 = vrot.slane %v989, %v2907
        %v2909 = vlaneseq
        %v2910 = vshrl.u32 %v2909, 7
        %v2911 = vsub.s32 1, %v2910
        %v2912 = vrot.slane %v997, %v2911
        %v2913 = vlaneseq
        %v2914 = vshrl.u32 %v2913, 7
        %v2915 = vsub.s32 1, %v2914
        %v2916 = vrot.slane %v996, %v2915
        %v2917 = vlaneseq
        %v2918 = vshrl.u32 %v2917, 7
        %v2919 = vsub.s32 1, %v2918
        %v2920 = vrot.slane %v998, %v2919
        %v2921 = vlaneseq
        %v2922 = vshrl.u32 %v2921, 7
        %v2923 = vsub.s32 1, %v2922
        %v2924 = vrot.slane %v1013, %v2923
        %v2925 = vlaneseq
        %v2926 = vshrl.u32 %v2925, 7
        %v2927 = vsub.s32 1, %v2926
        %v2928 = vrot.slane %v1021, %v2927
        %v2929 = vlaneseq
        %v2930 = vshrl.u32 %v2929, 7
        %v2931 = vsub.s32 1, %v2930
        %v2932 = vrot.slane %v1020, %v2931
        %v2933 = vlaneseq
        %v2934 = vshrl.u32 %v2933, 7
        %v2935 = vsub.s32 1, %v2934
        %v2936 = vrot.slane %v1022, %v2935
        %v2937 = vlaneseq
        %v2938 = vshrl.u32 %v2937, 7
        %v2939 = vsub.s32 1, %v2938
        %v2940 = vrot.slane %v1030, %v2939
        %v2941 = vlaneseq
        %v2942 = vshrl.u32 %v2941, 7
        %v2943 = vsub.s32 1, %v2942
        %v2944 = vrot.slane %v1038, %v2943
        %v2945 = vlaneseq
        %v2946 = vshrl.u32 %v2945, 7
        %v2947 = vsub.s32 1, %v2946
        %v2948 = vrot.slane %v1037, %v2947
        %v2949 = vlaneseq
        %v2950 = vshrl.u32 %v2949, 7
        %v2951 = vsub.s32 1, %v2950
        %v2952 = vrot.slane %v1039, %v2951
        %v2953 = vlaneseq
        %v2954 = vshrl.u32 %v2953, 7
        %v2955 = vsub.s32 1, %v2954
        %v2956 = vrot.slane %v1054, %v2955
        %v2957 = vlaneseq
        %v2958 = vshrl.u32 %v2957, 7
        %v2959 = vsub.s32 1, %v2958
        %v2960 = vrot.slane %v1062, %v2959
        %v2961 = vlaneseq
        %v2962 = vshrl.u32 %v2961, 7
        %v2963 = vsub.s32 1, %v2962
        %v2964 = vrot.slane %v1061, %v2963
        %v2965 = vlaneseq
        %v2966 = vshrl.u32 %v2965, 7
        %v2967 = vsub.s32 1, %v2966
        %v2968 = vrot.slane %v1063, %v2967
        %v2969 = vlaneseq
        %v2970 = vshrl.u32 %v2969, 7
        %v2971 = vsub.s32 1, %v2970
        %v2972 = vrot.slane %v1071, %v2971
        %v2973 = vlaneseq
        %v2974 = vshrl.u32 %v2973, 7
        %v2975 = vsub.s32 1, %v2974
        %v2976 = vrot.slane %v1079, %v2975
        %v2977 = vlaneseq
        %v2978 = vshrl.u32 %v2977, 7
        %v2979 = vsub.s32 1, %v2978
        %v2980 = vrot.slane %v1078, %v2979
        %v2981 = vlaneseq
        %v2982 = vshrl.u32 %v2981, 7
        %v2983 = vsub.s32 1, %v2982
        %v2984 = vrot.slane %v1080, %v2983
        %v2985 = vlaneseq
        %v2986 = vshrl.u32 %v2985, 7
        %v2987 = vsub.s32 1, %v2986
        %v2988 = vrot.slane %v1095, %v2987
        %v2989 = vlaneseq
        %v2990 = vshrl.u32 %v2989, 7
        %v2991 = vsub.s32 1, %v2990
        %v2992 = vrot.slane %v1103, %v2991
        %v2993 = vlaneseq
        %v2994 = vshrl.u32 %v2993, 7
        %v2995 = vsub.s32 1, %v2994
        %v2996 = vrot.slane %v1102, %v2995
        %v2997 = vlaneseq
        %v2998 = vshrl.u32 %v2997, 7
        %v2999 = vsub.s32 1, %v2998
        %v3000 = vrot.slane %v1104, %v2999
        %v3001 = vlaneseq
        %v3002 = vshrl.u32 %v3001, 7
        %v3003 = vsub.s32 1, %v3002
        %v3004 = vrot.slane %v1112, %v3003
        %v3005 = vlaneseq
        %v3006 = vshrl.u32 %v3005, 7
        %v3007 = vsub.s32 1, %v3006
        %v3008 = vrot.slane %v1120, %v3007
        %v3009 = vlaneseq
        %v3010 = vshrl.u32 %v3009, 7
        %v3011 = vsub.s32 1, %v3010
        %v3012 = vrot.slane %v1119, %v3011
        %v3013 = vlaneseq
        %v3014 = vshrl.u32 %v3013, 7
        %v3015 = vsub.s32 1, %v3014
        %v3016 = vrot.slane %v1121, %v3015
        %v3017 = vlaneseq
        %v3018 = vshrl.u32 %v3017, 7
        %v3019 = vsub.s32 1, %v3018
        %v3020 = vrot.slane %v1136, %v3019
        %v3021 = vlaneseq
        %v3022 = vshrl.u32 %v3021, 7
        %v3023 = vsub.s32 1, %v3022
        %v3024 = vrot.slane %v1144, %v3023
        %v3025 = vlaneseq
        %v3026 = vshrl.u32 %v3025, 7
        %v3027 = vsub.s32 1, %v3026
        %v3028 = vrot.slane %v1143, %v3027
        %v3029 = vlaneseq
        %v3030 = vshrl.u32 %v3029, 7
        %v3031 = vsub.s32 1, %v3030
        %v3032 = vrot.slane %v1145, %v3031
        %v3033 = vlaneseq
        %v3034 = vshrl.u32 %v3033, 7
        %v3035 = vsub.s32 1, %v3034
        %v3036 = vrot.slane %v1153, %v3035
        %v3037 = vlaneseq
        %v3038 = vshrl.u32 %v3037, 7
        %v3039 = vsub.s32 1, %v3038
        %v3040 = vrot.slane %v1161, %v3039
        %v3041 = vlaneseq
        %v3042 = vshrl.u32 %v3041, 7
        %v3043 = vsub.s32 1, %v3042
        %v3044 = vrot.slane %v1160, %v3043
        %v3045 = vlaneseq
        %v3046 = vshrl.u32 %v3045, 7
        %v3047 = vsub.s32 1, %v3046
        %v3048 = vrot.slane %v1162, %v3047
        %v3049 = vsel %vm1938, %v2800, %v2796
        %v3050 = vsel %vm1940, %v2804, %v3049
        %v3051 = vsel %vm1942, %v2808, %v3050
        %v3052 = vsel %vm1944, %v2812, %v3051
        %v3053 = vsel %vm1946, %v2816, %v3052
        %v3054 = vsel %vm1948, %v2820, %v3053
        %v3055 = vsel %vm1950, %v2824, %v3054
        %v3056 = vsel %vm1938, %v2832, %v2828
        %v3057 = vsel %vm1940, %v2836, %v3056
        %v3058 = vsel %vm1942, %v2840, %v3057
        %v3059 = vsel %vm1944, %v2844, %v3058
        %v3060 = vsel %vm1946, %v2848, %v3059
        %v3061 = vsel %vm1948, %v2852, %v3060
        %v3062 = vsel %vm1950, %v2856, %v3061
        %v3063 = vsel %vm1938, %v2864, %v2860
        %v3064 = vsel %vm1940, %v2868, %v3063
        %v3065 = vsel %vm1942, %v2872, %v3064
        %v3066 = vsel %vm1944, %v2876, %v3065
        %v3067 = vsel %vm1946, %v2880, %v3066
        %v3068 = vsel %vm1948, %v2884, %v3067
        %v3069 = vsel %vm1950, %v2888, %v3068
        %v3070 = vsel %vm1938, %v2896, %v2892
        %v3071 = vsel %vm1940, %v2900, %v3070
        %v3072 = vsel %vm1942, %v2904, %v3071
        %v3073 = vsel %vm1944, %v2908, %v3072
        %v3074 = vsel %vm1946, %v2912, %v3073
        %v3075 = vsel %vm1948, %v2916, %v3074
        %v3076 = vsel %vm1950, %v2920, %v3075
        %v3077 = vsel %vm1938, %v2928, %v2924
        %v3078 = vsel %vm1940, %v2932, %v3077
        %v3079 = vsel %vm1942, %v2936, %v3078
        %v3080 = vsel %vm1944, %v2940, %v3079
        %v3081 = vsel %vm1946, %v2944, %v3080
        %v3082 = vsel %vm1948, %v2948, %v3081
        %v3083 = vsel %vm1950, %v2952, %v3082
        %v3084 = vsel %vm1938, %v2960, %v2956
        %v3085 = vsel %vm1940, %v2964, %v3084
        %v3086 = vsel %vm1942, %v2968, %v3085
        %v3087 = vsel %vm1944, %v2972, %v3086
        %v3088 = vsel %vm1946, %v2976, %v3087
        %v3089 = vsel %vm1948, %v2980, %v3088
        %v3090 = vsel %vm1950, %v2984, %v3089
        %v3091 = vsel %vm1938, %v2992, %v2988
        %v3092 = vsel %vm1940, %v2996, %v3091
        %v3093 = vsel %vm1942, %v3000, %v3092
        %v3094 = vsel %vm1944, %v3004, %v3093
        %v3095 = vsel %vm1946, %v3008, %v3094
        %v3096 = vsel %vm1948, %v3012, %v3095
        %v3097 = vsel %vm1950, %v3016, %v3096
        %v3098 = vsel %vm1938, %v3024, %v3020
        %v3099 = vsel %vm1940, %v3028, %v3098
        %v3100 = vsel %vm1942, %v3032, %v3099
        %v3101 = vsel %vm1944, %v3036, %v3100
        %v3102 = vsel %vm1946, %v3040, %v3101
        %v3103 = vsel %vm1948, %v3044, %v3102
        %v3104 = vsel %vm1950, %v3048, %v3103
        %3105 = vrot.lane.b32.xlu0 %v3055, 16
        %v3106 = vpop.permute.xlu0 %3105
        %3107 = vrot.lane.b32.xlu0 %v3062, 16
        %v3108 = vpop.permute.xlu0 %3107
        %3109 = vrot.lane.b32.xlu0 %v3069, 16
        %v3110 = vpop.permute.xlu0 %3109
        %3111 = vrot.lane.b32.xlu0 %v3076, 16
        %v3112 = vpop.permute.xlu0 %3111
        %3113 = vrot.lane.b32.xlu0 %v3083, 16
        %v3114 = vpop.permute.xlu0 %3113
        %3115 = vrot.lane.b32.xlu0 %v3090, 16
        %v3116 = vpop.permute.xlu0 %3115
        %3117 = vrot.lane.b32.xlu0 %v3097, 16
        %v3118 = vpop.permute.xlu0 %3117
        %3119 = vrot.lane.b32.xlu0 %v3104, 16
        %v3120 = vpop.permute.xlu0 %3119
        %v3129 = vlaneseq
        %v3130 = vshrl.u32 %v3129, 7
        %v3131 = vsub.s32 0, %v3130
        %v3132 = vrot.slane %v882, %v3131
        %v3133 = vlaneseq
        %v3134 = vshrl.u32 %v3133, 7
        %v3135 = vsub.s32 0, %v3134
        %v3136 = vrot.slane %v923, %v3135
        %v3137 = vlaneseq
        %v3138 = vshrl.u32 %v3137, 7
        %v3139 = vsub.s32 0, %v3138
        %v3140 = vrot.slane %v964, %v3139
        %v3141 = vlaneseq
        %v3142 = vshrl.u32 %v3141, 7
        %v3143 = vsub.s32 0, %v3142
        %v3144 = vrot.slane %v1005, %v3143
        %v3145 = vlaneseq
        %v3146 = vshrl.u32 %v3145, 7
        %v3147 = vsub.s32 0, %v3146
        %v3148 = vrot.slane %v1046, %v3147
        %v3149 = vlaneseq
        %v3150 = vshrl.u32 %v3149, 7
        %v3151 = vsub.s32 0, %v3150
        %v3152 = vrot.slane %v1087, %v3151
        %v3153 = vlaneseq
        %v3154 = vshrl.u32 %v3153, 7
        %v3155 = vsub.s32 0, %v3154
        %v3156 = vrot.slane %v1128, %v3155
        %v3157 = vlaneseq
        %v3158 = vshrl.u32 %v3157, 7
        %v3159 = vsub.s32 0, %v3158
        %v3160 = vrot.slane %v1169, %v3159
        %v3161 = vsel %vm1938, %v2468, %v2464
        %v3162 = vsel %vm1940, %v2472, %v3161
        %v3163 = vsel %vm1942, %v2476, %v3162
        %v3164 = vsel %vm1944, %v2480, %v3163
        %v3165 = vsel %vm1946, %v2484, %v3164
        %v3166 = vsel %vm1948, %v2488, %v3165
        %v3167 = vsel %vm1950, %v3132, %v3166
        %v3168 = vsel %vm1938, %v2500, %v2496
        %v3169 = vsel %vm1940, %v2504, %v3168
        %v3170 = vsel %vm1942, %v2508, %v3169
        %v3171 = vsel %vm1944, %v2512, %v3170
        %v3172 = vsel %vm1946, %v2516, %v3171
        %v3173 = vsel %vm1948, %v2520, %v3172
        %v3174 = vsel %vm1950, %v3136, %v3173
        %v3175 = vsel %vm1938, %v2532, %v2528
        %v3176 = vsel %vm1940, %v2536, %v3175
        %v3177 = vsel %vm1942, %v2540, %v3176
        %v3178 = vsel %vm1944, %v2544, %v3177
        %v3179 = vsel %vm1946, %v2548, %v3178
        %v3180 = vsel %vm1948, %v2552, %v3179
        %v3181 = vsel %vm1950, %v3140, %v3180
        %v3182 = vsel %vm1938, %v2564, %v2560
        %v3183 = vsel %vm1940, %v2568, %v3182
        %v3184 = vsel %vm1942, %v2572, %v3183
        %v3185 = vsel %vm1944, %v2576, %v3184
        %v3186 = vsel %vm1946, %v2580, %v3185
        %v3187 = vsel %vm1948, %v2584, %v3186
        %v3188 = vsel %vm1950, %v3144, %v3187
        %v3189 = vsel %vm1938, %v2596, %v2592
        %v3190 = vsel %vm1940, %v2600, %v3189
        %v3191 = vsel %vm1942, %v2604, %v3190
        %v3192 = vsel %vm1944, %v2608, %v3191
        %v3193 = vsel %vm1946, %v2612, %v3192
        %v3194 = vsel %vm1948, %v2616, %v3193
        %v3195 = vsel %vm1950, %v3148, %v3194
        %v3196 = vsel %vm1938, %v2628, %v2624
        %v3197 = vsel %vm1940, %v2632, %v3196
        %v3198 = vsel %vm1942, %v2636, %v3197
        %v3199 = vsel %vm1944, %v2640, %v3198
        %v3200 = vsel %vm1946, %v2644, %v3199
        %v3201 = vsel %vm1948, %v2648, %v3200
        %v3202 = vsel %vm1950, %v3152, %v3201
        %v3203 = vsel %vm1938, %v2660, %v2656
        %v3204 = vsel %vm1940, %v2664, %v3203
        %v3205 = vsel %vm1942, %v2668, %v3204
        %v3206 = vsel %vm1944, %v2672, %v3205
        %v3207 = vsel %vm1946, %v2676, %v3206
        %v3208 = vsel %vm1948, %v2680, %v3207
        %v3209 = vsel %vm1950, %v3156, %v3208
        %v3210 = vsel %vm1938, %v2692, %v2688
        %v3211 = vsel %vm1940, %v2696, %v3210
        %v3212 = vsel %vm1942, %v2700, %v3211
        %v3213 = vsel %vm1944, %v2704, %v3212
        %v3214 = vsel %vm1946, %v2708, %v3213
        %v3215 = vsel %vm1948, %v2712, %v3214
        %v3216 = vsel %vm1950, %v3160, %v3215
        %3217 = vrot.lane.b32.xlu0 %v3167, 20
        %v3218 = vpop.permute.xlu0 %3217
        %3219 = vrot.lane.b32.xlu0 %v3174, 20
        %v3220 = vpop.permute.xlu0 %3219
        %3221 = vrot.lane.b32.xlu0 %v3181, 20
        %v3222 = vpop.permute.xlu0 %3221
        %3223 = vrot.lane.b32.xlu0 %v3188, 20
        %v3224 = vpop.permute.xlu0 %3223
        %3225 = vrot.lane.b32.xlu0 %v3195, 20
        %v3226 = vpop.permute.xlu0 %3225
        %3227 = vrot.lane.b32.xlu0 %v3202, 20
        %v3228 = vpop.permute.xlu0 %3227
        %3229 = vrot.lane.b32.xlu0 %v3209, 20
        %v3230 = vpop.permute.xlu0 %3229
        %3231 = vrot.lane.b32.xlu0 %v3216, 20
        %v3232 = vpop.permute.xlu0 %3231
        %v3241 = vlaneseq
        %v3242 = vshrl.u32 %v3241, 7
        %v3243 = vsub.s32 0, %v3242
        %v3244 = vrot.slane %v720, %v3243
        %v3245 = vlaneseq
        %v3246 = vshrl.u32 %v3245, 7
        %v3247 = vsub.s32 0, %v3246
        %v3248 = vrot.slane %v728, %v3247
        %v3249 = vlaneseq
        %v3250 = vshrl.u32 %v3249, 7
        %v3251 = vsub.s32 0, %v3250
        %v3252 = vrot.slane %v727, %v3251
        %v3253 = vlaneseq
        %v3254 = vshrl.u32 %v3253, 7
        %v3255 = vsub.s32 0, %v3254
        %v3256 = vrot.slane %v729, %v3255
        %v3257 = vlaneseq
        %v3258 = vshrl.u32 %v3257, 7
        %v3259 = vsub.s32 0, %v3258
        %v3260 = vrot.slane %v737, %v3259
        %v3261 = vlaneseq
        %v3262 = vshrl.u32 %v3261, 7
        %v3263 = vsub.s32 0, %v3262
        %v3264 = vrot.slane %v745, %v3263
        %v3265 = vlaneseq
        %v3266 = vshrl.u32 %v3265, 7
        %v3267 = vsub.s32 0, %v3266
        %v3268 = vrot.slane %v744, %v3267
        %v3269 = vlaneseq
        %v3270 = vshrl.u32 %v3269, 7
        %v3271 = vsub.s32 0, %v3270
        %v3272 = vrot.slane %v746, %v3271
        %v3273 = vsel %vm1938, %v3248, %v3244
        %v3274 = vsel %vm1940, %v3252, %v3273
        %v3275 = vsel %vm1942, %v3256, %v3274
        %v3276 = vsel %vm1944, %v3260, %v3275
        %v3277 = vsel %vm1946, %v3264, %v3276
        %v3278 = vsel %vm1948, %v3268, %v3277
        %v3279 = vsel %vm1950, %v3272, %v3278
        %3280 = vrot.lane.b32.xlu0 %v1958, 24
        %v3281 = vpop.permute.xlu0 %3280
        %3282 = vrot.lane.b32.xlu0 %v1965, 24
        %v3283 = vpop.permute.xlu0 %3282
        %3284 = vrot.lane.b32.xlu0 %v1972, 24
        %v3285 = vpop.permute.xlu0 %3284
        %3286 = vrot.lane.b32.xlu0 %v1979, 24
        %v3287 = vpop.permute.xlu0 %3286
        %3288 = vrot.lane.b32.xlu0 %v1986, 24
        %v3289 = vpop.permute.xlu0 %3288
        %3290 = vrot.lane.b32.xlu0 %v1993, 24
        %v3291 = vpop.permute.xlu0 %3290
        %3292 = vrot.lane.b32.xlu0 %v2000, 24
        %v3293 = vpop.permute.xlu0 %3292
        %3294 = vrot.lane.b32.xlu0 %v3279, 24
        %v3295 = vpop.permute.xlu0 %3294
        %v3304 = vlaneseq
        %v3305 = vshrl.u32 %v3304, 7
        %v3306 = vsub.s32 1, %v3305
        %v3307 = vrot.slane %v720, %v3306
        %v3308 = vlaneseq
        %v3309 = vshrl.u32 %v3308, 7
        %v3310 = vsub.s32 1, %v3309
        %v3311 = vrot.slane %v728, %v3310
        %v3312 = vlaneseq
        %v3313 = vshrl.u32 %v3312, 7
        %v3314 = vsub.s32 1, %v3313
        %v3315 = vrot.slane %v727, %v3314
        %v3316 = vlaneseq
        %v3317 = vshrl.u32 %v3316, 7
        %v3318 = vsub.s32 1, %v3317
        %v3319 = vrot.slane %v729, %v3318
        %v3320 = vlaneseq
        %v3321 = vshrl.u32 %v3320, 7
        %v3322 = vsub.s32 1, %v3321
        %v3323 = vrot.slane %v737, %v3322
        %v3324 = vlaneseq
        %v3325 = vshrl.u32 %v3324, 7
        %v3326 = vsub.s32 1, %v3325
        %v3327 = vrot.slane %v745, %v3326
        %v3328 = vlaneseq
        %v3329 = vshrl.u32 %v3328, 7
        %v3330 = vsub.s32 1, %v3329
        %v3331 = vrot.slane %v744, %v3330
        %v3332 = vlaneseq
        %v3333 = vshrl.u32 %v3332, 7
        %v3334 = vsub.s32 1, %v3333
        %v3335 = vrot.slane %v746, %v3334
        %v3336 = vsel %vm1938, %v3311, %v3307
        %v3337 = vsel %vm1940, %v3315, %v3336
        %v3338 = vsel %vm1942, %v3319, %v3337
        %v3339 = vsel %vm1944, %v3323, %v3338
        %v3340 = vsel %vm1946, %v3327, %v3339
        %v3341 = vsel %vm1948, %v3331, %v3340
        %v3342 = vsel %vm1950, %v3335, %v3341
        %3343 = vrot.lane.b32.xlu0 %v2278, 28
        %v3344 = vpop.permute.xlu0 %3343
        %3345 = vrot.lane.b32.xlu0 %v2285, 28
        %v3346 = vpop.permute.xlu0 %3345
        %3347 = vrot.lane.b32.xlu0 %v2292, 28
        %v3348 = vpop.permute.xlu0 %3347
        %3349 = vrot.lane.b32.xlu0 %v2299, 28
        %v3350 = vpop.permute.xlu0 %3349
        %3351 = vrot.lane.b32.xlu0 %v2306, 28
        %v3352 = vpop.permute.xlu0 %3351
        %3353 = vrot.lane.b32.xlu0 %v2313, 28
        %v3354 = vpop.permute.xlu0 %3353
        %3355 = vrot.lane.b32.xlu0 %v2320, 28
        %v3356 = vpop.permute.xlu0 %3355
        %3357 = vrot.lane.b32.xlu0 %v3342, 28
        %v3358 = vpop.permute.xlu0 %3357
        %v3367 = vlaneseq
        %v3368 = vshrl.u32 %v3367, 7
        %v3369 = vsub.s32 0, %v3368
        %v3370 = vrot.slane %v753, %v3369
        %v3371 = vsel %vm1938, %v3252, %v3248
        %v3372 = vsel %vm1940, %v3256, %v3371
        %v3373 = vsel %vm1942, %v3260, %v3372
        %v3374 = vsel %vm1944, %v3264, %v3373
        %v3375 = vsel %vm1946, %v3268, %v3374
        %v3376 = vsel %vm1948, %v3272, %v3375
        %v3377 = vsel %vm1950, %v3370, %v3376
        %3378 = vrot.lane.b32.xlu0 %v2390, 32
        %v3379 = vpop.permute.xlu0 %3378
        %3380 = vrot.lane.b32.xlu0 %v2397, 32
        %v3381 = vpop.permute.xlu0 %3380
        %3382 = vrot.lane.b32.xlu0 %v2404, 32
        %v3383 = vpop.permute.xlu0 %3382
        %3384 = vrot.lane.b32.xlu0 %v2411, 32
        %v3385 = vpop.permute.xlu0 %3384
        %3386 = vrot.lane.b32.xlu0 %v2418, 32
        %v3387 = vpop.permute.xlu0 %3386
        %3388 = vrot.lane.b32.xlu0 %v2425, 32
        %v3389 = vpop.permute.xlu0 %3388
        %3390 = vrot.lane.b32.xlu0 %v2432, 32
        %v3391 = vpop.permute.xlu0 %3390
        %3392 = vrot.lane.b32.xlu0 %v3377, 32
        %v3393 = vpop.permute.xlu0 %3392
        %v3402 = vsel %vm196, %v1951, %v2322
        %v3403 = vsel %vm196, %v1958, %v2324
        %v3404 = vsel %vm196, %v1965, %v2326
        %v3405 = vsel %vm196, %v1972, %v2328
        %v3406 = vsel %vm196, %v1979, %v2330
        %v3407 = vsel %vm196, %v1986, %v2332
        %v3408 = vsel %vm196, %v1993, %v2334
        %v3409 = vsel %vm196, %v2000, %v2336
        %vm3410 = vcmask 64512
        %v3411 = vsel %vm3410, %v3402, %v2434
        %v3412 = vsel %vm3410, %v3403, %v2436
        %v3413 = vsel %vm3410, %v3404, %v2438
        %v3414 = vsel %vm3410, %v3405, %v2440
        %v3415 = vsel %vm3410, %v3406, %v2442
        %v3416 = vsel %vm3410, %v3407, %v2444
        %v3417 = vsel %vm3410, %v3408, %v2446
        %v3418 = vsel %vm3410, %v3409, %v2448
        %vm3419 = vcmask 97280
        %v3420 = vsel %vm3419, %v3411, %v2770
        %v3421 = vsel %vm3419, %v3412, %v2772
        %v3422 = vsel %vm3419, %v3413, %v2774
        %v3423 = vsel %vm3419, %v3414, %v2776
        %v3424 = vsel %vm3419, %v3415, %v2778
        %v3425 = vsel %vm3419, %v3416, %v2780
        %v3426 = vsel %vm3419, %v3417, %v2782
        %v3427 = vsel %vm3419, %v3418, %v2784
        %vm3428 = vcmask 130048
        %v3429 = vsel %vm3428, %v3420, %v3106
        %v3430 = vsel %vm3428, %v3421, %v3108
        %v3431 = vsel %vm3428, %v3422, %v3110
        %v3432 = vsel %vm3428, %v3423, %v3112
        %v3433 = vsel %vm3428, %v3424, %v3114
        %v3434 = vsel %vm3428, %v3425, %v3116
        %v3435 = vsel %vm3428, %v3426, %v3118
        %v3436 = vsel %vm3428, %v3427, %v3120
        %vm3437 = vcmask 162816
        %v3438 = vsel %vm3437, %v3429, %v3218
        %v3439 = vsel %vm3437, %v3430, %v3220
        %v3440 = vsel %vm3437, %v3431, %v3222
        %v3441 = vsel %vm3437, %v3432, %v3224
        %v3442 = vsel %vm3437, %v3433, %v3226
        %v3443 = vsel %vm3437, %v3434, %v3228
        %v3444 = vsel %vm3437, %v3435, %v3230
        %v3445 = vsel %vm3437, %v3436, %v3232
        %vm3446 = vcmask 195584
        %v3447 = vsel %vm3446, %v3438, %v3281
        %v3448 = vsel %vm3446, %v3439, %v3283
        %v3449 = vsel %vm3446, %v3440, %v3285
        %v3450 = vsel %vm3446, %v3441, %v3287
        %v3451 = vsel %vm3446, %v3442, %v3289
        %v3452 = vsel %vm3446, %v3443, %v3291
        %v3453 = vsel %vm3446, %v3444, %v3293
        %v3454 = vsel %vm3446, %v3445, %v3295
        %vm3455 = vcmask 228352
        %v3456 = vsel %vm3455, %v3447, %v3344
        %v3457 = vsel %vm3455, %v3448, %v3346
        %v3458 = vsel %vm3455, %v3449, %v3348
        %v3459 = vsel %vm3455, %v3450, %v3350
        %v3460 = vsel %vm3455, %v3451, %v3352
        %v3461 = vsel %vm3455, %v3452, %v3354
        %v3462 = vsel %vm3455, %v3453, %v3356
        %v3463 = vsel %vm3455, %v3454, %v3358
        %vm3464 = vcmask 261120
        %v3465 = vsel %vm3464, %v3456, %v3379
        %v3466 = vsel %vm3464, %v3457, %v3381
        %v3467 = vsel %vm3464, %v3458, %v3383
        %v3468 = vsel %vm3464, %v3459, %v3385
        %v3469 = vsel %vm3464, %v3460, %v3387
        %v3470 = vsel %vm3464, %v3461, %v3389
        %v3471 = vsel %vm3464, %v3462, %v3391
        %v3472 = vsel %vm3464, %v3463, %v3393
        %v3473 = vld [vmem:[%s1] sm:$0xff]
        %v3474 = vld [vmem:[%s1 + $0x8] sm:$0xf]
        %vm3475 = vcmask 293888
        %v3477 = vsel %vm3475, %v3473, 0
        %v3480 = vsel %vm3475, %v3474, 0
        %v3483 = vsel %vm3475, %v3465, 0
        %v3486 = vsel %vm3475, %v3466, 0
        %v3489 = vsel %vm3475, %v3467, 0
        %v3492 = vsel %vm3475, %v3468, 0
        %v3495 = vsel %vm3475, %v3469, 0
        %v3498 = vsel %vm3475, %v3470, 0
        %v3501 = vsel %vm3475, %v3471, 0
        %v3504 = vsel %vm3475, %v3472, 0
        %3506 = vmatprep.subr.mxu0 0.0
        %3507 = vmatpush1.xpose.msra.mxu0 %v3483
        %3508 = vmatprep.subr.mxu0 0.0
        %3509 = vmatpush1.xpose.msra.mxu0 %v3486
        %3510 = vmatprep.subr.mxu0 0.0
        %3511 = vmatpush1.xpose.msra.mxu0 %v3489
        %3512 = vmatprep.subr.mxu0 0.0
        %3513 = vmatpush1.xpose.msra.mxu0 %v3492
        %3514 = vmatprep.subr.mxu0 0.0
        %3515 = vmatpush1.xpose.msra.mxu0 %v3495
        %3516 = vmatprep.subr.mxu0 0.0
        %3517 = vmatpush1.xpose.msra.mxu0 %v3498
        %3518 = vmatprep.subr.mxu0 0.0
        %3519 = vmatpush1.xpose.msra.mxu0 %v3501
        %3520 = vmatprep.subr.mxu0 0.0
        %3521 = vmatpush1.xpose.msra.mxu0 %v3504
        %3522 = vmatprep.subr.mxu0 0.0
        %3523 = vmatpush1.xpose.msra.mxu0 0.0
        %3524 = vmatprep.subr.mxu0 0.0
        %3525 = vmatpush1.xpose.msra.mxu0 0.0
        %3526 = vmatprep.subr.mxu0 0.0
        %3527 = vmatpush1.xpose.msra.mxu0 0.0
        %3528 = vmatprep.subr.mxu0 0.0
        %3529 = vmatpush1.xpose.msra.mxu0 0.0
        %3530 = vmatprep.subr.mxu0 0.0
        %3531 = vmatpush1.xpose.msra.mxu0 0.0
        %3532 = vmatprep.subr.mxu0 0.0
        %3533 = vmatpush1.xpose.msra.mxu0 0.0
        %3534 = vmatprep.subr.mxu0 0.0
        %3535 = vmatpush1.xpose.msra.mxu0 0.0
        %3536 = vmatprep.subr.mxu0 0.0
        %3537 = vmatpush1.xpose.msra.mxu0 0.0
        %3538 = vmatprep.subr.mxu0 0.0
        %3539 = vmatpush1.xpose.msra.mxu0 0.0
        %3540 = vmatprep.subr.mxu0 0.0
        %3541 = vmatpush1.xpose.msra.mxu0 0.0
        %3542 = vmatprep.subr.mxu0 0.0
        %3543 = vmatpush1.xpose.msra.mxu0 0.0
        %3544 = vmatprep.subr.mxu0 0.0
        %3545 = vmatpush1.xpose.msra.mxu0 0.0
        %3546 = vmatprep.subr.mxu0 0.0
        %3547 = vmatpush1.xpose.msra.mxu0 0.0
        %3548 = vmatprep.subr.mxu0 0.0
        %3549 = vmatpush1.xpose.msra.mxu0 0.0
        %3550 = vmatprep.subr.mxu0 0.0
        %3551 = vmatpush1.xpose.msra.mxu0 0.0
        %3552 = vmatprep.subr.mxu0 0.0
        %3553 = vmatpush1.xpose.msra.mxu0 0.0
        %3554 = vmatprep.subr.mxu0 0.0
        %3555 = vmatpush1.xpose.msra.mxu0 0.0
        %3556 = vmatprep.subr.mxu0 0.0
        %3557 = vmatpush1.xpose.msra.mxu0 0.0
        %3558 = vmatprep.subr.mxu0 0.0
        %3559 = vmatpush1.xpose.msra.mxu0 0.0
        %3560 = vmatprep.subr.mxu0 0.0
        %3561 = vmatpush1.xpose.msra.mxu0 0.0
        %3562 = vmatprep.subr.mxu0 0.0
        %3563 = vmatpush1.xpose.msra.mxu0 0.0
        %3564 = vmatprep.subr.mxu0 0.0
        %3565 = vmatpush1.xpose.msra.mxu0 0.0
        %3566 = vmatprep.subr.mxu0 0.0
        %3567 = vmatpush1.xpose.msra.mxu0 0.0
        %3568 = vmatprep.subr.mxu0 0.0
        %3569 = vmatpush1.xpose.msra.mxu0 0.0
        %3570 = vmatprep.mubr.f32.mxu0 0.0
        %3571 = vmatmul.mubr.f32.gmra.mrb[0].mxu0 %v3477
        %v3572 = vpop.f32.mrb[0].mxu0
        %v3573 = vadd.f32 0.0, %v3572
        %v3574 = vpop.f32.mrb[0].mxu0
        %3575 = vmatprep.mubr.f32.mxu0 0.0
        %3576 = vmatmul.mubr.f32.gmra.mrb[0].mxu0 %v3480
        %v3577 = vpop.f32.mrb[0].mxu0
        %v3578 = vadd.f32 0.0, %v3577
        %v3579 = vpop.f32.mrb[0].mxu0
        %3580 = vdwg.mxu0
        %v3581 = vlaneseq
        %v3582 = vshrl.u32 %v3581, 7
        %v3583 = vlaneseq
        %v3584 = vand.u32 %v3583, 127
        %vm3585 = vcmp.eq.s32.totalorder %v3582, %v3584
        %v3586 = vsel %vm3585, 1, 0
        %v3587 = vcvt.s32.f32 %v3586
        %v3652 = vlaneseq
        %v3653 = vshrl.u32 %v3652, 7
        %v3654 = vsub.s32 1, %v3653
        %v3655 = vrot.slane %v1618, %v3654
        %v3656 = vlaneseq
        %v3657 = vshrl.u32 %v3656, 7
        %v3658 = vsub.s32 1, %v3657
        %v3659 = vrot.slane %v1619, %v3658
        %v3660 = vlaneseq
        %v3661 = vshrl.u32 %v3660, 7
        %v3662 = vsub.s32 1, %v3661
        %v3663 = vrot.slane %v1620, %v3662
        %v3664 = vlaneseq
        %v3665 = vshrl.u32 %v3664, 7
        %v3666 = vsub.s32 1, %v3665
        %v3667 = vrot.slane %v1621, %v3666
        %v3668 = vlaneseq
        %v3669 = vshrl.u32 %v3668, 7
        %v3670 = vsub.s32 1, %v3669
        %v3671 = vrot.slane %v1622, %v3670
        %v3672 = vlaneseq
        %v3673 = vshrl.u32 %v3672, 7
        %v3674 = vsub.s32 1, %v3673
        %v3675 = vrot.slane %v1623, %v3674
        %v3676 = vlaneseq
        %v3677 = vshrl.u32 %v3676, 7
        %v3678 = vsub.s32 1, %v3677
        %v3679 = vrot.slane %v1624, %v3678
        %v3680 = vlaneseq
        %v3681 = vshrl.u32 %v3680, 7
        %v3682 = vsub.s32 1, %v3681
        %v3683 = vrot.slane %v1625, %v3682
        %v3684 = vlaneseq
        %v3685 = vshrl.u32 %v3684, 7
        %v3686 = vsub.s32 1, %v3685
        %v3687 = vrot.slane %v1626, %v3686
        %v3688 = vlaneseq
        %v3689 = vshrl.u32 %v3688, 7
        %v3690 = vsub.s32 1, %v3689
        %v3691 = vrot.slane %v1627, %v3690
        %v3692 = vlaneseq
        %v3693 = vshrl.u32 %v3692, 7
        %v3694 = vsub.s32 1, %v3693
        %v3695 = vrot.slane %v1628, %v3694
        %v3696 = vlaneseq
        %v3697 = vshrl.u32 %v3696, 7
        %v3698 = vsub.s32 1, %v3697
        %v3699 = vrot.slane %v1629, %v3698
        %v3700 = vlaneseq
        %v3701 = vshrl.u32 %v3700, 7
        %v3702 = vsub.s32 1, %v3701
        %v3703 = vrot.slane %v1630, %v3702
        %v3704 = vlaneseq
        %v3705 = vshrl.u32 %v3704, 7
        %v3706 = vsub.s32 1, %v3705
        %v3707 = vrot.slane %v1631, %v3706
        %v3708 = vlaneseq
        %v3709 = vshrl.u32 %v3708, 7
        %v3710 = vsub.s32 1, %v3709
        %v3711 = vrot.slane %v1632, %v3710
        %v3712 = vlaneseq
        %v3713 = vshrl.u32 %v3712, 7
        %v3714 = vsub.s32 1, %v3713
        %v3715 = vrot.slane %v1633, %v3714
        %v3716 = vlaneseq
        %v3717 = vshrl.u32 %v3716, 7
        %v3718 = vsub.s32 1, %v3717
        %v3719 = vrot.slane %v1634, %v3718
        %v3720 = vlaneseq
        %v3721 = vshrl.u32 %v3720, 7
        %v3722 = vsub.s32 1, %v3721
        %v3723 = vrot.slane %v1635, %v3722
        %v3724 = vlaneseq
        %v3725 = vshrl.u32 %v3724, 7
        %v3726 = vsub.s32 1, %v3725
        %v3727 = vrot.slane %v1636, %v3726
        %v3728 = vlaneseq
        %v3729 = vshrl.u32 %v3728, 7
        %v3730 = vsub.s32 1, %v3729
        %v3731 = vrot.slane %v1637, %v3730
        %v3732 = vlaneseq
        %v3733 = vshrl.u32 %v3732, 7
        %v3734 = vsub.s32 1, %v3733
        %v3735 = vrot.slane %v1638, %v3734
        %v3736 = vlaneseq
        %v3737 = vshrl.u32 %v3736, 7
        %v3738 = vsub.s32 1, %v3737
        %v3739 = vrot.slane %v1639, %v3738
        %v3740 = vlaneseq
        %v3741 = vshrl.u32 %v3740, 7
        %v3742 = vsub.s32 1, %v3741
        %v3743 = vrot.slane %v1640, %v3742
        %v3744 = vlaneseq
        %v3745 = vshrl.u32 %v3744, 7
        %v3746 = vsub.s32 1, %v3745
        %v3747 = vrot.slane %v1641, %v3746
        %v3748 = vlaneseq
        %v3749 = vshrl.u32 %v3748, 7
        %v3750 = vsub.s32 1, %v3749
        %v3751 = vrot.slane %v1642, %v3750
        %v3752 = vlaneseq
        %v3753 = vshrl.u32 %v3752, 7
        %v3754 = vsub.s32 1, %v3753
        %v3755 = vrot.slane %v1643, %v3754
        %v3756 = vlaneseq
        %v3757 = vshrl.u32 %v3756, 7
        %v3758 = vsub.s32 1, %v3757
        %v3759 = vrot.slane %v1644, %v3758
        %v3760 = vlaneseq
        %v3761 = vshrl.u32 %v3760, 7
        %v3762 = vsub.s32 1, %v3761
        %v3763 = vrot.slane %v1645, %v3762
        %v3764 = vlaneseq
        %v3765 = vshrl.u32 %v3764, 7
        %v3766 = vsub.s32 1, %v3765
        %v3767 = vrot.slane %v1646, %v3766
        %v3768 = vlaneseq
        %v3769 = vshrl.u32 %v3768, 7
        %v3770 = vsub.s32 1, %v3769
        %v3771 = vrot.slane %v1647, %v3770
        %v3772 = vlaneseq
        %v3773 = vshrl.u32 %v3772, 7
        %v3774 = vsub.s32 1, %v3773
        %v3775 = vrot.slane %v1648, %v3774
        %v3776 = vlaneseq
        %v3777 = vshrl.u32 %v3776, 7
        %v3778 = vsub.s32 1, %v3777
        %v3779 = vrot.slane %v1649, %v3778
        %v3780 = vlaneseq
        %v3781 = vshrl.u32 %v3780, 7
        %v3782 = vsub.s32 1, %v3781
        %v3783 = vrot.slane %v1650, %v3782
        %v3784 = vlaneseq
        %v3785 = vshrl.u32 %v3784, 7
        %v3786 = vsub.s32 1, %v3785
        %v3787 = vrot.slane %v1651, %v3786
        %v3788 = vlaneseq
        %v3789 = vshrl.u32 %v3788, 7
        %v3790 = vsub.s32 1, %v3789
        %v3791 = vrot.slane %v1652, %v3790
        %v3792 = vlaneseq
        %v3793 = vshrl.u32 %v3792, 7
        %v3794 = vsub.s32 1, %v3793
        %v3795 = vrot.slane %v1653, %v3794
        %v3796 = vlaneseq
        %v3797 = vshrl.u32 %v3796, 7
        %v3798 = vsub.s32 1, %v3797
        %v3799 = vrot.slane %v1654, %v3798
        %v3800 = vlaneseq
        %v3801 = vshrl.u32 %v3800, 7
        %v3802 = vsub.s32 1, %v3801
        %v3803 = vrot.slane %v1655, %v3802
        %v3804 = vlaneseq
        %v3805 = vshrl.u32 %v3804, 7
        %v3806 = vsub.s32 1, %v3805
        %v3807 = vrot.slane %v1656, %v3806
        %v3808 = vlaneseq
        %v3809 = vshrl.u32 %v3808, 7
        %v3810 = vsub.s32 1, %v3809
        %v3811 = vrot.slane %v1657, %v3810
        %v3812 = vlaneseq
        %v3813 = vshrl.u32 %v3812, 7
        %v3814 = vsub.s32 1, %v3813
        %v3815 = vrot.slane %v1658, %v3814
        %v3816 = vlaneseq
        %v3817 = vshrl.u32 %v3816, 7
        %v3818 = vsub.s32 1, %v3817
        %v3819 = vrot.slane %v1659, %v3818
        %v3820 = vlaneseq
        %v3821 = vshrl.u32 %v3820, 7
        %v3822 = vsub.s32 1, %v3821
        %v3823 = vrot.slane %v1660, %v3822
        %v3824 = vlaneseq
        %v3825 = vshrl.u32 %v3824, 7
        %v3826 = vsub.s32 1, %v3825
        %v3827 = vrot.slane %v1661, %v3826
        %v3828 = vlaneseq
        %v3829 = vshrl.u32 %v3828, 7
        %v3830 = vsub.s32 1, %v3829
        %v3831 = vrot.slane %v1662, %v3830
        %v3832 = vlaneseq
        %v3833 = vshrl.u32 %v3832, 7
        %v3834 = vsub.s32 1, %v3833
        %v3835 = vrot.slane %v1663, %v3834
        %v3836 = vlaneseq
        %v3837 = vshrl.u32 %v3836, 7
        %v3838 = vsub.s32 1, %v3837
        %v3839 = vrot.slane %v1664, %v3838
        %v3840 = vlaneseq
        %v3841 = vshrl.u32 %v3840, 7
        %v3842 = vsub.s32 1, %v3841
        %v3843 = vrot.slane %v1665, %v3842
        %v3844 = vlaneseq
        %v3845 = vshrl.u32 %v3844, 7
        %v3846 = vsub.s32 1, %v3845
        %v3847 = vrot.slane %v1666, %v3846
        %v3848 = vlaneseq
        %v3849 = vshrl.u32 %v3848, 7
        %v3850 = vsub.s32 1, %v3849
        %v3851 = vrot.slane %v1667, %v3850
        %v3852 = vlaneseq
        %v3853 = vshrl.u32 %v3852, 7
        %v3854 = vsub.s32 1, %v3853
        %v3855 = vrot.slane %v1668, %v3854
        %v3856 = vlaneseq
        %v3857 = vshrl.u32 %v3856, 7
        %v3858 = vsub.s32 1, %v3857
        %v3859 = vrot.slane %v1669, %v3858
        %v3860 = vlaneseq
        %v3861 = vshrl.u32 %v3860, 7
        %v3862 = vsub.s32 1, %v3861
        %v3863 = vrot.slane %v1670, %v3862
        %v3864 = vlaneseq
        %v3865 = vshrl.u32 %v3864, 7
        %v3866 = vsub.s32 1, %v3865
        %v3867 = vrot.slane %v1671, %v3866
        %v3868 = vlaneseq
        %v3869 = vshrl.u32 %v3868, 7
        %v3870 = vsub.s32 1, %v3869
        %v3871 = vrot.slane %v1672, %v3870
        %v3872 = vlaneseq
        %v3873 = vshrl.u32 %v3872, 7
        %v3874 = vsub.s32 1, %v3873
        %v3875 = vrot.slane %v1673, %v3874
        %v3876 = vlaneseq
        %v3877 = vshrl.u32 %v3876, 7
        %v3878 = vsub.s32 1, %v3877
        %v3879 = vrot.slane %v1674, %v3878
        %v3880 = vlaneseq
        %v3881 = vshrl.u32 %v3880, 7
        %v3882 = vsub.s32 1, %v3881
        %v3883 = vrot.slane %v1675, %v3882
        %v3884 = vlaneseq
        %v3885 = vshrl.u32 %v3884, 7
        %v3886 = vsub.s32 1, %v3885
        %v3887 = vrot.slane %v1676, %v3886
        %v3888 = vlaneseq
        %v3889 = vshrl.u32 %v3888, 7
        %v3890 = vsub.s32 1, %v3889
        %v3891 = vrot.slane %v1677, %v3890
        %v3892 = vlaneseq
        %v3893 = vshrl.u32 %v3892, 7
        %v3894 = vsub.s32 1, %v3893
        %v3895 = vrot.slane %v1678, %v3894
        %v3896 = vlaneseq
        %v3897 = vshrl.u32 %v3896, 7
        %v3898 = vsub.s32 1, %v3897
        %v3899 = vrot.slane %v1679, %v3898
        %v3900 = vlaneseq
        %v3901 = vshrl.u32 %v3900, 7
        %v3902 = vsub.s32 1, %v3901
        %v3903 = vrot.slane %v1680, %v3902
        %v3904 = vlaneseq
        %v3905 = vshrl.u32 %v3904, 7
        %v3906 = vsub.s32 1, %v3905
        %v3907 = vrot.slane %v1681, %v3906
        %v3908 = vsel %vm1938, %v3659, %v3655
        %v3909 = vsel %vm1940, %v3663, %v3908
        %v3910 = vsel %vm1942, %v3667, %v3909
        %v3911 = vsel %vm1944, %v3671, %v3910
        %v3912 = vsel %vm1946, %v3675, %v3911
        %v3913 = vsel %vm1948, %v3679, %v3912
        %v3914 = vsel %vm1950, %v3683, %v3913
        %v3915 = vsel %vm1938, %v3691, %v3687
        %v3916 = vsel %vm1940, %v3695, %v3915
        %v3917 = vsel %vm1942, %v3699, %v3916
        %v3918 = vsel %vm1944, %v3703, %v3917
        %v3919 = vsel %vm1946, %v3707, %v3918
        %v3920 = vsel %vm1948, %v3711, %v3919
        %v3921 = vsel %vm1950, %v3715, %v3920
        %v3922 = vsel %vm1938, %v3723, %v3719
        %v3923 = vsel %vm1940, %v3727, %v3922
        %v3924 = vsel %vm1942, %v3731, %v3923
        %v3925 = vsel %vm1944, %v3735, %v3924
        %v3926 = vsel %vm1946, %v3739, %v3925
        %v3927 = vsel %vm1948, %v3743, %v3926
        %v3928 = vsel %vm1950, %v3747, %v3927
        %v3929 = vsel %vm1938, %v3755, %v3751
        %v3930 = vsel %vm1940, %v3759, %v3929
        %v3931 = vsel %vm1942, %v3763, %v3930
        %v3932 = vsel %vm1944, %v3767, %v3931
        %v3933 = vsel %vm1946, %v3771, %v3932
        %v3934 = vsel %vm1948, %v3775, %v3933
        %v3935 = vsel %vm1950, %v3779, %v3934
        %v3936 = vsel %vm1938, %v3787, %v3783
        %v3937 = vsel %vm1940, %v3791, %v3936
        %v3938 = vsel %vm1942, %v3795, %v3937
        %v3939 = vsel %vm1944, %v3799, %v3938
        %v3940 = vsel %vm1946, %v3803, %v3939
        %v3941 = vsel %vm1948, %v3807, %v3940
        %v3942 = vsel %vm1950, %v3811, %v3941
        %v3943 = vsel %vm1938, %v3819, %v3815
        %v3944 = vsel %vm1940, %v3823, %v3943
        %v3945 = vsel %vm1942, %v3827, %v3944
        %v3946 = vsel %vm1944, %v3831, %v3945
        %v3947 = vsel %vm1946, %v3835, %v3946
        %v3948 = vsel %vm1948, %v3839, %v3947
        %v3949 = vsel %vm1950, %v3843, %v3948
        %v3950 = vsel %vm1938, %v3851, %v3847
        %v3951 = vsel %vm1940, %v3855, %v3950
        %v3952 = vsel %vm1942, %v3859, %v3951
        %v3953 = vsel %vm1944, %v3863, %v3952
        %v3954 = vsel %vm1946, %v3867, %v3953
        %v3955 = vsel %vm1948, %v3871, %v3954
        %v3956 = vsel %vm1950, %v3875, %v3955
        %v3957 = vsel %vm1938, %v3883, %v3879
        %v3958 = vsel %vm1940, %v3887, %v3957
        %v3959 = vsel %vm1942, %v3891, %v3958
        %v3960 = vsel %vm1944, %v3895, %v3959
        %v3961 = vsel %vm1946, %v3899, %v3960
        %v3962 = vsel %vm1948, %v3903, %v3961
        %v3963 = vsel %vm1950, %v3907, %v3962
        %v3965 = vsel %vm196, %v3587, 0
        %v3967 = vsel %vm196, %v3914, 0
        %v3969 = vsel %vm196, %v3921, 0
        %v3971 = vsel %vm196, %v3928, 0
        %v3973 = vsel %vm196, %v3935, 0
        %v3975 = vsel %vm196, %v3942, 0
        %v3977 = vsel %vm196, %v3949, 0
        %v3979 = vsel %vm196, %v3956, 0
        %v3981 = vsel %vm196, %v3963, 0
        %3983 = vmatprep.subr.mxu0 0.0
        %3984 = vmatpush1.xpose.msra.mxu0 %v3967
        %3985 = vmatprep.subr.mxu0 0.0
        %3986 = vmatpush1.xpose.msra.mxu0 %v3969
        %3987 = vmatprep.subr.mxu0 0.0
        %3988 = vmatpush1.xpose.msra.mxu0 %v3971
        %3989 = vmatprep.subr.mxu0 0.0
        %3990 = vmatpush1.xpose.msra.mxu0 %v3973
        %3991 = vmatprep.subr.mxu0 0.0
        %3992 = vmatpush1.xpose.msra.mxu0 %v3975
        %3993 = vmatprep.subr.mxu0 0.0
        %3994 = vmatpush1.xpose.msra.mxu0 %v3977
        %3995 = vmatprep.subr.mxu0 0.0
        %3996 = vmatpush1.xpose.msra.mxu0 %v3979
        %3997 = vmatprep.subr.mxu0 0.0
        %3998 = vmatpush1.xpose.msra.mxu0 %v3981
        %3999 = vmatprep.subr.mxu0 0.0
        %4000 = vmatpush1.xpose.msra.mxu0 0.0
        %4001 = vmatprep.subr.mxu0 0.0
        %4002 = vmatpush1.xpose.msra.mxu0 0.0
        %4003 = vmatprep.subr.mxu0 0.0
        %4004 = vmatpush1.xpose.msra.mxu0 0.0
        %4005 = vmatprep.subr.mxu0 0.0
        %4006 = vmatpush1.xpose.msra.mxu0 0.0
        %4007 = vmatprep.subr.mxu0 0.0
        %4008 = vmatpush1.xpose.msra.mxu0 0.0
        %4009 = vmatprep.subr.mxu0 0.0
        %4010 = vmatpush1.xpose.msra.mxu0 0.0
        %4011 = vmatprep.subr.mxu0 0.0
        %4012 = vmatpush1.xpose.msra.mxu0 0.0
        %4013 = vmatprep.subr.mxu0 0.0
        %4014 = vmatpush1.xpose.msra.mxu0 0.0
        %4015 = vmatprep.subr.mxu0 0.0
        %4016 = vmatpush1.xpose.msra.mxu0 0.0
        %4017 = vmatprep.subr.mxu0 0.0
        %4018 = vmatpush1.xpose.msra.mxu0 0.0
        %4019 = vmatprep.subr.mxu0 0.0
        %4020 = vmatpush1.xpose.msra.mxu0 0.0
        %4021 = vmatprep.subr.mxu0 0.0
        %4022 = vmatpush1.xpose.msra.mxu0 0.0
        %4023 = vmatprep.subr.mxu0 0.0
        %4024 = vmatpush1.xpose.msra.mxu0 0.0
        %4025 = vmatprep.subr.mxu0 0.0
        %4026 = vmatpush1.xpose.msra.mxu0 0.0
        %4027 = vmatprep.subr.mxu0 0.0
        %4028 = vmatpush1.xpose.msra.mxu0 0.0
        %4029 = vmatprep.subr.mxu0 0.0
        %4030 = vmatpush1.xpose.msra.mxu0 0.0
        %4031 = vmatprep.subr.mxu0 0.0
        %4032 = vmatpush1.xpose.msra.mxu0 0.0
        %4033 = vmatprep.subr.mxu0 0.0
        %4034 = vmatpush1.xpose.msra.mxu0 0.0
        %4035 = vmatprep.subr.mxu0 0.0
        %4036 = vmatpush1.xpose.msra.mxu0 0.0
        %4037 = vmatprep.subr.mxu0 0.0
        %4038 = vmatpush1.xpose.msra.mxu0 0.0
        %4039 = vmatprep.subr.mxu0 0.0
        %4040 = vmatpush1.xpose.msra.mxu0 0.0
        %4041 = vmatprep.subr.mxu0 0.0
        %4042 = vmatpush1.xpose.msra.mxu0 0.0
        %4043 = vmatprep.subr.mxu0 0.0
        %4044 = vmatpush1.xpose.msra.mxu0 0.0
        %4045 = vmatprep.subr.mxu0 0.0
        %4046 = vmatpush1.xpose.msra.mxu0 0.0
        %4047 = vmatprep.mubr.f32.mxu0 0.0
        %4048 = vmatmul.mubr.f32.gmra.mrb[0].mxu0 %v3965
        %v4049 = vpop.f32.mrb[0].mxu0
        %v4050 = vadd.f32 0.0, %v4049
        %v4051 = vpop.f32.mrb[0].mxu0
        %4052 = vdwg.mxu0
        %v4053 = vld [vmem:[%s2] sm:$0xff]
        %v4054 = vld [vmem:[%s2 + $0x8] sm:$0xff]
        %v4055 = vld [vmem:[%s3] sm:$0xff]
        %v4056 = vld [vmem:[%s3 + $0x8] sm:$0xff]
        %4058 = vset.pattern.permute.xlu0 0
        %4059 = vperm.xlu0 %4058, %v4053
        %v4060 = vpop.permute.xlu0 %4059
        %4063 = vset.pattern.permute.xlu0 0
        %4064 = vperm.xlu0 %4063, %v4054
        %v4065 = vpop.permute.xlu0 %4064
        %v4067 = vmul.f32 %v3573, %v4060
        %v4068 = vmul.f32 %v3578, %v4065
        %4070 = vset.pattern.permute.xlu0 0
        %4071 = vperm.xlu0 %4070, %v4055
        %v4072 = vpop.permute.xlu0 %4071
        %4075 = vset.pattern.permute.xlu0 0
        %4076 = vperm.xlu0 %4075, %v4056
        %v4077 = vpop.permute.xlu0 %4076
        %v4079 = vadd.f32 %v4067, %v4072
        %v4080 = vadd.f32 %v4068, %v4077
        %v4081 = vmax.f32 %v4079, 0.0
        %v4082 = vmax.f32 %v4080, 0.0
        %vm4083 = vcmask 523264
        %4084 = vst.msk [vmem:[%s190] sm:$0xff] %vm4083, %v4081
        %vm4085 = vcmask 519168
        %4086 = vst.msk [vmem:[%s190 + $0x8] sm:$0xf] %vm4085, %v4082
        %v4087 = vrot.slane %v4065, 4
        %v4089 = vmul.f32 %v4050, %v4087
        %v4090 = vrot.slane %v4077, 4
        %v4092 = vadd.f32 %v4089, %v4090
        %v4093 = vmax.f32 %v4092, 0.0
        %4094 = vst.msk [vmem:[%s190 + $0xc] sm:$0xf] %vm4085, %v4093
        %s4095 = sand.u32 %s115, 1
        %s4096 = scalar_lea.sflag [#allocation4], %s4095
        %s4097 = sand.u32 %s115, 1
        %s4098 = smul.addr %s4097, 16
        %s4099 = scalar_lea.vmem [#allocation3], %s4098
        // Predicated region
        $region37: #{tpu_custom_call.1} parent=35 // pred_check
          %p4100 = pneg %p125
        $region38: #{tpu_custom_call.1} parent=35 // pred_check_branch
          %4102 = sbr.rel (%p4100) target = $region40
        $region39: #{tpu_custom_call.1} parent=35 // pred_region
          %s4104 = ssub.s32 256, 256
          %4105 = vsyncadd %s4096, %s4104
          %s4106 = smul.addr %s18, 2
          %s4107 = smul.addr %s4106, 128
          %s4108 = scalar_lea.hbm %s4, %s4107
          %s4109 = sshll.u32 %s4099, 4
          %s4110 = int_to_ptr.vmem [resolvable:$true] %s4109
          %4115 = dma.vmem_to_hbm [thread:$0]  %s4110, 256, %s4108, %s4096, 128, 128, 8
        $region40: #{tpu_custom_call.1} parent=35 // pred_fallthru
          _
      $region36: #{tpu_custom_call.1} parent=5 // pred_fallthru
        _
      %p4116 = scmp.le.s32.totalorder 2, %s13
      // Predicated region
      $region41: #{tpu_custom_call.1} parent=5 // pred_check
        %p4117 = pneg %p4116
      $region42: #{tpu_custom_call.1} parent=5 // pred_check_branch
        %4119 = sbr.rel (%p4117) target = $region44
      $region43: #{tpu_custom_call.1} parent=5 // pred_region
        %s4120 = ssub.s32 %s13, 2
        // Predicated region
        $region45: #{tpu_custom_call.1} parent=43 // pred_check
          %p4121 = pneg %p131
        $region46: #{tpu_custom_call.1} parent=43 // pred_check_branch
          %4123 = sbr.rel (%p4121) target = $region48
        $region47: #{tpu_custom_call.1} parent=43 // pred_region
          %s4124 = sand.u32 %s116, 1
          %s4125 = scalar_lea.sflag [#allocation4], %s4124
          %s4126 = sand.u32 %s116, 1
          %s4127 = smul.addr %s4126, 16
          %s4128 = scalar_lea.vmem [#allocation3], %s4127
          %4129 = dma.done %s4125, 256
        $region48: #{tpu_custom_call.1} parent=43 // pred_fallthru
          _
      $region44: #{tpu_custom_call.1} parent=5 // pred_fallthru
        _
    $region6: #{tpu_custom_call.1} parent=1 // loop_footer
      %s17 = sadd.s32 1, %s13
    $region7: #{tpu_custom_call.1} parent=1 // loop_footer_branch
      %12 = sbr.rel target = $region3
    $region8: #{tpu_custom_call.1} parent=1 // loop_exit
      _
    %4130 = vsyncpa [#allocation4], 1
    %s4131 = scalar_lea.sflag [#allocation4], 1
    %4132 = vsyncpa %s4131, 1

</llo_original>
